<compile_context>
chip_gen: v5e
topology: v5e:2x2
jax: 0.10.0
libtpu: 0.0.40
codegen_flags: <defaults>
</compile_context>

<pallas_src>
import functools

import jax
import jax.numpy as jnp
from jax import lax
from jax.experimental import pallas as pl
from jax.experimental.pallas import tpu as pltpu


# --------------------------------------------------------------------------
# Fused kernel: embedding gather + multi-layer bidirectional LSTM, single call
# --------------------------------------------------------------------------
def _word_lstm_kernel(idx_ref, emb_ref, *refs):
    out_ref = refs[-1]
    wb_refs = refs[:-1]                       # per layer: w_fw, b_fw, w_bw, b_bw
    n_layers = len(wb_refs) // 4

    batch, seq = idx_ref.shape
    vocab, _ = emb_ref.shape
    hid = wb_refs[0].shape[1] // 4
    cdt = emb_ref.dtype                       # bf16 MXU operand dtype

    # ---- in-kernel embedding lookup via one-hot matmul (MXU-friendly gather) ----
    idx = idx_ref[...]                        # (batch, seq) int32
    emb = emb_ref[...]                        # (vocab, emb_dim) bf16
    lane_iota = lax.broadcasted_iota(jnp.int32, (batch, vocab), 1)
    xs = []
    for t in range(seq):                      # static unroll (seq is compile-time)
        ids_t = idx[:, t:t + 1]               # (batch, 1)
        onehot = jnp.where(lane_iota == ids_t, 1.0, 0.0).astype(cdt)   # (batch, vocab)
        xs.append(jnp.dot(onehot, emb, preferred_element_type=jnp.float32))

    # ---- one LSTM direction over a list of inputs (processing order) ----
    def run_direction(inputs, w_ref, b_ref):
        w = w_ref[...]                        # ([in_dim + hid], 4*hid) bf16
        b = b_ref[...]                        # (1, 4*hid) f32 (= b_ih + b_hh)
        h = jnp.zeros((batch, hid), jnp.float32)
        c = jnp.zeros((batch, hid), jnp.float32)
        outs = []
        for x in inputs:                      # static unroll -> LLO sees everything
            z = jnp.concatenate([x, h], axis=-1).astype(cdt)   # fused [x ; h] operand
            g = jnp.dot(z, w, preferred_element_type=jnp.float32) + b
            i_g = jax.nn.sigmoid(g[:, 0 * hid:1 * hid])        # PyTorch gate order i,f,g,o
            f_g = jax.nn.sigmoid(g[:, 1 * hid:2 * hid])
            g_g = jnp.tanh(g[:, 2 * hid:3 * hid])
            o_g = jax.nn.sigmoid(g[:, 3 * hid:4 * hid])
            c = f_g * c + i_g * g_g
            h = o_g * jnp.tanh(c)
            outs.append(h)
        return outs

    # ---- stacked bidirectional layers ----
    for layer in range(n_layers):
        w_fw, b_fw, w_bw, b_bw = wb_refs[4 * layer:4 * layer + 4]
        if layer < n_layers - 1:
            # lower layers: next layer consumes the full bidirectional output sequence
            h_fw = run_direction(xs, w_fw, b_fw)
            h_bw = run_direction(xs[::-1], w_bw, b_bw)[::-1]   # realign to time order
            xs = [jnp.concatenate([h_fw[t], h_bw[t]], axis=-1) for t in range(seq)]
        else:
            # top layer: outputs[:, -1, :hid]  = forward state after the full sequence
            #            outputs[:, -1, hid:]  = backward state after processing x_{T-1} only
            h_fw_last = run_direction(xs, w_fw, b_fw)[-1]
            h_bw_at_last = run_direction([xs[-1]], w_bw, b_bw)[0]
            out_ref[...] = jnp.concatenate([h_fw_last, h_bw_at_last], axis=-1)


# --------------------------------------------------------------------------
# Parameter packing (documents the PyTorch nn.LSTM -> kernel weight mapping)
# --------------------------------------------------------------------------
def pack_lstm_direction(w_ih, w_hh, b_ih, b_hh, weight_dtype=jnp.bfloat16):
    """PyTorch: w_ih (4H, in), w_hh (4H, H), b_ih/b_hh (4H,), gate rows ordered i,f,g,o.
    Kernel:  W = [w_ih.T ; w_hh.T]  (in+H, 4H),  b = b_ih + b_hh  (1, 4H)."""
    w = jnp.concatenate([w_ih.T, w_hh.T], axis=0).astype(weight_dtype)
    b = (b_ih + b_hh).reshape(1, -1).astype(jnp.float32)
    return w, b


def init_params(key, vocab, emb_dim, hid_dim, n_layers, weight_dtype=jnp.bfloat16):
    ks = jax.random.split(key, 1 + 8 * n_layers)
    ki = 0

    def nxt():
        nonlocal ki
        k = ks[ki]
        ki += 1
        return k

    s = 0.1
    embedding = (s * jax.random.normal(nxt(), (vocab, emb_dim), jnp.float32)).astype(weight_dtype)
    layers = []
    in_dim = emb_dim
    for _ in range(n_layers):
        layer = {}
        for tag in ("fw", "bw"):
            w_ih = s * jax.random.normal(nxt(), (4 * hid_dim, in_dim), jnp.float32)
            w_hh = s * jax.random.normal(nxt(), (4 * hid_dim, hid_dim), jnp.float32)
            b_ih = s * jax.random.normal(nxt(), (4 * hid_dim,), jnp.float32)
            b_hh = s * jax.random.normal(nxt(), (4 * hid_dim,), jnp.float32)
            w, b = pack_lstm_direction(w_ih, w_hh, b_ih, b_hh, weight_dtype)
            layer["w_" + tag] = w
            layer["b_" + tag] = b
        layers.append(layer)
        in_dim = 2 * hid_dim                  # bidirectional output feeds the next layer
    return {"embedding": embedding, "layers": layers}


# --------------------------------------------------------------------------
# Wrapper
# --------------------------------------------------------------------------
def word_lstm_forward(params, sequence_idx):
    """wordLSTM.forward: (batch, seq) int ids -> (batch, 2*hid) f32 (= outputs[:, -1, :])."""
    batch, _ = sequence_idx.shape
    hid = params["layers"][0]["w_fw"].shape[1] // 4
    flat = []
    for lyr in params["layers"]:
        flat += [lyr["w_fw"], lyr["b_fw"], lyr["w_bw"], lyr["b_bw"]]

    vmem = pl.BlockSpec(memory_space=pltpu.MemorySpace.VMEM)
    return pl.pallas_call(
        _word_lstm_kernel,
        out_shape=jax.ShapeDtypeStruct((batch, 2 * hid), jnp.float32),
        in_specs=[vmem] * (2 + len(flat)),
        out_specs=vmem,
    )(sequence_idx.astype(jnp.int32), params["embedding"], *flat)


if __name__ == "__main__":
    BATCH, SEQ, VOCAB, EMB, HID, N_LAYERS = 2, 8, 50, 32, 32, 2

    key = jax.random.PRNGKey(0)
    k_par, k_idx = jax.random.split(key)

    params = init_params(k_par, VOCAB, EMB, HID, N_LAYERS)
    sequence_idx = jax.random.randint(k_idx, (BATCH, SEQ), 0, VOCAB, dtype=jnp.int32)

    fwd = jax.jit(word_lstm_forward)
    out = fwd(params, sequence_idx)
    jax.block_until_ready(out)

    assert out.shape == (BATCH, 2 * HID) and out.dtype == jnp.float32
    assert bool(jnp.all(jnp.isfinite(out)))
    print("KERNEL_OK")
</pallas_src>

<mosaic_0001>
module attributes {stable_mosaic.version = 11 : i64} {
  func.func @_word_lstm_kernel(%arg0: memref<2x8xi32, #tpu.memory_space<vmem>>, %arg1: memref<50x32xbf16, #tpu.memory_space<vmem>>, %arg2: memref<64x128xbf16, #tpu.memory_space<vmem>>, %arg3: memref<1x128xf32, #tpu.memory_space<vmem>>, %arg4: memref<64x128xbf16, #tpu.memory_space<vmem>>, %arg5: memref<1x128xf32, #tpu.memory_space<vmem>>, %arg6: memref<96x128xbf16, #tpu.memory_space<vmem>>, %arg7: memref<1x128xf32, #tpu.memory_space<vmem>>, %arg8: memref<96x128xbf16, #tpu.memory_space<vmem>>, %arg9: memref<1x128xf32, #tpu.memory_space<vmem>>, %arg10: memref<2x64xf32, #tpu.memory_space<vmem>>) attributes {dimension_semantics = [], scalar_prefetch = 0 : i64, scratch_operands = 0 : i64, tpu.core_type = #tpu.core_type<tc>} {
    %c0 = arith.constant 0 : index
    %c0_0 = arith.constant 0 : index
    %0 = vector.load %arg0[%c0, %c0_0] : memref<2x8xi32, #tpu.memory_space<vmem>>, vector<2x8xi32>
    %c0_1 = arith.constant 0 : index
    %c0_2 = arith.constant 0 : index
    %1 = vector.load %arg1[%c0_1, %c0_2] : memref<50x32xbf16, #tpu.memory_space<vmem>>, vector<50x32xbf16>
    %2 = tpu.iota {dimensions = array<i32: 1>} : vector<2x50xi32>
    %3 = vector.extract_strided_slice %0 {offsets = [0, 0], sizes = [2, 1], strides = [1, 1]} : vector<2x8xi32> to vector<2x1xi32>
    %4 = vector.broadcast %3 : vector<2x1xi32> to vector<2x50xi32>
    %5 = arith.cmpi eq, %2, %4 : vector<2x50xi32>
    %cst = arith.constant 1.000000e+00 : f32
    %cst_3 = arith.constant 0.000000e+00 : f32
    %6 = vector.broadcast %cst : f32 to vector<2x50xf32>
    %7 = vector.broadcast %cst_3 : f32 to vector<2x50xf32>
    %8 = arith.select %5, %6, %7 : vector<2x50xi1>, vector<2x50xf32>
    %9 = arith.truncf %8 : vector<2x50xf32> to vector<2x50xbf16>
    %cst_4 = arith.constant dense<0.000000e+00> : vector<2x32xf32>
    %10 = tpu.matmul %9, %1, %cst_4 {dimension_numbers = #tpu.dot_dimension_numbers<[1], [0], [0], [1], [0, 0, 1, 1], [], []>} : vector<2x50xbf16>, vector<50x32xbf16>, vector<2x32xf32> -> vector<2x32xf32>
    %11 = vector.extract_strided_slice %0 {offsets = [0, 1], sizes = [2, 1], strides = [1, 1]} : vector<2x8xi32> to vector<2x1xi32>
    %12 = vector.broadcast %11 : vector<2x1xi32> to vector<2x50xi32>
    %13 = arith.cmpi eq, %2, %12 : vector<2x50xi32>
    %cst_5 = arith.constant 1.000000e+00 : f32
    %cst_6 = arith.constant 0.000000e+00 : f32
    %14 = vector.broadcast %cst_5 : f32 to vector<2x50xf32>
    %15 = vector.broadcast %cst_6 : f32 to vector<2x50xf32>
    %16 = arith.select %13, %14, %15 : vector<2x50xi1>, vector<2x50xf32>
    %17 = arith.truncf %16 : vector<2x50xf32> to vector<2x50xbf16>
    %cst_7 = arith.constant dense<0.000000e+00> : vector<2x32xf32>
    %18 = tpu.matmul %17, %1, %cst_7 {dimension_numbers = #tpu.dot_dimension_numbers<[1], [0], [0], [1], [0, 0, 1, 1], [], []>} : vector<2x50xbf16>, vector<50x32xbf16>, vector<2x32xf32> -> vector<2x32xf32>
    %19 = vector.extract_strided_slice %0 {offsets = [0, 2], sizes = [2, 1], strides = [1, 1]} : vector<2x8xi32> to vector<2x1xi32>
    %20 = vector.broadcast %19 : vector<2x1xi32> to vector<2x50xi32>
    %21 = arith.cmpi eq, %2, %20 : vector<2x50xi32>
    %cst_8 = arith.constant 1.000000e+00 : f32
    %cst_9 = arith.constant 0.000000e+00 : f32
    %22 = vector.broadcast %cst_8 : f32 to vector<2x50xf32>
    %23 = vector.broadcast %cst_9 : f32 to vector<2x50xf32>
    %24 = arith.select %21, %22, %23 : vector<2x50xi1>, vector<2x50xf32>
    %25 = arith.truncf %24 : vector<2x50xf32> to vector<2x50xbf16>
    %cst_10 = arith.constant dense<0.000000e+00> : vector<2x32xf32>
    %26 = tpu.matmul %25, %1, %cst_10 {dimension_numbers = #tpu.dot_dimension_numbers<[1], [0], [0], [1], [0, 0, 1, 1], [], []>} : vector<2x50xbf16>, vector<50x32xbf16>, vector<2x32xf32> -> vector<2x32xf32>
    %27 = vector.extract_strided_slice %0 {offsets = [0, 3], sizes = [2, 1], strides = [1, 1]} : vector<2x8xi32> to vector<2x1xi32>
    %28 = vector.broadcast %27 : vector<2x1xi32> to vector<2x50xi32>
    %29 = arith.cmpi eq, %2, %28 : vector<2x50xi32>
    %cst_11 = arith.constant 1.000000e+00 : f32
    %cst_12 = arith.constant 0.000000e+00 : f32
    %30 = vector.broadcast %cst_11 : f32 to vector<2x50xf32>
    %31 = vector.broadcast %cst_12 : f32 to vector<2x50xf32>
    %32 = arith.select %29, %30, %31 : vector<2x50xi1>, vector<2x50xf32>
    %33 = arith.truncf %32 : vector<2x50xf32> to vector<2x50xbf16>
    %cst_13 = arith.constant dense<0.000000e+00> : vector<2x32xf32>
    %34 = tpu.matmul %33, %1, %cst_13 {dimension_numbers = #tpu.dot_dimension_numbers<[1], [0], [0], [1], [0, 0, 1, 1], [], []>} : vector<2x50xbf16>, vector<50x32xbf16>, vector<2x32xf32> -> vector<2x32xf32>
    %35 = vector.extract_strided_slice %0 {offsets = [0, 4], sizes = [2, 1], strides = [1, 1]} : vector<2x8xi32> to vector<2x1xi32>
    %36 = vector.broadcast %35 : vector<2x1xi32> to vector<2x50xi32>
    %37 = arith.cmpi eq, %2, %36 : vector<2x50xi32>
    %cst_14 = arith.constant 1.000000e+00 : f32
    %cst_15 = arith.constant 0.000000e+00 : f32
    %38 = vector.broadcast %cst_14 : f32 to vector<2x50xf32>
    %39 = vector.broadcast %cst_15 : f32 to vector<2x50xf32>
    %40 = arith.select %37, %38, %39 : vector<2x50xi1>, vector<2x50xf32>
    %41 = arith.truncf %40 : vector<2x50xf32> to vector<2x50xbf16>
    %cst_16 = arith.constant dense<0.000000e+00> : vector<2x32xf32>
    %42 = tpu.matmul %41, %1, %cst_16 {dimension_numbers = #tpu.dot_dimension_numbers<[1], [0], [0], [1], [0, 0, 1, 1], [], []>} : vector<2x50xbf16>, vector<50x32xbf16>, vector<2x32xf32> -> vector<2x32xf32>
    %43 = vector.extract_strided_slice %0 {offsets = [0, 5], sizes = [2, 1], strides = [1, 1]} : vector<2x8xi32> to vector<2x1xi32>
    %44 = vector.broadcast %43 : vector<2x1xi32> to vector<2x50xi32>
    %45 = arith.cmpi eq, %2, %44 : vector<2x50xi32>
    %cst_17 = arith.constant 1.000000e+00 : f32
    %cst_18 = arith.constant 0.000000e+00 : f32
    %46 = vector.broadcast %cst_17 : f32 to vector<2x50xf32>
    %47 = vector.broadcast %cst_18 : f32 to vector<2x50xf32>
    %48 = arith.select %45, %46, %47 : vector<2x50xi1>, vector<2x50xf32>
    %49 = arith.truncf %48 : vector<2x50xf32> to vector<2x50xbf16>
    %cst_19 = arith.constant dense<0.000000e+00> : vector<2x32xf32>
    %50 = tpu.matmul %49, %1, %cst_19 {dimension_numbers = #tpu.dot_dimension_numbers<[1], [0], [0], [1], [0, 0, 1, 1], [], []>} : vector<2x50xbf16>, vector<50x32xbf16>, vector<2x32xf32> -> vector<2x32xf32>
    %51 = vector.extract_strided_slice %0 {offsets = [0, 6], sizes = [2, 1], strides = [1, 1]} : vector<2x8xi32> to vector<2x1xi32>
    %52 = vector.broadcast %51 : vector<2x1xi32> to vector<2x50xi32>
    %53 = arith.cmpi eq, %2, %52 : vector<2x50xi32>
    %cst_20 = arith.constant 1.000000e+00 : f32
    %cst_21 = arith.constant 0.000000e+00 : f32
    %54 = vector.broadcast %cst_20 : f32 to vector<2x50xf32>
    %55 = vector.broadcast %cst_21 : f32 to vector<2x50xf32>
    %56 = arith.select %53, %54, %55 : vector<2x50xi1>, vector<2x50xf32>
    %57 = arith.truncf %56 : vector<2x50xf32> to vector<2x50xbf16>
    %cst_22 = arith.constant dense<0.000000e+00> : vector<2x32xf32>
    %58 = tpu.matmul %57, %1, %cst_22 {dimension_numbers = #tpu.dot_dimension_numbers<[1], [0], [0], [1], [0, 0, 1, 1], [], []>} : vector<2x50xbf16>, vector<50x32xbf16>, vector<2x32xf32> -> vector<2x32xf32>
    %59 = vector.extract_strided_slice %0 {offsets = [0, 7], sizes = [2, 1], strides = [1, 1]} : vector<2x8xi32> to vector<2x1xi32>
    %60 = vector.broadcast %59 : vector<2x1xi32> to vector<2x50xi32>
    %61 = arith.cmpi eq, %2, %60 : vector<2x50xi32>
    %cst_23 = arith.constant 1.000000e+00 : f32
    %cst_24 = arith.constant 0.000000e+00 : f32
    %62 = vector.broadcast %cst_23 : f32 to vector<2x50xf32>
    %63 = vector.broadcast %cst_24 : f32 to vector<2x50xf32>
    %64 = arith.select %61, %62, %63 : vector<2x50xi1>, vector<2x50xf32>
    %65 = arith.truncf %64 : vector<2x50xf32> to vector<2x50xbf16>
    %cst_25 = arith.constant dense<0.000000e+00> : vector<2x32xf32>
    %66 = tpu.matmul %65, %1, %cst_25 {dimension_numbers = #tpu.dot_dimension_numbers<[1], [0], [0], [1], [0, 0, 1, 1], [], []>} : vector<2x50xbf16>, vector<50x32xbf16>, vector<2x32xf32> -> vector<2x32xf32>
    %c0_26 = arith.constant 0 : index
    %c0_27 = arith.constant 0 : index
    %67 = vector.load %arg2[%c0_26, %c0_27] : memref<64x128xbf16, #tpu.memory_space<vmem>>, vector<64x128xbf16>
    %c0_28 = arith.constant 0 : index
    %c0_29 = arith.constant 0 : index
    %68 = vector.load %arg3[%c0_28, %c0_29] : memref<1x128xf32, #tpu.memory_space<vmem>>, vector<1x128xf32>
    %cst_30 = arith.constant 0.000000e+00 : f32
    %69 = vector.broadcast %cst_30 : f32 to vector<2x32xf32>
    %cst_31 = arith.constant 0.000000e+00 : f32
    %70 = vector.broadcast %cst_31 : f32 to vector<2x32xf32>
    %71 = tpu.concatenate %10, %69 in 1 : vector<2x32xf32>, vector<2x32xf32> -> vector<2x64xf32>
    %72 = arith.truncf %71 : vector<2x64xf32> to vector<2x64xbf16>
    %cst_32 = arith.constant dense<0.000000e+00> : vector<2x128xf32>
    %73 = tpu.matmul %72, %67, %cst_32 {dimension_numbers = #tpu.dot_dimension_numbers<[1], [0], [0], [1], [0, 0, 1, 1], [], []>} : vector<2x64xbf16>, vector<64x128xbf16>, vector<2x128xf32> -> vector<2x128xf32>
    %74 = vector.broadcast %68 : vector<1x128xf32> to vector<2x128xf32>
    %75 = arith.addf %73, %74 : vector<2x128xf32>
    %76 = vector.extract_strided_slice %75 {offsets = [0, 0], sizes = [2, 32], strides = [1, 1]} : vector<2x128xf32> to vector<2x32xf32>
    %77 = arith.negf %76 : vector<2x32xf32>
    %78 = math.exp %77 : vector<2x32xf32>
    %cst_33 = arith.constant 1.000000e+00 : f32
    %79 = vector.broadcast %cst_33 : f32 to vector<2x32xf32>
    %80 = arith.addf %79, %78 : vector<2x32xf32>
    %81 = arith.divf %79, %80 : vector<2x32xf32>
    %82 = vector.extract_strided_slice %75 {offsets = [0, 32], sizes = [2, 32], strides = [1, 1]} : vector<2x128xf32> to vector<2x32xf32>
    %83 = arith.negf %82 : vector<2x32xf32>
    %84 = math.exp %83 : vector<2x32xf32>
    %cst_34 = arith.constant 1.000000e+00 : f32
    %85 = vector.broadcast %cst_34 : f32 to vector<2x32xf32>
    %86 = arith.addf %85, %84 : vector<2x32xf32>
    %87 = arith.divf %85, %86 : vector<2x32xf32>
    %88 = vector.extract_strided_slice %75 {offsets = [0, 64], sizes = [2, 32], strides = [1, 1]} : vector<2x128xf32> to vector<2x32xf32>
    %89 = math.tanh %88 : vector<2x32xf32>
    %90 = vector.extract_strided_slice %75 {offsets = [0, 96], sizes = [2, 32], strides = [1, 1]} : vector<2x128xf32> to vector<2x32xf32>
    %91 = arith.negf %90 : vector<2x32xf32>
    %92 = math.exp %91 : vector<2x32xf32>
    %cst_35 = arith.constant 1.000000e+00 : f32
    %93 = vector.broadcast %cst_35 : f32 to vector<2x32xf32>
    %94 = arith.addf %93, %92 : vector<2x32xf32>
    %95 = arith.divf %93, %94 : vector<2x32xf32>
    %96 = arith.mulf %87, %70 : vector<2x32xf32>
    %97 = arith.mulf %81, %89 : vector<2x32xf32>
    %98 = arith.addf %96, %97 : vector<2x32xf32>
    %99 = math.tanh %98 : vector<2x32xf32>
    %100 = arith.mulf %95, %99 : vector<2x32xf32>
    %101 = tpu.concatenate %18, %100 in 1 : vector<2x32xf32>, vector<2x32xf32> -> vector<2x64xf32>
    %102 = arith.truncf %101 : vector<2x64xf32> to vector<2x64xbf16>
    %cst_36 = arith.constant dense<0.000000e+00> : vector<2x128xf32>
    %103 = tpu.matmul %102, %67, %cst_36 {dimension_numbers = #tpu.dot_dimension_numbers<[1], [0], [0], [1], [0, 0, 1, 1], [], []>} : vector<2x64xbf16>, vector<64x128xbf16>, vector<2x128xf32> -> vector<2x128xf32>
    %104 = vector.broadcast %68 : vector<1x128xf32> to vector<2x128xf32>
    %105 = arith.addf %103, %104 : vector<2x128xf32>
    %106 = vector.extract_strided_slice %105 {offsets = [0, 0], sizes = [2, 32], strides = [1, 1]} : vector<2x128xf32> to vector<2x32xf32>
    %107 = arith.negf %106 : vector<2x32xf32>
    %108 = math.exp %107 : vector<2x32xf32>
    %cst_37 = arith.constant 1.000000e+00 : f32
    %109 = vector.broadcast %cst_37 : f32 to vector<2x32xf32>
    %110 = arith.addf %109, %108 : vector<2x32xf32>
    %111 = arith.divf %109, %110 : vector<2x32xf32>
    %112 = vector.extract_strided_slice %105 {offsets = [0, 32], sizes = [2, 32], strides = [1, 1]} : vector<2x128xf32> to vector<2x32xf32>
    %113 = arith.negf %112 : vector<2x32xf32>
    %114 = math.exp %113 : vector<2x32xf32>
    %cst_38 = arith.constant 1.000000e+00 : f32
    %115 = vector.broadcast %cst_38 : f32 to vector<2x32xf32>
    %116 = arith.addf %115, %114 : vector<2x32xf32>
    %117 = arith.divf %115, %116 : vector<2x32xf32>
    %118 = vector.extract_strided_slice %105 {offsets = [0, 64], sizes = [2, 32], strides = [1, 1]} : vector<2x128xf32> to vector<2x32xf32>
    %119 = math.tanh %118 : vector<2x32xf32>
    %120 = vector.extract_strided_slice %105 {offsets = [0, 96], sizes = [2, 32], strides = [1, 1]} : vector<2x128xf32> to vector<2x32xf32>
    %121 = arith.negf %120 : vector<2x32xf32>
    %122 = math.exp %121 : vector<2x32xf32>
    %cst_39 = arith.constant 1.000000e+00 : f32
    %123 = vector.broadcast %cst_39 : f32 to vector<2x32xf32>
    %124 = arith.addf %123, %122 : vector<2x32xf32>
    %125 = arith.divf %123, %124 : vector<2x32xf32>
    %126 = arith.mulf %117, %98 : vector<2x32xf32>
    %127 = arith.mulf %111, %119 : vector<2x32xf32>
    %128 = arith.addf %126, %127 : vector<2x32xf32>
    %129 = math.tanh %128 : vector<2x32xf32>
    %130 = arith.mulf %125, %129 : vector<2x32xf32>
    %131 = tpu.concatenate %26, %130 in 1 : vector<2x32xf32>, vector<2x32xf32> -> vector<2x64xf32>
    %132 = arith.truncf %131 : vector<2x64xf32> to vector<2x64xbf16>
    %cst_40 = arith.constant dense<0.000000e+00> : vector<2x128xf32>
    %133 = tpu.matmul %132, %67, %cst_40 {dimension_numbers = #tpu.dot_dimension_numbers<[1], [0], [0], [1], [0, 0, 1, 1], [], []>} : vector<2x64xbf16>, vector<64x128xbf16>, vector<2x128xf32> -> vector<2x128xf32>
    %134 = vector.broadcast %68 : vector<1x128xf32> to vector<2x128xf32>
    %135 = arith.addf %133, %134 : vector<2x128xf32>
    %136 = vector.extract_strided_slice %135 {offsets = [0, 0], sizes = [2, 32], strides = [1, 1]} : vector<2x128xf32> to vector<2x32xf32>
    %137 = arith.negf %136 : vector<2x32xf32>
    %138 = math.exp %137 : vector<2x32xf32>
    %cst_41 = arith.constant 1.000000e+00 : f32
    %139 = vector.broadcast %cst_41 : f32 to vector<2x32xf32>
    %140 = arith.addf %139, %138 : vector<2x32xf32>
    %141 = arith.divf %139, %140 : vector<2x32xf32>
    %142 = vector.extract_strided_slice %135 {offsets = [0, 32], sizes = [2, 32], strides = [1, 1]} : vector<2x128xf32> to vector<2x32xf32>
    %143 = arith.negf %142 : vector<2x32xf32>
    %144 = math.exp %143 : vector<2x32xf32>
    %cst_42 = arith.constant 1.000000e+00 : f32
    %145 = vector.broadcast %cst_42 : f32 to vector<2x32xf32>
    %146 = arith.addf %145, %144 : vector<2x32xf32>
    %147 = arith.divf %145, %146 : vector<2x32xf32>
    %148 = vector.extract_strided_slice %135 {offsets = [0, 64], sizes = [2, 32], strides = [1, 1]} : vector<2x128xf32> to vector<2x32xf32>
    %149 = math.tanh %148 : vector<2x32xf32>
    %150 = vector.extract_strided_slice %135 {offsets = [0, 96], sizes = [2, 32], strides = [1, 1]} : vector<2x128xf32> to vector<2x32xf32>
    %151 = arith.negf %150 : vector<2x32xf32>
    %152 = math.exp %151 : vector<2x32xf32>
    %cst_43 = arith.constant 1.000000e+00 : f32
    %153 = vector.broadcast %cst_43 : f32 to vector<2x32xf32>
    %154 = arith.addf %153, %152 : vector<2x32xf32>
    %155 = arith.divf %153, %154 : vector<2x32xf32>
    %156 = arith.mulf %147, %128 : vector<2x32xf32>
    %157 = arith.mulf %141, %149 : vector<2x32xf32>
    %158 = arith.addf %156, %157 : vector<2x32xf32>
    %159 = math.tanh %158 : vector<2x32xf32>
    %160 = arith.mulf %155, %159 : vector<2x32xf32>
    %161 = tpu.concatenate %34, %160 in 1 : vector<2x32xf32>, vector<2x32xf32> -> vector<2x64xf32>
    %162 = arith.truncf %161 : vector<2x64xf32> to vector<2x64xbf16>
    %cst_44 = arith.constant dense<0.000000e+00> : vector<2x128xf32>
    %163 = tpu.matmul %162, %67, %cst_44 {dimension_numbers = #tpu.dot_dimension_numbers<[1], [0], [0], [1], [0, 0, 1, 1], [], []>} : vector<2x64xbf16>, vector<64x128xbf16>, vector<2x128xf32> -> vector<2x128xf32>
    %164 = vector.broadcast %68 : vector<1x128xf32> to vector<2x128xf32>
    %165 = arith.addf %163, %164 : vector<2x128xf32>
    %166 = vector.extract_strided_slice %165 {offsets = [0, 0], sizes = [2, 32], strides = [1, 1]} : vector<2x128xf32> to vector<2x32xf32>
    %167 = arith.negf %166 : vector<2x32xf32>
    %168 = math.exp %167 : vector<2x32xf32>
    %cst_45 = arith.constant 1.000000e+00 : f32
    %169 = vector.broadcast %cst_45 : f32 to vector<2x32xf32>
    %170 = arith.addf %169, %168 : vector<2x32xf32>
    %171 = arith.divf %169, %170 : vector<2x32xf32>
    %172 = vector.extract_strided_slice %165 {offsets = [0, 32], sizes = [2, 32], strides = [1, 1]} : vector<2x128xf32> to vector<2x32xf32>
    %173 = arith.negf %172 : vector<2x32xf32>
    %174 = math.exp %173 : vector<2x32xf32>
    %cst_46 = arith.constant 1.000000e+00 : f32
    %175 = vector.broadcast %cst_46 : f32 to vector<2x32xf32>
    %176 = arith.addf %175, %174 : vector<2x32xf32>
    %177 = arith.divf %175, %176 : vector<2x32xf32>
    %178 = vector.extract_strided_slice %165 {offsets = [0, 64], sizes = [2, 32], strides = [1, 1]} : vector<2x128xf32> to vector<2x32xf32>
    %179 = math.tanh %178 : vector<2x32xf32>
    %180 = vector.extract_strided_slice %165 {offsets = [0, 96], sizes = [2, 32], strides = [1, 1]} : vector<2x128xf32> to vector<2x32xf32>
    %181 = arith.negf %180 : vector<2x32xf32>
    %182 = math.exp %181 : vector<2x32xf32>
    %cst_47 = arith.constant 1.000000e+00 : f32
    %183 = vector.broadcast %cst_47 : f32 to vector<2x32xf32>
    %184 = arith.addf %183, %182 : vector<2x32xf32>
    %185 = arith.divf %183, %184 : vector<2x32xf32>
    %186 = arith.mulf %177, %158 : vector<2x32xf32>
    %187 = arith.mulf %171, %179 : vector<2x32xf32>
    %188 = arith.addf %186, %187 : vector<2x32xf32>
    %189 = math.tanh %188 : vector<2x32xf32>
    %190 = arith.mulf %185, %189 : vector<2x32xf32>
    %191 = tpu.concatenate %42, %190 in 1 : vector<2x32xf32>, vector<2x32xf32> -> vector<2x64xf32>
    %192 = arith.truncf %191 : vector<2x64xf32> to vector<2x64xbf16>
    %cst_48 = arith.constant dense<0.000000e+00> : vector<2x128xf32>
    %193 = tpu.matmul %192, %67, %cst_48 {dimension_numbers = #tpu.dot_dimension_numbers<[1], [0], [0], [1], [0, 0, 1, 1], [], []>} : vector<2x64xbf16>, vector<64x128xbf16>, vector<2x128xf32> -> vector<2x128xf32>
    %194 = vector.broadcast %68 : vector<1x128xf32> to vector<2x128xf32>
    %195 = arith.addf %193, %194 : vector<2x128xf32>
    %196 = vector.extract_strided_slice %195 {offsets = [0, 0], sizes = [2, 32], strides = [1, 1]} : vector<2x128xf32> to vector<2x32xf32>
    %197 = arith.negf %196 : vector<2x32xf32>
    %198 = math.exp %197 : vector<2x32xf32>
    %cst_49 = arith.constant 1.000000e+00 : f32
    %199 = vector.broadcast %cst_49 : f32 to vector<2x32xf32>
    %200 = arith.addf %199, %198 : vector<2x32xf32>
    %201 = arith.divf %199, %200 : vector<2x32xf32>
    %202 = vector.extract_strided_slice %195 {offsets = [0, 32], sizes = [2, 32], strides = [1, 1]} : vector<2x128xf32> to vector<2x32xf32>
    %203 = arith.negf %202 : vector<2x32xf32>
    %204 = math.exp %203 : vector<2x32xf32>
    %cst_50 = arith.constant 1.000000e+00 : f32
    %205 = vector.broadcast %cst_50 : f32 to vector<2x32xf32>
    %206 = arith.addf %205, %204 : vector<2x32xf32>
    %207 = arith.divf %205, %206 : vector<2x32xf32>
    %208 = vector.extract_strided_slice %195 {offsets = [0, 64], sizes = [2, 32], strides = [1, 1]} : vector<2x128xf32> to vector<2x32xf32>
    %209 = math.tanh %208 : vector<2x32xf32>
    %210 = vector.extract_strided_slice %195 {offsets = [0, 96], sizes = [2, 32], strides = [1, 1]} : vector<2x128xf32> to vector<2x32xf32>
    %211 = arith.negf %210 : vector<2x32xf32>
    %212 = math.exp %211 : vector<2x32xf32>
    %cst_51 = arith.constant 1.000000e+00 : f32
    %213 = vector.broadcast %cst_51 : f32 to vector<2x32xf32>
    %214 = arith.addf %213, %212 : vector<2x32xf32>
    %215 = arith.divf %213, %214 : vector<2x32xf32>
    %216 = arith.mulf %207, %188 : vector<2x32xf32>
    %217 = arith.mulf %201, %209 : vector<2x32xf32>
    %218 = arith.addf %216, %217 : vector<2x32xf32>
    %219 = math.tanh %218 : vector<2x32xf32>
    %220 = arith.mulf %215, %219 : vector<2x32xf32>
    %221 = tpu.concatenate %50, %220 in 1 : vector<2x32xf32>, vector<2x32xf32> -> vector<2x64xf32>
    %222 = arith.truncf %221 : vector<2x64xf32> to vector<2x64xbf16>
    %cst_52 = arith.constant dense<0.000000e+00> : vector<2x128xf32>
    %223 = tpu.matmul %222, %67, %cst_52 {dimension_numbers = #tpu.dot_dimension_numbers<[1], [0], [0], [1], [0, 0, 1, 1], [], []>} : vector<2x64xbf16>, vector<64x128xbf16>, vector<2x128xf32> -> vector<2x128xf32>
    %224 = vector.broadcast %68 : vector<1x128xf32> to vector<2x128xf32>
    %225 = arith.addf %223, %224 : vector<2x128xf32>
    %226 = vector.extract_strided_slice %225 {offsets = [0, 0], sizes = [2, 32], strides = [1, 1]} : vector<2x128xf32> to vector<2x32xf32>
    %227 = arith.negf %226 : vector<2x32xf32>
    %228 = math.exp %227 : vector<2x32xf32>
    %cst_53 = arith.constant 1.000000e+00 : f32
    %229 = vector.broadcast %cst_53 : f32 to vector<2x32xf32>
    %230 = arith.addf %229, %228 : vector<2x32xf32>
    %231 = arith.divf %229, %230 : vector<2x32xf32>
    %232 = vector.extract_strided_slice %225 {offsets = [0, 32], sizes = [2, 32], strides = [1, 1]} : vector<2x128xf32> to vector<2x32xf32>
    %233 = arith.negf %232 : vector<2x32xf32>
    %234 = math.exp %233 : vector<2x32xf32>
    %cst_54 = arith.constant 1.000000e+00 : f32
    %235 = vector.broadcast %cst_54 : f32 to vector<2x32xf32>
    %236 = arith.addf %235, %234 : vector<2x32xf32>
    %237 = arith.divf %235, %236 : vector<2x32xf32>
    %238 = vector.extract_strided_slice %225 {offsets = [0, 64], sizes = [2, 32], strides = [1, 1]} : vector<2x128xf32> to vector<2x32xf32>
    %239 = math.tanh %238 : vector<2x32xf32>
    %240 = vector.extract_strided_slice %225 {offsets = [0, 96], sizes = [2, 32], strides = [1, 1]} : vector<2x128xf32> to vector<2x32xf32>
    %241 = arith.negf %240 : vector<2x32xf32>
    %242 = math.exp %241 : vector<2x32xf32>
    %cst_55 = arith.constant 1.000000e+00 : f32
    %243 = vector.broadcast %cst_55 : f32 to vector<2x32xf32>
    %244 = arith.addf %243, %242 : vector<2x32xf32>
    %245 = arith.divf %243, %244 : vector<2x32xf32>
    %246 = arith.mulf %237, %218 : vector<2x32xf32>
    %247 = arith.mulf %231, %239 : vector<2x32xf32>
    %248 = arith.addf %246, %247 : vector<2x32xf32>
    %249 = math.tanh %248 : vector<2x32xf32>
    %250 = arith.mulf %245, %249 : vector<2x32xf32>
    %251 = tpu.concatenate %58, %250 in 1 : vector<2x32xf32>, vector<2x32xf32> -> vector<2x64xf32>
    %252 = arith.truncf %251 : vector<2x64xf32> to vector<2x64xbf16>
    %cst_56 = arith.constant dense<0.000000e+00> : vector<2x128xf32>
    %253 = tpu.matmul %252, %67, %cst_56 {dimension_numbers = #tpu.dot_dimension_numbers<[1], [0], [0], [1], [0, 0, 1, 1], [], []>} : vector<2x64xbf16>, vector<64x128xbf16>, vector<2x128xf32> -> vector<2x128xf32>
    %254 = vector.broadcast %68 : vector<1x128xf32> to vector<2x128xf32>
    %255 = arith.addf %253, %254 : vector<2x128xf32>
    %256 = vector.extract_strided_slice %255 {offsets = [0, 0], sizes = [2, 32], strides = [1, 1]} : vector<2x128xf32> to vector<2x32xf32>
    %257 = arith.negf %256 : vector<2x32xf32>
    %258 = math.exp %257 : vector<2x32xf32>
    %cst_57 = arith.constant 1.000000e+00 : f32
    %259 = vector.broadcast %cst_57 : f32 to vector<2x32xf32>
    %260 = arith.addf %259, %258 : vector<2x32xf32>
    %261 = arith.divf %259, %260 : vector<2x32xf32>
    %262 = vector.extract_strided_slice %255 {offsets = [0, 32], sizes = [2, 32], strides = [1, 1]} : vector<2x128xf32> to vector<2x32xf32>
    %263 = arith.negf %262 : vector<2x32xf32>
    %264 = math.exp %263 : vector<2x32xf32>
    %cst_58 = arith.constant 1.000000e+00 : f32
    %265 = vector.broadcast %cst_58 : f32 to vector<2x32xf32>
    %266 = arith.addf %265, %264 : vector<2x32xf32>
    %267 = arith.divf %265, %266 : vector<2x32xf32>
    %268 = vector.extract_strided_slice %255 {offsets = [0, 64], sizes = [2, 32], strides = [1, 1]} : vector<2x128xf32> to vector<2x32xf32>
    %269 = math.tanh %268 : vector<2x32xf32>
    %270 = vector.extract_strided_slice %255 {offsets = [0, 96], sizes = [2, 32], strides = [1, 1]} : vector<2x128xf32> to vector<2x32xf32>
    %271 = arith.negf %270 : vector<2x32xf32>
    %272 = math.exp %271 : vector<2x32xf32>
    %cst_59 = arith.constant 1.000000e+00 : f32
    %273 = vector.broadcast %cst_59 : f32 to vector<2x32xf32>
    %274 = arith.addf %273, %272 : vector<2x32xf32>
    %275 = arith.divf %273, %274 : vector<2x32xf32>
    %276 = arith.mulf %267, %248 : vector<2x32xf32>
    %277 = arith.mulf %261, %269 : vector<2x32xf32>
    %278 = arith.addf %276, %277 : vector<2x32xf32>
    %279 = math.tanh %278 : vector<2x32xf32>
    %280 = arith.mulf %275, %279 : vector<2x32xf32>
    %281 = tpu.concatenate %66, %280 in 1 : vector<2x32xf32>, vector<2x32xf32> -> vector<2x64xf32>
    %282 = arith.truncf %281 : vector<2x64xf32> to vector<2x64xbf16>
    %cst_60 = arith.constant dense<0.000000e+00> : vector<2x128xf32>
    %283 = tpu.matmul %282, %67, %cst_60 {dimension_numbers = #tpu.dot_dimension_numbers<[1], [0], [0], [1], [0, 0, 1, 1], [], []>} : vector<2x64xbf16>, vector<64x128xbf16>, vector<2x128xf32> -> vector<2x128xf32>
    %284 = vector.broadcast %68 : vector<1x128xf32> to vector<2x128xf32>
    %285 = arith.addf %283, %284 : vector<2x128xf32>
    %286 = vector.extract_strided_slice %285 {offsets = [0, 0], sizes = [2, 32], strides = [1, 1]} : vector<2x128xf32> to vector<2x32xf32>
    %287 = arith.negf %286 : vector<2x32xf32>
    %288 = math.exp %287 : vector<2x32xf32>
    %cst_61 = arith.constant 1.000000e+00 : f32
    %289 = vector.broadcast %cst_61 : f32 to vector<2x32xf32>
    %290 = arith.addf %289, %288 : vector<2x32xf32>
    %291 = arith.divf %289, %290 : vector<2x32xf32>
    %292 = vector.extract_strided_slice %285 {offsets = [0, 32], sizes = [2, 32], strides = [1, 1]} : vector<2x128xf32> to vector<2x32xf32>
    %293 = arith.negf %292 : vector<2x32xf32>
    %294 = math.exp %293 : vector<2x32xf32>
    %cst_62 = arith.constant 1.000000e+00 : f32
    %295 = vector.broadcast %cst_62 : f32 to vector<2x32xf32>
    %296 = arith.addf %295, %294 : vector<2x32xf32>
    %297 = arith.divf %295, %296 : vector<2x32xf32>
    %298 = vector.extract_strided_slice %285 {offsets = [0, 64], sizes = [2, 32], strides = [1, 1]} : vector<2x128xf32> to vector<2x32xf32>
    %299 = math.tanh %298 : vector<2x32xf32>
    %300 = vector.extract_strided_slice %285 {offsets = [0, 96], sizes = [2, 32], strides = [1, 1]} : vector<2x128xf32> to vector<2x32xf32>
    %301 = arith.negf %300 : vector<2x32xf32>
    %302 = math.exp %301 : vector<2x32xf32>
    %cst_63 = arith.constant 1.000000e+00 : f32
    %303 = vector.broadcast %cst_63 : f32 to vector<2x32xf32>
    %304 = arith.addf %303, %302 : vector<2x32xf32>
    %305 = arith.divf %303, %304 : vector<2x32xf32>
    %306 = arith.mulf %297, %278 : vector<2x32xf32>
    %307 = arith.mulf %291, %299 : vector<2x32xf32>
    %308 = arith.addf %306, %307 : vector<2x32xf32>
    %309 = math.tanh %308 : vector<2x32xf32>
    %310 = arith.mulf %305, %309 : vector<2x32xf32>
    %c0_64 = arith.constant 0 : index
    %c0_65 = arith.constant 0 : index
    %311 = vector.load %arg4[%c0_64, %c0_65] : memref<64x128xbf16, #tpu.memory_space<vmem>>, vector<64x128xbf16>
    %c0_66 = arith.constant 0 : index
    %c0_67 = arith.constant 0 : index
    %312 = vector.load %arg5[%c0_66, %c0_67] : memref<1x128xf32, #tpu.memory_space<vmem>>, vector<1x128xf32>
    %cst_68 = arith.constant 0.000000e+00 : f32
    %313 = vector.broadcast %cst_68 : f32 to vector<2x32xf32>
    %cst_69 = arith.constant 0.000000e+00 : f32
    %314 = vector.broadcast %cst_69 : f32 to vector<2x32xf32>
    %315 = tpu.concatenate %66, %313 in 1 : vector<2x32xf32>, vector<2x32xf32> -> vector<2x64xf32>
    %316 = arith.truncf %315 : vector<2x64xf32> to vector<2x64xbf16>
    %cst_70 = arith.constant dense<0.000000e+00> : vector<2x128xf32>
    %317 = tpu.matmul %316, %311, %cst_70 {dimension_numbers = #tpu.dot_dimension_numbers<[1], [0], [0], [1], [0, 0, 1, 1], [], []>} : vector<2x64xbf16>, vector<64x128xbf16>, vector<2x128xf32> -> vector<2x128xf32>
    %318 = vector.broadcast %312 : vector<1x128xf32> to vector<2x128xf32>
    %319 = arith.addf %317, %318 : vector<2x128xf32>
    %320 = vector.extract_strided_slice %319 {offsets = [0, 0], sizes = [2, 32], strides = [1, 1]} : vector<2x128xf32> to vector<2x32xf32>
    %321 = arith.negf %320 : vector<2x32xf32>
    %322 = math.exp %321 : vector<2x32xf32>
    %cst_71 = arith.constant 1.000000e+00 : f32
    %323 = vector.broadcast %cst_71 : f32 to vector<2x32xf32>
    %324 = arith.addf %323, %322 : vector<2x32xf32>
    %325 = arith.divf %323, %324 : vector<2x32xf32>
    %326 = vector.extract_strided_slice %319 {offsets = [0, 32], sizes = [2, 32], strides = [1, 1]} : vector<2x128xf32> to vector<2x32xf32>
    %327 = arith.negf %326 : vector<2x32xf32>
    %328 = math.exp %327 : vector<2x32xf32>
    %cst_72 = arith.constant 1.000000e+00 : f32
    %329 = vector.broadcast %cst_72 : f32 to vector<2x32xf32>
    %330 = arith.addf %329, %328 : vector<2x32xf32>
    %331 = arith.divf %329, %330 : vector<2x32xf32>
    %332 = vector.extract_strided_slice %319 {offsets = [0, 64], sizes = [2, 32], strides = [1, 1]} : vector<2x128xf32> to vector<2x32xf32>
    %333 = math.tanh %332 : vector<2x32xf32>
    %334 = vector.extract_strided_slice %319 {offsets = [0, 96], sizes = [2, 32], strides = [1, 1]} : vector<2x128xf32> to vector<2x32xf32>
    %335 = arith.negf %334 : vector<2x32xf32>
    %336 = math.exp %335 : vector<2x32xf32>
    %cst_73 = arith.constant 1.000000e+00 : f32
    %337 = vector.broadcast %cst_73 : f32 to vector<2x32xf32>
    %338 = arith.addf %337, %336 : vector<2x32xf32>
    %339 = arith.divf %337, %338 : vector<2x32xf32>
    %340 = arith.mulf %331, %314 : vector<2x32xf32>
    %341 = arith.mulf %325, %333 : vector<2x32xf32>
    %342 = arith.addf %340, %341 : vector<2x32xf32>
    %343 = math.tanh %342 : vector<2x32xf32>
    %344 = arith.mulf %339, %343 : vector<2x32xf32>
    %345 = tpu.concatenate %58, %344 in 1 : vector<2x32xf32>, vector<2x32xf32> -> vector<2x64xf32>
    %346 = arith.truncf %345 : vector<2x64xf32> to vector<2x64xbf16>
    %cst_74 = arith.constant dense<0.000000e+00> : vector<2x128xf32>
    %347 = tpu.matmul %346, %311, %cst_74 {dimension_numbers = #tpu.dot_dimension_numbers<[1], [0], [0], [1], [0, 0, 1, 1], [], []>} : vector<2x64xbf16>, vector<64x128xbf16>, vector<2x128xf32> -> vector<2x128xf32>
    %348 = vector.broadcast %312 : vector<1x128xf32> to vector<2x128xf32>
    %349 = arith.addf %347, %348 : vector<2x128xf32>
    %350 = vector.extract_strided_slice %349 {offsets = [0, 0], sizes = [2, 32], strides = [1, 1]} : vector<2x128xf32> to vector<2x32xf32>
    %351 = arith.negf %350 : vector<2x32xf32>
    %352 = math.exp %351 : vector<2x32xf32>
    %cst_75 = arith.constant 1.000000e+00 : f32
    %353 = vector.broadcast %cst_75 : f32 to vector<2x32xf32>
    %354 = arith.addf %353, %352 : vector<2x32xf32>
    %355 = arith.divf %353, %354 : vector<2x32xf32>
    %356 = vector.extract_strided_slice %349 {offsets = [0, 32], sizes = [2, 32], strides = [1, 1]} : vector<2x128xf32> to vector<2x32xf32>
    %357 = arith.negf %356 : vector<2x32xf32>
    %358 = math.exp %357 : vector<2x32xf32>
    %cst_76 = arith.constant 1.000000e+00 : f32
    %359 = vector.broadcast %cst_76 : f32 to vector<2x32xf32>
    %360 = arith.addf %359, %358 : vector<2x32xf32>
    %361 = arith.divf %359, %360 : vector<2x32xf32>
    %362 = vector.extract_strided_slice %349 {offsets = [0, 64], sizes = [2, 32], strides = [1, 1]} : vector<2x128xf32> to vector<2x32xf32>
    %363 = math.tanh %362 : vector<2x32xf32>
    %364 = vector.extract_strided_slice %349 {offsets = [0, 96], sizes = [2, 32], strides = [1, 1]} : vector<2x128xf32> to vector<2x32xf32>
    %365 = arith.negf %364 : vector<2x32xf32>
    %366 = math.exp %365 : vector<2x32xf32>
    %cst_77 = arith.constant 1.000000e+00 : f32
    %367 = vector.broadcast %cst_77 : f32 to vector<2x32xf32>
    %368 = arith.addf %367, %366 : vector<2x32xf32>
    %369 = arith.divf %367, %368 : vector<2x32xf32>
    %370 = arith.mulf %361, %342 : vector<2x32xf32>
    %371 = arith.mulf %355, %363 : vector<2x32xf32>
    %372 = arith.addf %370, %371 : vector<2x32xf32>
    %373 = math.tanh %372 : vector<2x32xf32>
    %374 = arith.mulf %369, %373 : vector<2x32xf32>
    %375 = tpu.concatenate %50, %374 in 1 : vector<2x32xf32>, vector<2x32xf32> -> vector<2x64xf32>
    %376 = arith.truncf %375 : vector<2x64xf32> to vector<2x64xbf16>
    %cst_78 = arith.constant dense<0.000000e+00> : vector<2x128xf32>
    %377 = tpu.matmul %376, %311, %cst_78 {dimension_numbers = #tpu.dot_dimension_numbers<[1], [0], [0], [1], [0, 0, 1, 1], [], []>} : vector<2x64xbf16>, vector<64x128xbf16>, vector<2x128xf32> -> vector<2x128xf32>
    %378 = vector.broadcast %312 : vector<1x128xf32> to vector<2x128xf32>
    %379 = arith.addf %377, %378 : vector<2x128xf32>
    %380 = vector.extract_strided_slice %379 {offsets = [0, 0], sizes = [2, 32], strides = [1, 1]} : vector<2x128xf32> to vector<2x32xf32>
    %381 = arith.negf %380 : vector<2x32xf32>
    %382 = math.exp %381 : vector<2x32xf32>
    %cst_79 = arith.constant 1.000000e+00 : f32
    %383 = vector.broadcast %cst_79 : f32 to vector<2x32xf32>
    %384 = arith.addf %383, %382 : vector<2x32xf32>
    %385 = arith.divf %383, %384 : vector<2x32xf32>
    %386 = vector.extract_strided_slice %379 {offsets = [0, 32], sizes = [2, 32], strides = [1, 1]} : vector<2x128xf32> to vector<2x32xf32>
    %387 = arith.negf %386 : vector<2x32xf32>
    %388 = math.exp %387 : vector<2x32xf32>
    %cst_80 = arith.constant 1.000000e+00 : f32
    %389 = vector.broadcast %cst_80 : f32 to vector<2x32xf32>
    %390 = arith.addf %389, %388 : vector<2x32xf32>
    %391 = arith.divf %389, %390 : vector<2x32xf32>
    %392 = vector.extract_strided_slice %379 {offsets = [0, 64], sizes = [2, 32], strides = [1, 1]} : vector<2x128xf32> to vector<2x32xf32>
    %393 = math.tanh %392 : vector<2x32xf32>
    %394 = vector.extract_strided_slice %379 {offsets = [0, 96], sizes = [2, 32], strides = [1, 1]} : vector<2x128xf32> to vector<2x32xf32>
    %395 = arith.negf %394 : vector<2x32xf32>
    %396 = math.exp %395 : vector<2x32xf32>
    %cst_81 = arith.constant 1.000000e+00 : f32
    %397 = vector.broadcast %cst_81 : f32 to vector<2x32xf32>
    %398 = arith.addf %397, %396 : vector<2x32xf32>
    %399 = arith.divf %397, %398 : vector<2x32xf32>
    %400 = arith.mulf %391, %372 : vector<2x32xf32>
    %401 = arith.mulf %385, %393 : vector<2x32xf32>
    %402 = arith.addf %400, %401 : vector<2x32xf32>
    %403 = math.tanh %402 : vector<2x32xf32>
    %404 = arith.mulf %399, %403 : vector<2x32xf32>
    %405 = tpu.concatenate %42, %404 in 1 : vector<2x32xf32>, vector<2x32xf32> -> vector<2x64xf32>
    %406 = arith.truncf %405 : vector<2x64xf32> to vector<2x64xbf16>
    %cst_82 = arith.constant dense<0.000000e+00> : vector<2x128xf32>
    %407 = tpu.matmul %406, %311, %cst_82 {dimension_numbers = #tpu.dot_dimension_numbers<[1], [0], [0], [1], [0, 0, 1, 1], [], []>} : vector<2x64xbf16>, vector<64x128xbf16>, vector<2x128xf32> -> vector<2x128xf32>
    %408 = vector.broadcast %312 : vector<1x128xf32> to vector<2x128xf32>
    %409 = arith.addf %407, %408 : vector<2x128xf32>
    %410 = vector.extract_strided_slice %409 {offsets = [0, 0], sizes = [2, 32], strides = [1, 1]} : vector<2x128xf32> to vector<2x32xf32>
    %411 = arith.negf %410 : vector<2x32xf32>
    %412 = math.exp %411 : vector<2x32xf32>
    %cst_83 = arith.constant 1.000000e+00 : f32
    %413 = vector.broadcast %cst_83 : f32 to vector<2x32xf32>
    %414 = arith.addf %413, %412 : vector<2x32xf32>
    %415 = arith.divf %413, %414 : vector<2x32xf32>
    %416 = vector.extract_strided_slice %409 {offsets = [0, 32], sizes = [2, 32], strides = [1, 1]} : vector<2x128xf32> to vector<2x32xf32>
    %417 = arith.negf %416 : vector<2x32xf32>
    %418 = math.exp %417 : vector<2x32xf32>
    %cst_84 = arith.constant 1.000000e+00 : f32
    %419 = vector.broadcast %cst_84 : f32 to vector<2x32xf32>
    %420 = arith.addf %419, %418 : vector<2x32xf32>
    %421 = arith.divf %419, %420 : vector<2x32xf32>
    %422 = vector.extract_strided_slice %409 {offsets = [0, 64], sizes = [2, 32], strides = [1, 1]} : vector<2x128xf32> to vector<2x32xf32>
    %423 = math.tanh %422 : vector<2x32xf32>
    %424 = vector.extract_strided_slice %409 {offsets = [0, 96], sizes = [2, 32], strides = [1, 1]} : vector<2x128xf32> to vector<2x32xf32>
    %425 = arith.negf %424 : vector<2x32xf32>
    %426 = math.exp %425 : vector<2x32xf32>
    %cst_85 = arith.constant 1.000000e+00 : f32
    %427 = vector.broadcast %cst_85 : f32 to vector<2x32xf32>
    %428 = arith.addf %427, %426 : vector<2x32xf32>
    %429 = arith.divf %427, %428 : vector<2x32xf32>
    %430 = arith.mulf %421, %402 : vector<2x32xf32>
    %431 = arith.mulf %415, %423 : vector<2x32xf32>
    %432 = arith.addf %430, %431 : vector<2x32xf32>
    %433 = math.tanh %432 : vector<2x32xf32>
    %434 = arith.mulf %429, %433 : vector<2x32xf32>
    %435 = tpu.concatenate %34, %434 in 1 : vector<2x32xf32>, vector<2x32xf32> -> vector<2x64xf32>
    %436 = arith.truncf %435 : vector<2x64xf32> to vector<2x64xbf16>
    %cst_86 = arith.constant dense<0.000000e+00> : vector<2x128xf32>
    %437 = tpu.matmul %436, %311, %cst_86 {dimension_numbers = #tpu.dot_dimension_numbers<[1], [0], [0], [1], [0, 0, 1, 1], [], []>} : vector<2x64xbf16>, vector<64x128xbf16>, vector<2x128xf32> -> vector<2x128xf32>
    %438 = vector.broadcast %312 : vector<1x128xf32> to vector<2x128xf32>
    %439 = arith.addf %437, %438 : vector<2x128xf32>
    %440 = vector.extract_strided_slice %439 {offsets = [0, 0], sizes = [2, 32], strides = [1, 1]} : vector<2x128xf32> to vector<2x32xf32>
    %441 = arith.negf %440 : vector<2x32xf32>
    %442 = math.exp %441 : vector<2x32xf32>
    %cst_87 = arith.constant 1.000000e+00 : f32
    %443 = vector.broadcast %cst_87 : f32 to vector<2x32xf32>
    %444 = arith.addf %443, %442 : vector<2x32xf32>
    %445 = arith.divf %443, %444 : vector<2x32xf32>
    %446 = vector.extract_strided_slice %439 {offsets = [0, 32], sizes = [2, 32], strides = [1, 1]} : vector<2x128xf32> to vector<2x32xf32>
    %447 = arith.negf %446 : vector<2x32xf32>
    %448 = math.exp %447 : vector<2x32xf32>
    %cst_88 = arith.constant 1.000000e+00 : f32
    %449 = vector.broadcast %cst_88 : f32 to vector<2x32xf32>
    %450 = arith.addf %449, %448 : vector<2x32xf32>
    %451 = arith.divf %449, %450 : vector<2x32xf32>
    %452 = vector.extract_strided_slice %439 {offsets = [0, 64], sizes = [2, 32], strides = [1, 1]} : vector<2x128xf32> to vector<2x32xf32>
    %453 = math.tanh %452 : vector<2x32xf32>
    %454 = vector.extract_strided_slice %439 {offsets = [0, 96], sizes = [2, 32], strides = [1, 1]} : vector<2x128xf32> to vector<2x32xf32>
    %455 = arith.negf %454 : vector<2x32xf32>
    %456 = math.exp %455 : vector<2x32xf32>
    %cst_89 = arith.constant 1.000000e+00 : f32
    %457 = vector.broadcast %cst_89 : f32 to vector<2x32xf32>
    %458 = arith.addf %457, %456 : vector<2x32xf32>
    %459 = arith.divf %457, %458 : vector<2x32xf32>
    %460 = arith.mulf %451, %432 : vector<2x32xf32>
    %461 = arith.mulf %445, %453 : vector<2x32xf32>
    %462 = arith.addf %460, %461 : vector<2x32xf32>
    %463 = math.tanh %462 : vector<2x32xf32>
    %464 = arith.mulf %459, %463 : vector<2x32xf32>
    %465 = tpu.concatenate %26, %464 in 1 : vector<2x32xf32>, vector<2x32xf32> -> vector<2x64xf32>
    %466 = arith.truncf %465 : vector<2x64xf32> to vector<2x64xbf16>
    %cst_90 = arith.constant dense<0.000000e+00> : vector<2x128xf32>
    %467 = tpu.matmul %466, %311, %cst_90 {dimension_numbers = #tpu.dot_dimension_numbers<[1], [0], [0], [1], [0, 0, 1, 1], [], []>} : vector<2x64xbf16>, vector<64x128xbf16>, vector<2x128xf32> -> vector<2x128xf32>
    %468 = vector.broadcast %312 : vector<1x128xf32> to vector<2x128xf32>
    %469 = arith.addf %467, %468 : vector<2x128xf32>
    %470 = vector.extract_strided_slice %469 {offsets = [0, 0], sizes = [2, 32], strides = [1, 1]} : vector<2x128xf32> to vector<2x32xf32>
    %471 = arith.negf %470 : vector<2x32xf32>
    %472 = math.exp %471 : vector<2x32xf32>
    %cst_91 = arith.constant 1.000000e+00 : f32
    %473 = vector.broadcast %cst_91 : f32 to vector<2x32xf32>
    %474 = arith.addf %473, %472 : vector<2x32xf32>
    %475 = arith.divf %473, %474 : vector<2x32xf32>
    %476 = vector.extract_strided_slice %469 {offsets = [0, 32], sizes = [2, 32], strides = [1, 1]} : vector<2x128xf32> to vector<2x32xf32>
    %477 = arith.negf %476 : vector<2x32xf32>
    %478 = math.exp %477 : vector<2x32xf32>
    %cst_92 = arith.constant 1.000000e+00 : f32
    %479 = vector.broadcast %cst_92 : f32 to vector<2x32xf32>
    %480 = arith.addf %479, %478 : vector<2x32xf32>
    %481 = arith.divf %479, %480 : vector<2x32xf32>
    %482 = vector.extract_strided_slice %469 {offsets = [0, 64], sizes = [2, 32], strides = [1, 1]} : vector<2x128xf32> to vector<2x32xf32>
    %483 = math.tanh %482 : vector<2x32xf32>
    %484 = vector.extract_strided_slice %469 {offsets = [0, 96], sizes = [2, 32], strides = [1, 1]} : vector<2x128xf32> to vector<2x32xf32>
    %485 = arith.negf %484 : vector<2x32xf32>
    %486 = math.exp %485 : vector<2x32xf32>
    %cst_93 = arith.constant 1.000000e+00 : f32
    %487 = vector.broadcast %cst_93 : f32 to vector<2x32xf32>
    %488 = arith.addf %487, %486 : vector<2x32xf32>
    %489 = arith.divf %487, %488 : vector<2x32xf32>
    %490 = arith.mulf %481, %462 : vector<2x32xf32>
    %491 = arith.mulf %475, %483 : vector<2x32xf32>
    %492 = arith.addf %490, %491 : vector<2x32xf32>
    %493 = math.tanh %492 : vector<2x32xf32>
    %494 = arith.mulf %489, %493 : vector<2x32xf32>
    %495 = tpu.concatenate %18, %494 in 1 : vector<2x32xf32>, vector<2x32xf32> -> vector<2x64xf32>
    %496 = arith.truncf %495 : vector<2x64xf32> to vector<2x64xbf16>
    %cst_94 = arith.constant dense<0.000000e+00> : vector<2x128xf32>
    %497 = tpu.matmul %496, %311, %cst_94 {dimension_numbers = #tpu.dot_dimension_numbers<[1], [0], [0], [1], [0, 0, 1, 1], [], []>} : vector<2x64xbf16>, vector<64x128xbf16>, vector<2x128xf32> -> vector<2x128xf32>
    %498 = vector.broadcast %312 : vector<1x128xf32> to vector<2x128xf32>
    %499 = arith.addf %497, %498 : vector<2x128xf32>
    %500 = vector.extract_strided_slice %499 {offsets = [0, 0], sizes = [2, 32], strides = [1, 1]} : vector<2x128xf32> to vector<2x32xf32>
    %501 = arith.negf %500 : vector<2x32xf32>
    %502 = math.exp %501 : vector<2x32xf32>
    %cst_95 = arith.constant 1.000000e+00 : f32
    %503 = vector.broadcast %cst_95 : f32 to vector<2x32xf32>
    %504 = arith.addf %503, %502 : vector<2x32xf32>
    %505 = arith.divf %503, %504 : vector<2x32xf32>
    %506 = vector.extract_strided_slice %499 {offsets = [0, 32], sizes = [2, 32], strides = [1, 1]} : vector<2x128xf32> to vector<2x32xf32>
    %507 = arith.negf %506 : vector<2x32xf32>
    %508 = math.exp %507 : vector<2x32xf32>
    %cst_96 = arith.constant 1.000000e+00 : f32
    %509 = vector.broadcast %cst_96 : f32 to vector<2x32xf32>
    %510 = arith.addf %509, %508 : vector<2x32xf32>
    %511 = arith.divf %509, %510 : vector<2x32xf32>
    %512 = vector.extract_strided_slice %499 {offsets = [0, 64], sizes = [2, 32], strides = [1, 1]} : vector<2x128xf32> to vector<2x32xf32>
    %513 = math.tanh %512 : vector<2x32xf32>
    %514 = vector.extract_strided_slice %499 {offsets = [0, 96], sizes = [2, 32], strides = [1, 1]} : vector<2x128xf32> to vector<2x32xf32>
    %515 = arith.negf %514 : vector<2x32xf32>
    %516 = math.exp %515 : vector<2x32xf32>
    %cst_97 = arith.constant 1.000000e+00 : f32
    %517 = vector.broadcast %cst_97 : f32 to vector<2x32xf32>
    %518 = arith.addf %517, %516 : vector<2x32xf32>
    %519 = arith.divf %517, %518 : vector<2x32xf32>
    %520 = arith.mulf %511, %492 : vector<2x32xf32>
    %521 = arith.mulf %505, %513 : vector<2x32xf32>
    %522 = arith.addf %520, %521 : vector<2x32xf32>
    %523 = math.tanh %522 : vector<2x32xf32>
    %524 = arith.mulf %519, %523 : vector<2x32xf32>
    %525 = tpu.concatenate %10, %524 in 1 : vector<2x32xf32>, vector<2x32xf32> -> vector<2x64xf32>
    %526 = arith.truncf %525 : vector<2x64xf32> to vector<2x64xbf16>
    %cst_98 = arith.constant dense<0.000000e+00> : vector<2x128xf32>
    %527 = tpu.matmul %526, %311, %cst_98 {dimension_numbers = #tpu.dot_dimension_numbers<[1], [0], [0], [1], [0, 0, 1, 1], [], []>} : vector<2x64xbf16>, vector<64x128xbf16>, vector<2x128xf32> -> vector<2x128xf32>
    %528 = vector.broadcast %312 : vector<1x128xf32> to vector<2x128xf32>
    %529 = arith.addf %527, %528 : vector<2x128xf32>
    %530 = vector.extract_strided_slice %529 {offsets = [0, 0], sizes = [2, 32], strides = [1, 1]} : vector<2x128xf32> to vector<2x32xf32>
    %531 = arith.negf %530 : vector<2x32xf32>
    %532 = math.exp %531 : vector<2x32xf32>
    %cst_99 = arith.constant 1.000000e+00 : f32
    %533 = vector.broadcast %cst_99 : f32 to vector<2x32xf32>
    %534 = arith.addf %533, %532 : vector<2x32xf32>
    %535 = arith.divf %533, %534 : vector<2x32xf32>
    %536 = vector.extract_strided_slice %529 {offsets = [0, 32], sizes = [2, 32], strides = [1, 1]} : vector<2x128xf32> to vector<2x32xf32>
    %537 = arith.negf %536 : vector<2x32xf32>
    %538 = math.exp %537 : vector<2x32xf32>
    %cst_100 = arith.constant 1.000000e+00 : f32
    %539 = vector.broadcast %cst_100 : f32 to vector<2x32xf32>
    %540 = arith.addf %539, %538 : vector<2x32xf32>
    %541 = arith.divf %539, %540 : vector<2x32xf32>
    %542 = vector.extract_strided_slice %529 {offsets = [0, 64], sizes = [2, 32], strides = [1, 1]} : vector<2x128xf32> to vector<2x32xf32>
    %543 = math.tanh %542 : vector<2x32xf32>
    %544 = vector.extract_strided_slice %529 {offsets = [0, 96], sizes = [2, 32], strides = [1, 1]} : vector<2x128xf32> to vector<2x32xf32>
    %545 = arith.negf %544 : vector<2x32xf32>
    %546 = math.exp %545 : vector<2x32xf32>
    %cst_101 = arith.constant 1.000000e+00 : f32
    %547 = vector.broadcast %cst_101 : f32 to vector<2x32xf32>
    %548 = arith.addf %547, %546 : vector<2x32xf32>
    %549 = arith.divf %547, %548 : vector<2x32xf32>
    %550 = arith.mulf %541, %522 : vector<2x32xf32>
    %551 = arith.mulf %535, %543 : vector<2x32xf32>
    %552 = arith.addf %550, %551 : vector<2x32xf32>
    %553 = math.tanh %552 : vector<2x32xf32>
    %554 = arith.mulf %549, %553 : vector<2x32xf32>
    %555 = tpu.concatenate %100, %554 in 1 : vector<2x32xf32>, vector<2x32xf32> -> vector<2x64xf32>
    %556 = tpu.concatenate %130, %524 in 1 : vector<2x32xf32>, vector<2x32xf32> -> vector<2x64xf32>
    %557 = tpu.concatenate %160, %494 in 1 : vector<2x32xf32>, vector<2x32xf32> -> vector<2x64xf32>
    %558 = tpu.concatenate %190, %464 in 1 : vector<2x32xf32>, vector<2x32xf32> -> vector<2x64xf32>
    %559 = tpu.concatenate %220, %434 in 1 : vector<2x32xf32>, vector<2x32xf32> -> vector<2x64xf32>
    %560 = tpu.concatenate %250, %404 in 1 : vector<2x32xf32>, vector<2x32xf32> -> vector<2x64xf32>
    %561 = tpu.concatenate %280, %374 in 1 : vector<2x32xf32>, vector<2x32xf32> -> vector<2x64xf32>
    %562 = tpu.concatenate %310, %344 in 1 : vector<2x32xf32>, vector<2x32xf32> -> vector<2x64xf32>
    %c0_102 = arith.constant 0 : index
    %c0_103 = arith.constant 0 : index
    %563 = vector.load %arg6[%c0_102, %c0_103] : memref<96x128xbf16, #tpu.memory_space<vmem>>, vector<96x128xbf16>
    %c0_104 = arith.constant 0 : index
    %c0_105 = arith.constant 0 : index
    %564 = vector.load %arg7[%c0_104, %c0_105] : memref<1x128xf32, #tpu.memory_space<vmem>>, vector<1x128xf32>
    %cst_106 = arith.constant 0.000000e+00 : f32
    %565 = vector.broadcast %cst_106 : f32 to vector<2x32xf32>
    %cst_107 = arith.constant 0.000000e+00 : f32
    %566 = vector.broadcast %cst_107 : f32 to vector<2x32xf32>
    %567 = tpu.concatenate %555, %565 in 1 : vector<2x64xf32>, vector<2x32xf32> -> vector<2x96xf32>
    %568 = arith.truncf %567 : vector<2x96xf32> to vector<2x96xbf16>
    %cst_108 = arith.constant dense<0.000000e+00> : vector<2x128xf32>
    %569 = tpu.matmul %568, %563, %cst_108 {dimension_numbers = #tpu.dot_dimension_numbers<[1], [0], [0], [1], [0, 0, 1, 1], [], []>} : vector<2x96xbf16>, vector<96x128xbf16>, vector<2x128xf32> -> vector<2x128xf32>
    %570 = vector.broadcast %564 : vector<1x128xf32> to vector<2x128xf32>
    %571 = arith.addf %569, %570 : vector<2x128xf32>
    %572 = vector.extract_strided_slice %571 {offsets = [0, 0], sizes = [2, 32], strides = [1, 1]} : vector<2x128xf32> to vector<2x32xf32>
    %573 = arith.negf %572 : vector<2x32xf32>
    %574 = math.exp %573 : vector<2x32xf32>
    %cst_109 = arith.constant 1.000000e+00 : f32
    %575 = vector.broadcast %cst_109 : f32 to vector<2x32xf32>
    %576 = arith.addf %575, %574 : vector<2x32xf32>
    %577 = arith.divf %575, %576 : vector<2x32xf32>
    %578 = vector.extract_strided_slice %571 {offsets = [0, 32], sizes = [2, 32], strides = [1, 1]} : vector<2x128xf32> to vector<2x32xf32>
    %579 = arith.negf %578 : vector<2x32xf32>
    %580 = math.exp %579 : vector<2x32xf32>
    %cst_110 = arith.constant 1.000000e+00 : f32
    %581 = vector.broadcast %cst_110 : f32 to vector<2x32xf32>
    %582 = arith.addf %581, %580 : vector<2x32xf32>
    %583 = arith.divf %581, %582 : vector<2x32xf32>
    %584 = vector.extract_strided_slice %571 {offsets = [0, 64], sizes = [2, 32], strides = [1, 1]} : vector<2x128xf32> to vector<2x32xf32>
    %585 = math.tanh %584 : vector<2x32xf32>
    %586 = vector.extract_strided_slice %571 {offsets = [0, 96], sizes = [2, 32], strides = [1, 1]} : vector<2x128xf32> to vector<2x32xf32>
    %587 = arith.negf %586 : vector<2x32xf32>
    %588 = math.exp %587 : vector<2x32xf32>
    %cst_111 = arith.constant 1.000000e+00 : f32
    %589 = vector.broadcast %cst_111 : f32 to vector<2x32xf32>
    %590 = arith.addf %589, %588 : vector<2x32xf32>
    %591 = arith.divf %589, %590 : vector<2x32xf32>
    %592 = arith.mulf %583, %566 : vector<2x32xf32>
    %593 = arith.mulf %577, %585 : vector<2x32xf32>
    %594 = arith.addf %592, %593 : vector<2x32xf32>
    %595 = math.tanh %594 : vector<2x32xf32>
    %596 = arith.mulf %591, %595 : vector<2x32xf32>
    %597 = tpu.concatenate %556, %596 in 1 : vector<2x64xf32>, vector<2x32xf32> -> vector<2x96xf32>
    %598 = arith.truncf %597 : vector<2x96xf32> to vector<2x96xbf16>
    %cst_112 = arith.constant dense<0.000000e+00> : vector<2x128xf32>
    %599 = tpu.matmul %598, %563, %cst_112 {dimension_numbers = #tpu.dot_dimension_numbers<[1], [0], [0], [1], [0, 0, 1, 1], [], []>} : vector<2x96xbf16>, vector<96x128xbf16>, vector<2x128xf32> -> vector<2x128xf32>
    %600 = vector.broadcast %564 : vector<1x128xf32> to vector<2x128xf32>
    %601 = arith.addf %599, %600 : vector<2x128xf32>
    %602 = vector.extract_strided_slice %601 {offsets = [0, 0], sizes = [2, 32], strides = [1, 1]} : vector<2x128xf32> to vector<2x32xf32>
    %603 = arith.negf %602 : vector<2x32xf32>
    %604 = math.exp %603 : vector<2x32xf32>
    %cst_113 = arith.constant 1.000000e+00 : f32
    %605 = vector.broadcast %cst_113 : f32 to vector<2x32xf32>
    %606 = arith.addf %605, %604 : vector<2x32xf32>
    %607 = arith.divf %605, %606 : vector<2x32xf32>
    %608 = vector.extract_strided_slice %601 {offsets = [0, 32], sizes = [2, 32], strides = [1, 1]} : vector<2x128xf32> to vector<2x32xf32>
    %609 = arith.negf %608 : vector<2x32xf32>
    %610 = math.exp %609 : vector<2x32xf32>
    %cst_114 = arith.constant 1.000000e+00 : f32
    %611 = vector.broadcast %cst_114 : f32 to vector<2x32xf32>
    %612 = arith.addf %611, %610 : vector<2x32xf32>
    %613 = arith.divf %611, %612 : vector<2x32xf32>
    %614 = vector.extract_strided_slice %601 {offsets = [0, 64], sizes = [2, 32], strides = [1, 1]} : vector<2x128xf32> to vector<2x32xf32>
    %615 = math.tanh %614 : vector<2x32xf32>
    %616 = vector.extract_strided_slice %601 {offsets = [0, 96], sizes = [2, 32], strides = [1, 1]} : vector<2x128xf32> to vector<2x32xf32>
    %617 = arith.negf %616 : vector<2x32xf32>
    %618 = math.exp %617 : vector<2x32xf32>
    %cst_115 = arith.constant 1.000000e+00 : f32
    %619 = vector.broadcast %cst_115 : f32 to vector<2x32xf32>
    %620 = arith.addf %619, %618 : vector<2x32xf32>
    %621 = arith.divf %619, %620 : vector<2x32xf32>
    %622 = arith.mulf %613, %594 : vector<2x32xf32>
    %623 = arith.mulf %607, %615 : vector<2x32xf32>
    %624 = arith.addf %622, %623 : vector<2x32xf32>
    %625 = math.tanh %624 : vector<2x32xf32>
    %626 = arith.mulf %621, %625 : vector<2x32xf32>
    %627 = tpu.concatenate %557, %626 in 1 : vector<2x64xf32>, vector<2x32xf32> -> vector<2x96xf32>
    %628 = arith.truncf %627 : vector<2x96xf32> to vector<2x96xbf16>
    %cst_116 = arith.constant dense<0.000000e+00> : vector<2x128xf32>
    %629 = tpu.matmul %628, %563, %cst_116 {dimension_numbers = #tpu.dot_dimension_numbers<[1], [0], [0], [1], [0, 0, 1, 1], [], []>} : vector<2x96xbf16>, vector<96x128xbf16>, vector<2x128xf32> -> vector<2x128xf32>
    %630 = vector.broadcast %564 : vector<1x128xf32> to vector<2x128xf32>
    %631 = arith.addf %629, %630 : vector<2x128xf32>
    %632 = vector.extract_strided_slice %631 {offsets = [0, 0], sizes = [2, 32], strides = [1, 1]} : vector<2x128xf32> to vector<2x32xf32>
    %633 = arith.negf %632 : vector<2x32xf32>
    %634 = math.exp %633 : vector<2x32xf32>
    %cst_117 = arith.constant 1.000000e+00 : f32
    %635 = vector.broadcast %cst_117 : f32 to vector<2x32xf32>
    %636 = arith.addf %635, %634 : vector<2x32xf32>
    %637 = arith.divf %635, %636 : vector<2x32xf32>
    %638 = vector.extract_strided_slice %631 {offsets = [0, 32], sizes = [2, 32], strides = [1, 1]} : vector<2x128xf32> to vector<2x32xf32>
    %639 = arith.negf %638 : vector<2x32xf32>
    %640 = math.exp %639 : vector<2x32xf32>
    %cst_118 = arith.constant 1.000000e+00 : f32
    %641 = vector.broadcast %cst_118 : f32 to vector<2x32xf32>
    %642 = arith.addf %641, %640 : vector<2x32xf32>
    %643 = arith.divf %641, %642 : vector<2x32xf32>
    %644 = vector.extract_strided_slice %631 {offsets = [0, 64], sizes = [2, 32], strides = [1, 1]} : vector<2x128xf32> to vector<2x32xf32>
    %645 = math.tanh %644 : vector<2x32xf32>
    %646 = vector.extract_strided_slice %631 {offsets = [0, 96], sizes = [2, 32], strides = [1, 1]} : vector<2x128xf32> to vector<2x32xf32>
    %647 = arith.negf %646 : vector<2x32xf32>
    %648 = math.exp %647 : vector<2x32xf32>
    %cst_119 = arith.constant 1.000000e+00 : f32
    %649 = vector.broadcast %cst_119 : f32 to vector<2x32xf32>
    %650 = arith.addf %649, %648 : vector<2x32xf32>
    %651 = arith.divf %649, %650 : vector<2x32xf32>
    %652 = arith.mulf %643, %624 : vector<2x32xf32>
    %653 = arith.mulf %637, %645 : vector<2x32xf32>
    %654 = arith.addf %652, %653 : vector<2x32xf32>
    %655 = math.tanh %654 : vector<2x32xf32>
    %656 = arith.mulf %651, %655 : vector<2x32xf32>
    %657 = tpu.concatenate %558, %656 in 1 : vector<2x64xf32>, vector<2x32xf32> -> vector<2x96xf32>
    %658 = arith.truncf %657 : vector<2x96xf32> to vector<2x96xbf16>
    %cst_120 = arith.constant dense<0.000000e+00> : vector<2x128xf32>
    %659 = tpu.matmul %658, %563, %cst_120 {dimension_numbers = #tpu.dot_dimension_numbers<[1], [0], [0], [1], [0, 0, 1, 1], [], []>} : vector<2x96xbf16>, vector<96x128xbf16>, vector<2x128xf32> -> vector<2x128xf32>
    %660 = vector.broadcast %564 : vector<1x128xf32> to vector<2x128xf32>
    %661 = arith.addf %659, %660 : vector<2x128xf32>
    %662 = vector.extract_strided_slice %661 {offsets = [0, 0], sizes = [2, 32], strides = [1, 1]} : vector<2x128xf32> to vector<2x32xf32>
    %663 = arith.negf %662 : vector<2x32xf32>
    %664 = math.exp %663 : vector<2x32xf32>
    %cst_121 = arith.constant 1.000000e+00 : f32
    %665 = vector.broadcast %cst_121 : f32 to vector<2x32xf32>
    %666 = arith.addf %665, %664 : vector<2x32xf32>
    %667 = arith.divf %665, %666 : vector<2x32xf32>
    %668 = vector.extract_strided_slice %661 {offsets = [0, 32], sizes = [2, 32], strides = [1, 1]} : vector<2x128xf32> to vector<2x32xf32>
    %669 = arith.negf %668 : vector<2x32xf32>
    %670 = math.exp %669 : vector<2x32xf32>
    %cst_122 = arith.constant 1.000000e+00 : f32
    %671 = vector.broadcast %cst_122 : f32 to vector<2x32xf32>
    %672 = arith.addf %671, %670 : vector<2x32xf32>
    %673 = arith.divf %671, %672 : vector<2x32xf32>
    %674 = vector.extract_strided_slice %661 {offsets = [0, 64], sizes = [2, 32], strides = [1, 1]} : vector<2x128xf32> to vector<2x32xf32>
    %675 = math.tanh %674 : vector<2x32xf32>
    %676 = vector.extract_strided_slice %661 {offsets = [0, 96], sizes = [2, 32], strides = [1, 1]} : vector<2x128xf32> to vector<2x32xf32>
    %677 = arith.negf %676 : vector<2x32xf32>
    %678 = math.exp %677 : vector<2x32xf32>
    %cst_123 = arith.constant 1.000000e+00 : f32
    %679 = vector.broadcast %cst_123 : f32 to vector<2x32xf32>
    %680 = arith.addf %679, %678 : vector<2x32xf32>
    %681 = arith.divf %679, %680 : vector<2x32xf32>
    %682 = arith.mulf %673, %654 : vector<2x32xf32>
    %683 = arith.mulf %667, %675 : vector<2x32xf32>
    %684 = arith.addf %682, %683 : vector<2x32xf32>
    %685 = math.tanh %684 : vector<2x32xf32>
    %686 = arith.mulf %681, %685 : vector<2x32xf32>
    %687 = tpu.concatenate %559, %686 in 1 : vector<2x64xf32>, vector<2x32xf32> -> vector<2x96xf32>
    %688 = arith.truncf %687 : vector<2x96xf32> to vector<2x96xbf16>
    %cst_124 = arith.constant dense<0.000000e+00> : vector<2x128xf32>
    %689 = tpu.matmul %688, %563, %cst_124 {dimension_numbers = #tpu.dot_dimension_numbers<[1], [0], [0], [1], [0, 0, 1, 1], [], []>} : vector<2x96xbf16>, vector<96x128xbf16>, vector<2x128xf32> -> vector<2x128xf32>
    %690 = vector.broadcast %564 : vector<1x128xf32> to vector<2x128xf32>
    %691 = arith.addf %689, %690 : vector<2x128xf32>
    %692 = vector.extract_strided_slice %691 {offsets = [0, 0], sizes = [2, 32], strides = [1, 1]} : vector<2x128xf32> to vector<2x32xf32>
    %693 = arith.negf %692 : vector<2x32xf32>
    %694 = math.exp %693 : vector<2x32xf32>
    %cst_125 = arith.constant 1.000000e+00 : f32
    %695 = vector.broadcast %cst_125 : f32 to vector<2x32xf32>
    %696 = arith.addf %695, %694 : vector<2x32xf32>
    %697 = arith.divf %695, %696 : vector<2x32xf32>
    %698 = vector.extract_strided_slice %691 {offsets = [0, 32], sizes = [2, 32], strides = [1, 1]} : vector<2x128xf32> to vector<2x32xf32>
    %699 = arith.negf %698 : vector<2x32xf32>
    %700 = math.exp %699 : vector<2x32xf32>
    %cst_126 = arith.constant 1.000000e+00 : f32
    %701 = vector.broadcast %cst_126 : f32 to vector<2x32xf32>
    %702 = arith.addf %701, %700 : vector<2x32xf32>
    %703 = arith.divf %701, %702 : vector<2x32xf32>
    %704 = vector.extract_strided_slice %691 {offsets = [0, 64], sizes = [2, 32], strides = [1, 1]} : vector<2x128xf32> to vector<2x32xf32>
    %705 = math.tanh %704 : vector<2x32xf32>
    %706 = vector.extract_strided_slice %691 {offsets = [0, 96], sizes = [2, 32], strides = [1, 1]} : vector<2x128xf32> to vector<2x32xf32>
    %707 = arith.negf %706 : vector<2x32xf32>
    %708 = math.exp %707 : vector<2x32xf32>
    %cst_127 = arith.constant 1.000000e+00 : f32
    %709 = vector.broadcast %cst_127 : f32 to vector<2x32xf32>
    %710 = arith.addf %709, %708 : vector<2x32xf32>
    %711 = arith.divf %709, %710 : vector<2x32xf32>
    %712 = arith.mulf %703, %684 : vector<2x32xf32>
    %713 = arith.mulf %697, %705 : vector<2x32xf32>
    %714 = arith.addf %712, %713 : vector<2x32xf32>
    %715 = math.tanh %714 : vector<2x32xf32>
    %716 = arith.mulf %711, %715 : vector<2x32xf32>
    %717 = tpu.concatenate %560, %716 in 1 : vector<2x64xf32>, vector<2x32xf32> -> vector<2x96xf32>
    %718 = arith.truncf %717 : vector<2x96xf32> to vector<2x96xbf16>
    %cst_128 = arith.constant dense<0.000000e+00> : vector<2x128xf32>
    %719 = tpu.matmul %718, %563, %cst_128 {dimension_numbers = #tpu.dot_dimension_numbers<[1], [0], [0], [1], [0, 0, 1, 1], [], []>} : vector<2x96xbf16>, vector<96x128xbf16>, vector<2x128xf32> -> vector<2x128xf32>
    %720 = vector.broadcast %564 : vector<1x128xf32> to vector<2x128xf32>
    %721 = arith.addf %719, %720 : vector<2x128xf32>
    %722 = vector.extract_strided_slice %721 {offsets = [0, 0], sizes = [2, 32], strides = [1, 1]} : vector<2x128xf32> to vector<2x32xf32>
    %723 = arith.negf %722 : vector<2x32xf32>
    %724 = math.exp %723 : vector<2x32xf32>
    %cst_129 = arith.constant 1.000000e+00 : f32
    %725 = vector.broadcast %cst_129 : f32 to vector<2x32xf32>
    %726 = arith.addf %725, %724 : vector<2x32xf32>
    %727 = arith.divf %725, %726 : vector<2x32xf32>
    %728 = vector.extract_strided_slice %721 {offsets = [0, 32], sizes = [2, 32], strides = [1, 1]} : vector<2x128xf32> to vector<2x32xf32>
    %729 = arith.negf %728 : vector<2x32xf32>
    %730 = math.exp %729 : vector<2x32xf32>
    %cst_130 = arith.constant 1.000000e+00 : f32
    %731 = vector.broadcast %cst_130 : f32 to vector<2x32xf32>
    %732 = arith.addf %731, %730 : vector<2x32xf32>
    %733 = arith.divf %731, %732 : vector<2x32xf32>
    %734 = vector.extract_strided_slice %721 {offsets = [0, 64], sizes = [2, 32], strides = [1, 1]} : vector<2x128xf32> to vector<2x32xf32>
    %735 = math.tanh %734 : vector<2x32xf32>
    %736 = vector.extract_strided_slice %721 {offsets = [0, 96], sizes = [2, 32], strides = [1, 1]} : vector<2x128xf32> to vector<2x32xf32>
    %737 = arith.negf %736 : vector<2x32xf32>
    %738 = math.exp %737 : vector<2x32xf32>
    %cst_131 = arith.constant 1.000000e+00 : f32
    %739 = vector.broadcast %cst_131 : f32 to vector<2x32xf32>
    %740 = arith.addf %739, %738 : vector<2x32xf32>
    %741 = arith.divf %739, %740 : vector<2x32xf32>
    %742 = arith.mulf %733, %714 : vector<2x32xf32>
    %743 = arith.mulf %727, %735 : vector<2x32xf32>
    %744 = arith.addf %742, %743 : vector<2x32xf32>
    %745 = math.tanh %744 : vector<2x32xf32>
    %746 = arith.mulf %741, %745 : vector<2x32xf32>
    %747 = tpu.concatenate %561, %746 in 1 : vector<2x64xf32>, vector<2x32xf32> -> vector<2x96xf32>
    %748 = arith.truncf %747 : vector<2x96xf32> to vector<2x96xbf16>
    %cst_132 = arith.constant dense<0.000000e+00> : vector<2x128xf32>
    %749 = tpu.matmul %748, %563, %cst_132 {dimension_numbers = #tpu.dot_dimension_numbers<[1], [0], [0], [1], [0, 0, 1, 1], [], []>} : vector<2x96xbf16>, vector<96x128xbf16>, vector<2x128xf32> -> vector<2x128xf32>
    %750 = vector.broadcast %564 : vector<1x128xf32> to vector<2x128xf32>
    %751 = arith.addf %749, %750 : vector<2x128xf32>
    %752 = vector.extract_strided_slice %751 {offsets = [0, 0], sizes = [2, 32], strides = [1, 1]} : vector<2x128xf32> to vector<2x32xf32>
    %753 = arith.negf %752 : vector<2x32xf32>
    %754 = math.exp %753 : vector<2x32xf32>
    %cst_133 = arith.constant 1.000000e+00 : f32
    %755 = vector.broadcast %cst_133 : f32 to vector<2x32xf32>
    %756 = arith.addf %755, %754 : vector<2x32xf32>
    %757 = arith.divf %755, %756 : vector<2x32xf32>
    %758 = vector.extract_strided_slice %751 {offsets = [0, 32], sizes = [2, 32], strides = [1, 1]} : vector<2x128xf32> to vector<2x32xf32>
    %759 = arith.negf %758 : vector<2x32xf32>
    %760 = math.exp %759 : vector<2x32xf32>
    %cst_134 = arith.constant 1.000000e+00 : f32
    %761 = vector.broadcast %cst_134 : f32 to vector<2x32xf32>
    %762 = arith.addf %761, %760 : vector<2x32xf32>
    %763 = arith.divf %761, %762 : vector<2x32xf32>
    %764 = vector.extract_strided_slice %751 {offsets = [0, 64], sizes = [2, 32], strides = [1, 1]} : vector<2x128xf32> to vector<2x32xf32>
    %765 = math.tanh %764 : vector<2x32xf32>
    %766 = vector.extract_strided_slice %751 {offsets = [0, 96], sizes = [2, 32], strides = [1, 1]} : vector<2x128xf32> to vector<2x32xf32>
    %767 = arith.negf %766 : vector<2x32xf32>
    %768 = math.exp %767 : vector<2x32xf32>
    %cst_135 = arith.constant 1.000000e+00 : f32
    %769 = vector.broadcast %cst_135 : f32 to vector<2x32xf32>
    %770 = arith.addf %769, %768 : vector<2x32xf32>
    %771 = arith.divf %769, %770 : vector<2x32xf32>
    %772 = arith.mulf %763, %744 : vector<2x32xf32>
    %773 = arith.mulf %757, %765 : vector<2x32xf32>
    %774 = arith.addf %772, %773 : vector<2x32xf32>
    %775 = math.tanh %774 : vector<2x32xf32>
    %776 = arith.mulf %771, %775 : vector<2x32xf32>
    %777 = tpu.concatenate %562, %776 in 1 : vector<2x64xf32>, vector<2x32xf32> -> vector<2x96xf32>
    %778 = arith.truncf %777 : vector<2x96xf32> to vector<2x96xbf16>
    %cst_136 = arith.constant dense<0.000000e+00> : vector<2x128xf32>
    %779 = tpu.matmul %778, %563, %cst_136 {dimension_numbers = #tpu.dot_dimension_numbers<[1], [0], [0], [1], [0, 0, 1, 1], [], []>} : vector<2x96xbf16>, vector<96x128xbf16>, vector<2x128xf32> -> vector<2x128xf32>
    %780 = vector.broadcast %564 : vector<1x128xf32> to vector<2x128xf32>
    %781 = arith.addf %779, %780 : vector<2x128xf32>
    %782 = vector.extract_strided_slice %781 {offsets = [0, 0], sizes = [2, 32], strides = [1, 1]} : vector<2x128xf32> to vector<2x32xf32>
    %783 = arith.negf %782 : vector<2x32xf32>
    %784 = math.exp %783 : vector<2x32xf32>
    %cst_137 = arith.constant 1.000000e+00 : f32
    %785 = vector.broadcast %cst_137 : f32 to vector<2x32xf32>
    %786 = arith.addf %785, %784 : vector<2x32xf32>
    %787 = arith.divf %785, %786 : vector<2x32xf32>
    %788 = vector.extract_strided_slice %781 {offsets = [0, 32], sizes = [2, 32], strides = [1, 1]} : vector<2x128xf32> to vector<2x32xf32>
    %789 = arith.negf %788 : vector<2x32xf32>
    %790 = math.exp %789 : vector<2x32xf32>
    %cst_138 = arith.constant 1.000000e+00 : f32
    %791 = vector.broadcast %cst_138 : f32 to vector<2x32xf32>
    %792 = arith.addf %791, %790 : vector<2x32xf32>
    %793 = arith.divf %791, %792 : vector<2x32xf32>
    %794 = vector.extract_strided_slice %781 {offsets = [0, 64], sizes = [2, 32], strides = [1, 1]} : vector<2x128xf32> to vector<2x32xf32>
    %795 = math.tanh %794 : vector<2x32xf32>
    %796 = vector.extract_strided_slice %781 {offsets = [0, 96], sizes = [2, 32], strides = [1, 1]} : vector<2x128xf32> to vector<2x32xf32>
    %797 = arith.negf %796 : vector<2x32xf32>
    %798 = math.exp %797 : vector<2x32xf32>
    %cst_139 = arith.constant 1.000000e+00 : f32
    %799 = vector.broadcast %cst_139 : f32 to vector<2x32xf32>
    %800 = arith.addf %799, %798 : vector<2x32xf32>
    %801 = arith.divf %799, %800 : vector<2x32xf32>
    %802 = arith.mulf %793, %774 : vector<2x32xf32>
    %803 = arith.mulf %787, %795 : vector<2x32xf32>
    %804 = arith.addf %802, %803 : vector<2x32xf32>
    %805 = math.tanh %804 : vector<2x32xf32>
    %806 = arith.mulf %801, %805 : vector<2x32xf32>
    %c0_140 = arith.constant 0 : index
    %c0_141 = arith.constant 0 : index
    %807 = vector.load %arg8[%c0_140, %c0_141] : memref<96x128xbf16, #tpu.memory_space<vmem>>, vector<96x128xbf16>
    %c0_142 = arith.constant 0 : index
    %c0_143 = arith.constant 0 : index
    %808 = vector.load %arg9[%c0_142, %c0_143] : memref<1x128xf32, #tpu.memory_space<vmem>>, vector<1x128xf32>
    %cst_144 = arith.constant 0.000000e+00 : f32
    %809 = vector.broadcast %cst_144 : f32 to vector<2x32xf32>
    %cst_145 = arith.constant 0.000000e+00 : f32
    %810 = vector.broadcast %cst_145 : f32 to vector<2x32xf32>
    %811 = tpu.concatenate %562, %809 in 1 : vector<2x64xf32>, vector<2x32xf32> -> vector<2x96xf32>
    %812 = arith.truncf %811 : vector<2x96xf32> to vector<2x96xbf16>
    %cst_146 = arith.constant dense<0.000000e+00> : vector<2x128xf32>
    %813 = tpu.matmul %812, %807, %cst_146 {dimension_numbers = #tpu.dot_dimension_numbers<[1], [0], [0], [1], [0, 0, 1, 1], [], []>} : vector<2x96xbf16>, vector<96x128xbf16>, vector<2x128xf32> -> vector<2x128xf32>
    %814 = vector.broadcast %808 : vector<1x128xf32> to vector<2x128xf32>
    %815 = arith.addf %813, %814 : vector<2x128xf32>
    %816 = vector.extract_strided_slice %815 {offsets = [0, 0], sizes = [2, 32], strides = [1, 1]} : vector<2x128xf32> to vector<2x32xf32>
    %817 = arith.negf %816 : vector<2x32xf32>
    %818 = math.exp %817 : vector<2x32xf32>
    %cst_147 = arith.constant 1.000000e+00 : f32
    %819 = vector.broadcast %cst_147 : f32 to vector<2x32xf32>
    %820 = arith.addf %819, %818 : vector<2x32xf32>
    %821 = arith.divf %819, %820 : vector<2x32xf32>
    %822 = vector.extract_strided_slice %815 {offsets = [0, 32], sizes = [2, 32], strides = [1, 1]} : vector<2x128xf32> to vector<2x32xf32>
    %823 = arith.negf %822 : vector<2x32xf32>
    %824 = math.exp %823 : vector<2x32xf32>
    %cst_148 = arith.constant 1.000000e+00 : f32
    %825 = vector.broadcast %cst_148 : f32 to vector<2x32xf32>
    %826 = arith.addf %825, %824 : vector<2x32xf32>
    %827 = arith.divf %825, %826 : vector<2x32xf32>
    %828 = vector.extract_strided_slice %815 {offsets = [0, 64], sizes = [2, 32], strides = [1, 1]} : vector<2x128xf32> to vector<2x32xf32>
    %829 = math.tanh %828 : vector<2x32xf32>
    %830 = vector.extract_strided_slice %815 {offsets = [0, 96], sizes = [2, 32], strides = [1, 1]} : vector<2x128xf32> to vector<2x32xf32>
    %831 = arith.negf %830 : vector<2x32xf32>
    %832 = math.exp %831 : vector<2x32xf32>
    %cst_149 = arith.constant 1.000000e+00 : f32
    %833 = vector.broadcast %cst_149 : f32 to vector<2x32xf32>
    %834 = arith.addf %833, %832 : vector<2x32xf32>
    %835 = arith.divf %833, %834 : vector<2x32xf32>
    %836 = arith.mulf %827, %810 : vector<2x32xf32>
    %837 = arith.mulf %821, %829 : vector<2x32xf32>
    %838 = arith.addf %836, %837 : vector<2x32xf32>
    %839 = math.tanh %838 : vector<2x32xf32>
    %840 = arith.mulf %835, %839 : vector<2x32xf32>
    %841 = tpu.concatenate %806, %840 in 1 : vector<2x32xf32>, vector<2x32xf32> -> vector<2x64xf32>
    %c0_150 = arith.constant 0 : index
    %c0_151 = arith.constant 0 : index
    %842 = vector.load %arg10[%c0_150, %c0_151] : memref<2x64xf32, #tpu.memory_space<vmem>>, vector<2x64xf32>
    tpu.vector_store %arg10[%c0_150, %c0_151], %841 {strides = array<i32>} : memref<2x64xf32, #tpu.memory_space<vmem>>, vector<2x64xf32>,
    return
  }
}

</mosaic_0001>

<llo_original>
// kernel: word_lstm_forward.1
$region0: #{word_lstm_forward.1}
  #allocation0 [shape = 'u32[]', space=smem, size = 0x4, offset = 0x4, fixed_abs, tag = 'smem constant byte address 0x4 - core index']
  #allocation1 [shape = 'u32[72,128]{1,0:T(1,128)}', space=vmem, size = 0x9000, scoped, tag = 'internal scratch']
  %s0 = inlined_call_operand.vmem [shape: s32[2,8], index: 0, kind: input, shape index: {}]
  %s1 = inlined_call_operand.vmem [shape: bf16[50,32], index: 1, kind: input, shape index: {}]
  %s2 = inlined_call_operand.hbm [shape: bf16[64,128], index: 2, kind: input, shape index: {}]
  %s3 = inlined_call_operand.vmem [shape: f32[1,128], index: 3, kind: input, shape index: {}]
  %s4 = inlined_call_operand.hbm [shape: bf16[64,128], index: 4, kind: input, shape index: {}]
  %s5 = inlined_call_operand.hbm [shape: f32[1,128], index: 5, kind: input, shape index: {}]
  %s6 = inlined_call_operand.vmem [shape: bf16[96,128], index: 6, kind: input, shape index: {}]
  %s7 = inlined_call_operand.hbm [shape: f32[1,128], index: 7, kind: input, shape index: {}]
  %s8 = inlined_call_operand.hbm [shape: bf16[96,128], index: 8, kind: input, shape index: {}]
  %s9 = inlined_call_operand.hbm [shape: f32[1,128], index: 9, kind: input, shape index: {}]
  %s10 = inlined_call_operand.hbm [shape: f32[2,64], index: 10, kind: output, shape index: {}]
  %s11 = sld [smem:[#allocation0]]
  $region74: #{word_lstm_forward.1} parent=0
    _
  %s13 = ssub.s32 1, %s11
  %s14 = scalar_select 0, %s13, %s11
  $region1: #{word_lstm_forward.1} parent=0
    #allocation2 [shape = 'u8[16384]{0}', space=vmem, size = 0x4000, scoped, tag = 'input window, operand 2, single buffered']
    #allocation3 [shape = 's32[1]{0}', space=sflag, size = 0x4, scoped, tag = 'scoped memory for word_lstm_forward.1']
    #allocation4 [shape = 's32[1]{0}', space=sflag, size = 0x4, scoped, tag = 'scoped memory for word_lstm_forward.1']
    #allocation5 [shape = 'u8[16384]{0}', space=vmem, size = 0x4000, scoped, tag = 'input window, operand 4, single buffered']
    #allocation6 [shape = 's32[1]{0}', space=sflag, size = 0x4, scoped, tag = 'scoped memory for word_lstm_forward.1']
    #allocation7 [shape = 'u8[512]{0}', space=vmem, size = 0x400, scoped, tag = 'input window, operand 5, single buffered']
    #allocation8 [shape = 'u8[512]{0}', space=vmem, size = 0x400, scoped, tag = 'input window, operand 7, single buffered']
    #allocation9 [shape = 's32[1]{0}', space=sflag, size = 0x4, scoped, tag = 'scoped memory for word_lstm_forward.1']
    #allocation10 [shape = 'u8[24576]{0}', space=vmem, size = 0x6000, scoped, tag = 'input window, operand 8, single buffered']
    #allocation11 [shape = 'u8[512]{0}', space=vmem, size = 0x400, scoped, tag = 'input window, operand 9, single buffered']
    #allocation12 [shape = 's32[1]{0}', space=sflag, size = 0x4, scoped, tag = 'scoped memory for word_lstm_forward.1']
    #allocation13 [shape = 'u8[1024]{0}', space=vmem, size = 0x400, scoped, tag = 'output window, operand 0, single buffered']
    %15 = vsyncpa [#allocation3], 0
    %16 = vsyncpa [#allocation6], 0
    %17 = vsyncpa [#allocation9], 0
    %18 = vsyncpa [#allocation12], 0
    %19 = vsyncpa [#allocation4], 0
    // Predicated region
    $region2: #{word_lstm_forward.1} parent=1 // pred_check
      _
    $region3: #{word_lstm_forward.1} parent=1 // pred_check_branch
      %21 = sbr.rel (0) target = $region5
    $region4: #{word_lstm_forward.1} parent=1 // pred_region
      _
    $region5: #{word_lstm_forward.1} parent=1 // pred_fallthru
      _
    // Predicated region
    $region6: #{word_lstm_forward.1} parent=1 // pred_check
      _
    $region7: #{word_lstm_forward.1} parent=1 // pred_check_branch
      %23 = sbr.rel (0) target = $region9
    $region8: #{word_lstm_forward.1} parent=1 // pred_region
      _
    $region9: #{word_lstm_forward.1} parent=1 // pred_fallthru
      _
    // Predicated region
    $region10: #{word_lstm_forward.1} parent=1 // pred_check
      _
    $region11: #{word_lstm_forward.1} parent=1 // pred_check_branch
      %25 = sbr.rel (0) target = $region13
    $region12: #{word_lstm_forward.1} parent=1 // pred_region
      %27 = vsyncadd [#allocation3], 0
      %s28 = sshll.u32 %s2, 4
      %s29 = int_to_ptr.hbm [resolvable:$true] %s28
      %s30 = sshll.u32 [#allocation2], 4
      %s31 = int_to_ptr.vmem [resolvable:$true] %s30
      %36 = dma.hbm_to_vmem [thread:$0]  %s29, 512, %s31, [#allocation3], 64, 64, 4
    $region13: #{word_lstm_forward.1} parent=1 // pred_fallthru
      _
    // Predicated region
    $region14: #{word_lstm_forward.1} parent=1 // pred_check
      _
    $region15: #{word_lstm_forward.1} parent=1 // pred_check_branch
      %38 = sbr.rel (0) target = $region17
    $region16: #{word_lstm_forward.1} parent=1 // pred_region
      _
    $region17: #{word_lstm_forward.1} parent=1 // pred_fallthru
      _
    // Predicated region
    $region18: #{word_lstm_forward.1} parent=1 // pred_check
      _
    $region19: #{word_lstm_forward.1} parent=1 // pred_check_branch
      %40 = sbr.rel (0) target = $region21
    $region20: #{word_lstm_forward.1} parent=1 // pred_region
      %42 = vsyncadd [#allocation6], 0
      %s43 = sshll.u32 %s4, 4
      %s44 = int_to_ptr.hbm [resolvable:$true] %s43
      %s45 = sshll.u32 [#allocation5], 4
      %s46 = int_to_ptr.vmem [resolvable:$true] %s45
      %51 = dma.hbm_to_vmem [thread:$0]  %s44, 512, %s46, [#allocation6], 64, 64, 4
    $region21: #{word_lstm_forward.1} parent=1 // pred_fallthru
      _
    // Predicated region
    $region22: #{word_lstm_forward.1} parent=1 // pred_check
      _
    $region23: #{word_lstm_forward.1} parent=1 // pred_check_branch
      %53 = sbr.rel (0) target = $region25
    $region24: #{word_lstm_forward.1} parent=1 // pred_region
      %55 = vsyncadd [#allocation6], 0
      %s57 = sshll.u32 %s5, 4
      %s58 = int_to_ptr.hbm [resolvable:$true] %s57
      %s59 = sshll.u32 [#allocation7], 4
      %s60 = int_to_ptr.vmem [resolvable:$true] %s59
      %62 = dma.hbm_to_vmem [thread:$0]  %s58, 16, %s60, [#allocation6]
    $region25: #{word_lstm_forward.1} parent=1 // pred_fallthru
      _
    // Predicated region
    $region26: #{word_lstm_forward.1} parent=1 // pred_check
      _
    $region27: #{word_lstm_forward.1} parent=1 // pred_check_branch
      %64 = sbr.rel (0) target = $region29
    $region28: #{word_lstm_forward.1} parent=1 // pred_region
      _
    $region29: #{word_lstm_forward.1} parent=1 // pred_fallthru
      _
    // Predicated region
    $region30: #{word_lstm_forward.1} parent=1 // pred_check
      _
    $region31: #{word_lstm_forward.1} parent=1 // pred_check_branch
      %66 = sbr.rel (0) target = $region33
    $region32: #{word_lstm_forward.1} parent=1 // pred_region
      %68 = vsyncadd [#allocation9], 0
      %s70 = sshll.u32 %s7, 4
      %s71 = int_to_ptr.hbm [resolvable:$true] %s70
      %s72 = sshll.u32 [#allocation8], 4
      %s73 = int_to_ptr.vmem [resolvable:$true] %s72
      %75 = dma.hbm_to_vmem [thread:$0]  %s71, 16, %s73, [#allocation9]
    $region33: #{word_lstm_forward.1} parent=1 // pred_fallthru
      _
    // Predicated region
    $region34: #{word_lstm_forward.1} parent=1 // pred_check
      _
    $region35: #{word_lstm_forward.1} parent=1 // pred_check_branch
      %77 = sbr.rel (0) target = $region37
    $region36: #{word_lstm_forward.1} parent=1 // pred_region
      %79 = vsyncadd [#allocation9], 0
      %s80 = sshll.u32 %s8, 4
      %s81 = int_to_ptr.hbm [resolvable:$true] %s80
      %s82 = sshll.u32 [#allocation10], 4
      %s83 = int_to_ptr.vmem [resolvable:$true] %s82
      %88 = dma.hbm_to_vmem [thread:$0]  %s81, 768, %s83, [#allocation9], 64, 64, 4
    $region37: #{word_lstm_forward.1} parent=1 // pred_fallthru
      _
    // Predicated region
    $region38: #{word_lstm_forward.1} parent=1 // pred_check
      _
    $region39: #{word_lstm_forward.1} parent=1 // pred_check_branch
      %90 = sbr.rel (0) target = $region41
    $region40: #{word_lstm_forward.1} parent=1 // pred_region
      %92 = vsyncadd [#allocation12], 0
      %s94 = sshll.u32 %s9, 4
      %s95 = int_to_ptr.hbm [resolvable:$true] %s94
      %s96 = sshll.u32 [#allocation11], 4
      %s97 = int_to_ptr.vmem [resolvable:$true] %s96
      %99 = dma.hbm_to_vmem [thread:$0]  %s95, 16, %s97, [#allocation12]
    $region41: #{word_lstm_forward.1} parent=1 // pred_fallthru
      _
    // Predicated region
    $region42: #{word_lstm_forward.1} parent=1 // pred_check
      _
    $region43: #{word_lstm_forward.1} parent=1 // pred_check_branch
      %101 = sbr.rel (0) target = $region45
    $region44: #{word_lstm_forward.1} parent=1 // pred_region
      %103 = dma.done [#allocation3], 512
    $region45: #{word_lstm_forward.1} parent=1 // pred_fallthru
      _
    // Predicated region
    $region46: #{word_lstm_forward.1} parent=1 // pred_check
      _
    $region47: #{word_lstm_forward.1} parent=1 // pred_check_branch
      %105 = sbr.rel (0) target = $region49
    $region48: #{word_lstm_forward.1} parent=1 // pred_region
      %107 = dma.done [#allocation6], 512
    $region49: #{word_lstm_forward.1} parent=1 // pred_fallthru
      _
    // Predicated region
    $region50: #{word_lstm_forward.1} parent=1 // pred_check
      _
    $region51: #{word_lstm_forward.1} parent=1 // pred_check_branch
      %109 = sbr.rel (0) target = $region53
    $region52: #{word_lstm_forward.1} parent=1 // pred_region
      %111 = dma.done [#allocation6], 16
    $region53: #{word_lstm_forward.1} parent=1 // pred_fallthru
      _
    // Predicated region
    $region54: #{word_lstm_forward.1} parent=1 // pred_check
      _
    $region55: #{word_lstm_forward.1} parent=1 // pred_check_branch
      %113 = sbr.rel (0) target = $region57
    $region56: #{word_lstm_forward.1} parent=1 // pred_region
      %115 = dma.done [#allocation9], 16
    $region57: #{word_lstm_forward.1} parent=1 // pred_fallthru
      _
    // Predicated region
    $region58: #{word_lstm_forward.1} parent=1 // pred_check
      _
    $region59: #{word_lstm_forward.1} parent=1 // pred_check_branch
      %117 = sbr.rel (0) target = $region61
    $region60: #{word_lstm_forward.1} parent=1 // pred_region
      %119 = dma.done [#allocation9], 768
    $region61: #{word_lstm_forward.1} parent=1 // pred_fallthru
      _
    // Predicated region
    $region62: #{word_lstm_forward.1} parent=1 // pred_check
      _
    $region63: #{word_lstm_forward.1} parent=1 // pred_check_branch
      %121 = sbr.rel (0) target = $region65
    $region64: #{word_lstm_forward.1} parent=1 // pred_region
      %123 = dma.done [#allocation12], 16
    $region65: #{word_lstm_forward.1} parent=1 // pred_fallthru
      _
    %v125 = vld [vmem:[%s0] sm:$0x3]
    %v126 = vld [vmem:[%s1] sm:$0xf]
    %v127 = vld [vmem:[%s1 + $0x4] sm:$0xf]
    %v128 = vld [vmem:[%s1 + $0x8] sm:$0xf]
    %v129 = vld [vmem:[%s1 + $0xc] sm:$0xf]
    %v130 = vld [vmem:[%s1 + $0x10] sm:$0xf]
    %v131 = vld [vmem:[%s1 + $0x14] sm:$0xf]
    %v132 = vld [vmem:[%s1 + $0x18] sm:$0x1]
    %v133 = vlaneseq
    %v134 = vand.u32 %v133, 127
    %135 = vset.pattern.permute.xlu0 0
    %136 = vperm.xlu0 %135, %v125
    %v137 = vpop.permute.xlu0 %136
    %vm138 = vcmp.eq.s32.totalorder %v134, %v137
    %v139 = vsel %vm138, 1.0, 0.0
    %v140 = vpack.c.bf16 %v139, %v139
    %v148 = vunpack.c.l.b16 %v126
    %v149 = vunpack.c.l.b16 %v127
    %v150 = vunpack.c.l.b16 %v128
    %v151 = vunpack.c.l.b16 %v129
    %v152 = vunpack.c.l.b16 %v130
    %v153 = vunpack.c.l.b16 %v131
    %v154 = vunpack.c.l.b16 %v132
    %v155 = vpack.c.b16 %v149, %v148
    %v156 = vpack.c.b16 %v151, %v150
    %v157 = vpack.c.b16 %v153, %v152
    %v158 = vpack.c.b16 %v154, %v154
    %vm162 = vcmask 408576
    %v164 = vsel %vm162, %v140, 0
    %vm166 = vcmask 1040384
    %v168 = vsel %vm166, %v158, 0
    %170 = vmatpush.bf16.msra.mxu0 0
    %171 = vmatpush.bf16.msra.mxu0 0
    %172 = vmatpush.bf16.msra.mxu0 0
    %173 = vmatpush.bf16.msra.mxu0 0
    %174 = vmatpush.bf16.msra.mxu0 %v168
    %175 = vmatpush.bf16.msra.mxu0 %v157
    %176 = vmatpush.bf16.msra.mxu0 %v156
    %177 = vmatpush.bf16.msra.mxu0 %v155
    %178 = vmatmul.bf16.gmra.mxu0 %v164
    %v179 = vpop.f32.mrf.mxu0
    %v180 = vadd.f32 0.0, %v179
    %v181 = vpop.f32.mrf.mxu0
    %182 = vdwg.mxu0
    %183 = vset.pattern.permute.xlu0 1
    %184 = vperm.xlu0 %183, %v125
    %v185 = vpop.permute.xlu0 %184
    %vm186 = vcmp.eq.s32.totalorder %v134, %v185
    %v187 = vsel %vm186, 1.0, 0.0
    %v188 = vpack.c.bf16 %v187, %v187
    %v190 = vsel %vm162, %v188, 0
    %192 = vmatpush.bf16.msra.mxu0 0
    %193 = vmatpush.bf16.msra.mxu0 0
    %194 = vmatpush.bf16.msra.mxu0 0
    %195 = vmatpush.bf16.msra.mxu0 0
    %196 = vmatpush.bf16.msra.mxu0 %v168
    %197 = vmatpush.bf16.msra.mxu0 %v157
    %198 = vmatpush.bf16.msra.mxu0 %v156
    %199 = vmatpush.bf16.msra.mxu0 %v155
    %200 = vmatmul.bf16.gmra.mxu0 %v190
    %v201 = vpop.f32.mrf.mxu0
    %v202 = vadd.f32 0.0, %v201
    %v203 = vpop.f32.mrf.mxu0
    %204 = vdwg.mxu0
    %205 = vset.pattern.permute.xlu0 2
    %206 = vperm.xlu0 %205, %v125
    %v207 = vpop.permute.xlu0 %206
    %vm208 = vcmp.eq.s32.totalorder %v134, %v207
    %v209 = vsel %vm208, 1.0, 0.0
    %v210 = vpack.c.bf16 %v209, %v209
    %v212 = vsel %vm162, %v210, 0
    %214 = vmatpush.bf16.msra.mxu0 0
    %215 = vmatpush.bf16.msra.mxu0 0
    %216 = vmatpush.bf16.msra.mxu0 0
    %217 = vmatpush.bf16.msra.mxu0 0
    %218 = vmatpush.bf16.msra.mxu0 %v168
    %219 = vmatpush.bf16.msra.mxu0 %v157
    %220 = vmatpush.bf16.msra.mxu0 %v156
    %221 = vmatpush.bf16.msra.mxu0 %v155
    %222 = vmatmul.bf16.gmra.mxu0 %v212
    %v223 = vpop.f32.mrf.mxu0
    %v224 = vadd.f32 0.0, %v223
    %v225 = vpop.f32.mrf.mxu0
    %226 = vdwg.mxu0
    %227 = vset.pattern.permute.xlu0 3
    %228 = vperm.xlu0 %227, %v125
    %v229 = vpop.permute.xlu0 %228
    %vm230 = vcmp.eq.s32.totalorder %v134, %v229
    %v231 = vsel %vm230, 1.0, 0.0
    %v232 = vpack.c.bf16 %v231, %v231
    %v234 = vsel %vm162, %v232, 0
    %236 = vmatpush.bf16.msra.mxu0 0
    %237 = vmatpush.bf16.msra.mxu0 0
    %238 = vmatpush.bf16.msra.mxu0 0
    %239 = vmatpush.bf16.msra.mxu0 0
    %240 = vmatpush.bf16.msra.mxu0 %v168
    %241 = vmatpush.bf16.msra.mxu0 %v157
    %242 = vmatpush.bf16.msra.mxu0 %v156
    %243 = vmatpush.bf16.msra.mxu0 %v155
    %244 = vmatmul.bf16.gmra.mxu0 %v234
    %v245 = vpop.f32.mrf.mxu0
    %v246 = vadd.f32 0.0, %v245
    %v247 = vpop.f32.mrf.mxu0
    %248 = vdwg.mxu0
    %249 = vset.pattern.permute.xlu0 4
    %250 = vperm.xlu0 %249, %v125
    %v251 = vpop.permute.xlu0 %250
    %vm252 = vcmp.eq.s32.totalorder %v134, %v251
    %v253 = vsel %vm252, 1.0, 0.0
    %v254 = vpack.c.bf16 %v253, %v253
    %v256 = vsel %vm162, %v254, 0
    %258 = vmatpush.bf16.msra.mxu0 0
    %259 = vmatpush.bf16.msra.mxu0 0
    %260 = vmatpush.bf16.msra.mxu0 0
    %261 = vmatpush.bf16.msra.mxu0 0
    %262 = vmatpush.bf16.msra.mxu0 %v168
    %263 = vmatpush.bf16.msra.mxu0 %v157
    %264 = vmatpush.bf16.msra.mxu0 %v156
    %265 = vmatpush.bf16.msra.mxu0 %v155
    %266 = vmatmul.bf16.gmra.mxu0 %v256
    %v267 = vpop.f32.mrf.mxu0
    %v268 = vadd.f32 0.0, %v267
    %v269 = vpop.f32.mrf.mxu0
    %270 = vdwg.mxu0
    %271 = vset.pattern.permute.xlu0 5
    %272 = vperm.xlu0 %271, %v125
    %v273 = vpop.permute.xlu0 %272
    %vm274 = vcmp.eq.s32.totalorder %v134, %v273
    %v275 = vsel %vm274, 1.0, 0.0
    %v276 = vpack.c.bf16 %v275, %v275
    %v278 = vsel %vm162, %v276, 0
    %280 = vmatpush.bf16.msra.mxu0 0
    %281 = vmatpush.bf16.msra.mxu0 0
    %282 = vmatpush.bf16.msra.mxu0 0
    %283 = vmatpush.bf16.msra.mxu0 0
    %284 = vmatpush.bf16.msra.mxu0 %v168
    %285 = vmatpush.bf16.msra.mxu0 %v157
    %286 = vmatpush.bf16.msra.mxu0 %v156
    %287 = vmatpush.bf16.msra.mxu0 %v155
    %288 = vmatmul.bf16.gmra.mxu0 %v278
    %v289 = vpop.f32.mrf.mxu0
    %v290 = vadd.f32 0.0, %v289
    %v291 = vpop.f32.mrf.mxu0
    %292 = vdwg.mxu0
    %293 = vset.pattern.permute.xlu0 6
    %294 = vperm.xlu0 %293, %v125
    %v295 = vpop.permute.xlu0 %294
    %vm296 = vcmp.eq.s32.totalorder %v134, %v295
    %v297 = vsel %vm296, 1.0, 0.0
    %v298 = vpack.c.bf16 %v297, %v297
    %v300 = vsel %vm162, %v298, 0
    %302 = vmatpush.bf16.msra.mxu0 0
    %303 = vmatpush.bf16.msra.mxu0 0
    %304 = vmatpush.bf16.msra.mxu0 0
    %305 = vmatpush.bf16.msra.mxu0 0
    %306 = vmatpush.bf16.msra.mxu0 %v168
    %307 = vmatpush.bf16.msra.mxu0 %v157
    %308 = vmatpush.bf16.msra.mxu0 %v156
    %309 = vmatpush.bf16.msra.mxu0 %v155
    %310 = vmatmul.bf16.gmra.mxu0 %v300
    %v311 = vpop.f32.mrf.mxu0
    %v312 = vadd.f32 0.0, %v311
    %v313 = vpop.f32.mrf.mxu0
    %314 = vdwg.mxu0
    %315 = vset.pattern.permute.xlu0 7
    %316 = vperm.xlu0 %315, %v125
    %v317 = vpop.permute.xlu0 %316
    %vm318 = vcmp.eq.s32.totalorder %v134, %v317
    %v319 = vsel %vm318, 1.0, 0.0
    %v320 = vpack.c.bf16 %v319, %v319
    %v322 = vsel %vm162, %v320, 0
    %324 = vmatpush.bf16.msra.mxu0 0
    %325 = vmatpush.bf16.msra.mxu0 0
    %326 = vmatpush.bf16.msra.mxu0 0
    %327 = vmatpush.bf16.msra.mxu0 0
    %328 = vmatpush.bf16.msra.mxu0 %v168
    %329 = vmatpush.bf16.msra.mxu0 %v157
    %330 = vmatpush.bf16.msra.mxu0 %v156
    %331 = vmatpush.bf16.msra.mxu0 %v155
    %332 = vmatmul.bf16.gmra.mxu0 %v322
    %v333 = vpop.f32.mrf.mxu0
    %v334 = vadd.f32 0.0, %v333
    %v335 = vpop.f32.mrf.mxu0
    %336 = vdwg.mxu0
    %v337 = vld [vmem:[#allocation2] sm:$0xf]
    %v338 = vld [vmem:[#allocation2 + $0x4] sm:$0xf]
    %v339 = vld [vmem:[#allocation2 + $0x8] sm:$0xf]
    %v340 = vld [vmem:[#allocation2 + $0xc] sm:$0xf]
    %v341 = vld [vmem:[#allocation2 + $0x10] sm:$0xf]
    %v342 = vld [vmem:[#allocation2 + $0x14] sm:$0xf]
    %v343 = vld [vmem:[#allocation2 + $0x18] sm:$0xf]
    %v344 = vld [vmem:[#allocation2 + $0x1c] sm:$0xf]
    %v345 = vld [vmem:[%s3] sm:$0x1]
    %vm346 = vcmask 261120
    %v347 = vsel %vm346, %v180, 0.0
    %v348 = vpack.c.bf16 %v347, %v347
    %v350 = vperm.slane %v345, 0
    %v360 = vunpack.c.l.b16 %v337
    %v361 = vunpack.c.l.b16 %v338
    %v362 = vunpack.c.l.b16 %v339
    %v363 = vunpack.c.l.b16 %v340
    %v364 = vunpack.c.l.b16 %v341
    %v365 = vunpack.c.l.b16 %v342
    %v366 = vunpack.c.l.b16 %v343
    %v367 = vunpack.c.l.b16 %v344
    %v368 = vpack.c.b16 %v361, %v360
    %v369 = vpack.c.b16 %v363, %v362
    %v370 = vpack.c.b16 %v365, %v364
    %v371 = vpack.c.b16 %v367, %v366
    %vm376 = vcmask 523264
    %v378 = vsel %vm376, %v348, 0
    %380 = vmatpush.bf16.msra.mxu0 0
    %381 = vmatpush.bf16.msra.mxu0 0
    %382 = vmatpush.bf16.msra.mxu0 0
    %383 = vmatpush.bf16.msra.mxu0 0
    %384 = vmatpush.bf16.msra.mxu0 %v371
    %385 = vmatpush.bf16.msra.mxu0 %v370
    %386 = vmatpush.bf16.msra.mxu0 %v369
    %387 = vmatpush.bf16.msra.mxu0 %v368
    %388 = vmatmul.bf16.gmra.mxu0 %v378
    %v389 = vpop.f32.mrf.mxu0
    %v390 = vadd.f32 %v350, %v389
    %v391 = vpop.f32.mrf.mxu0
    %392 = vdwg.mxu0
    %v393 = vxor.u32 %v390, 2147483648
    %v394 = vmul.f32 %v393, 1.442695
    %v395 = vpow.pop %v394
    %v396 = vadd.f32 %v395, 1.0
    %v397 = vrcp.pop %v396
    %v398 = vmul.f32 %v396, %v397
    %v399 = vsub.f32 1.0, %v398
    %v400 = vmul.f32 %v397, %v399
    %v401 = vadd.f32 %v397, %v400
    %vm402 = vweird.f32 %v396
    %vm403 = vweird.f32 %v397
    %vm404 = vmor %vm402, %vm403
    %v405 = vsel %vm404, %v397, %v401
    %v406 = vand.u32 2147483647, %v396
    %vm407 = vcmp.eq.f32.partialorder %v406, 8.507059e+37
    %v408 = vand.u32 %v396, 2147483648
    %v409 = vor.u32 1.1754944e-38, %v408
    %v410 = vsel %vm407, %v409, %v405
    %v411 = vmul.f32 1.0, %v410
    %v412 = vtanh.pop %v390
    %v413 = vmul.f32 %v411, 0.0
    %415 = vrot.lane.b32.xlu0 %v412, 64
    %v416 = vpop.permute.xlu0 %415
    %v418 = vmul.f32 %v411, %v416
    %420 = vrot.lane.b32.xlu0 %v418, 32
    %v421 = vpop.permute.xlu0 %420
    %v423 = vadd.f32 %v413, %v421
    %v424 = vtanh.pop %v423
    %426 = vrot.lane.b32.xlu0 %v424, 64
    %v427 = vpop.permute.xlu0 %426
    %v429 = vmul.f32 %v411, %v427
    %431 = vrot.lane.b32.xlu0 %v429, 64
    %v432 = vpop.permute.xlu0 %431
    %v434 = vsel %vm346, %v202, %v432
    %v435 = vpack.c.bf16 %v434, %v434
    %v437 = vsel %vm376, %v435, 0
    %439 = vmatpush.bf16.msra.mxu0 0
    %440 = vmatpush.bf16.msra.mxu0 0
    %441 = vmatpush.bf16.msra.mxu0 0
    %442 = vmatpush.bf16.msra.mxu0 0
    %443 = vmatpush.bf16.msra.mxu0 %v371
    %444 = vmatpush.bf16.msra.mxu0 %v370
    %445 = vmatpush.bf16.msra.mxu0 %v369
    %446 = vmatpush.bf16.msra.mxu0 %v368
    %447 = vmatmul.bf16.gmra.mxu0 %v437
    %v448 = vpop.f32.mrf.mxu0
    %v449 = vadd.f32 %v350, %v448
    %v450 = vpop.f32.mrf.mxu0
    %451 = vdwg.mxu0
    %v452 = vxor.u32 %v449, 2147483648
    %v453 = vmul.f32 %v452, 1.442695
    %v454 = vpow.pop %v453
    %v455 = vadd.f32 %v454, 1.0
    %v456 = vrcp.pop %v455
    %v457 = vmul.f32 %v455, %v456
    %v458 = vsub.f32 1.0, %v457
    %v459 = vmul.f32 %v456, %v458
    %v460 = vadd.f32 %v456, %v459
    %vm461 = vweird.f32 %v455
    %vm462 = vweird.f32 %v456
    %vm463 = vmor %vm461, %vm462
    %v464 = vsel %vm463, %v456, %v460
    %v465 = vand.u32 2147483647, %v455
    %vm466 = vcmp.eq.f32.partialorder %v465, 8.507059e+37
    %v467 = vand.u32 %v455, 2147483648
    %v468 = vor.u32 1.1754944e-38, %v467
    %v469 = vsel %vm466, %v468, %v464
    %v470 = vmul.f32 1.0, %v469
    %v471 = vtanh.pop %v449
    %v472 = vmul.f32 %v470, %v423
    %474 = vrot.lane.b32.xlu0 %v471, 64
    %v475 = vpop.permute.xlu0 %474
    %v477 = vmul.f32 %v470, %v475
    %479 = vrot.lane.b32.xlu0 %v477, 32
    %v480 = vpop.permute.xlu0 %479
    %v482 = vadd.f32 %v472, %v480
    %v483 = vtanh.pop %v482
    %485 = vrot.lane.b32.xlu0 %v483, 64
    %v486 = vpop.permute.xlu0 %485
    %v488 = vmul.f32 %v470, %v486
    %490 = vrot.lane.b32.xlu0 %v488, 64
    %v491 = vpop.permute.xlu0 %490
    %v493 = vsel %vm346, %v224, %v491
    %v494 = vpack.c.bf16 %v493, %v493
    %v496 = vsel %vm376, %v494, 0
    %498 = vmatpush.bf16.msra.mxu0 0
    %499 = vmatpush.bf16.msra.mxu0 0
    %500 = vmatpush.bf16.msra.mxu0 0
    %501 = vmatpush.bf16.msra.mxu0 0
    %502 = vmatpush.bf16.msra.mxu0 %v371
    %503 = vmatpush.bf16.msra.mxu0 %v370
    %504 = vmatpush.bf16.msra.mxu0 %v369
    %505 = vmatpush.bf16.msra.mxu0 %v368
    %506 = vmatmul.bf16.gmra.mxu0 %v496
    %v507 = vpop.f32.mrf.mxu0
    %v508 = vadd.f32 %v350, %v507
    %v509 = vpop.f32.mrf.mxu0
    %510 = vdwg.mxu0
    %v511 = vxor.u32 %v508, 2147483648
    %v512 = vmul.f32 %v511, 1.442695
    %v513 = vpow.pop %v512
    %v514 = vadd.f32 %v513, 1.0
    %v515 = vrcp.pop %v514
    %v516 = vmul.f32 %v514, %v515
    %v517 = vsub.f32 1.0, %v516
    %v518 = vmul.f32 %v515, %v517
    %v519 = vadd.f32 %v515, %v518
    %vm520 = vweird.f32 %v514
    %vm521 = vweird.f32 %v515
    %vm522 = vmor %vm520, %vm521
    %v523 = vsel %vm522, %v515, %v519
    %v524 = vand.u32 2147483647, %v514
    %vm525 = vcmp.eq.f32.partialorder %v524, 8.507059e+37
    %v526 = vand.u32 %v514, 2147483648
    %v527 = vor.u32 1.1754944e-38, %v526
    %v528 = vsel %vm525, %v527, %v523
    %v529 = vmul.f32 1.0, %v528
    %v530 = vtanh.pop %v508
    %v531 = vmul.f32 %v529, %v482
    %533 = vrot.lane.b32.xlu0 %v530, 64
    %v534 = vpop.permute.xlu0 %533
    %v536 = vmul.f32 %v529, %v534
    %538 = vrot.lane.b32.xlu0 %v536, 32
    %v539 = vpop.permute.xlu0 %538
    %v541 = vadd.f32 %v531, %v539
    %v542 = vtanh.pop %v541
    %544 = vrot.lane.b32.xlu0 %v542, 64
    %v545 = vpop.permute.xlu0 %544
    %v547 = vmul.f32 %v529, %v545
    %549 = vrot.lane.b32.xlu0 %v547, 64
    %v550 = vpop.permute.xlu0 %549
    %v552 = vsel %vm346, %v246, %v550
    %v553 = vpack.c.bf16 %v552, %v552
    %v555 = vsel %vm376, %v553, 0
    %557 = vmatpush.bf16.msra.mxu0 0
    %558 = vmatpush.bf16.msra.mxu0 0
    %559 = vmatpush.bf16.msra.mxu0 0
    %560 = vmatpush.bf16.msra.mxu0 0
    %561 = vmatpush.bf16.msra.mxu0 %v371
    %562 = vmatpush.bf16.msra.mxu0 %v370
    %563 = vmatpush.bf16.msra.mxu0 %v369
    %564 = vmatpush.bf16.msra.mxu0 %v368
    %565 = vmatmul.bf16.gmra.mxu0 %v555
    %v566 = vpop.f32.mrf.mxu0
    %v567 = vadd.f32 %v350, %v566
    %v568 = vpop.f32.mrf.mxu0
    %569 = vdwg.mxu0
    %v570 = vxor.u32 %v567, 2147483648
    %v571 = vmul.f32 %v570, 1.442695
    %v572 = vpow.pop %v571
    %v573 = vadd.f32 %v572, 1.0
    %v574 = vrcp.pop %v573
    %v575 = vmul.f32 %v573, %v574
    %v576 = vsub.f32 1.0, %v575
    %v577 = vmul.f32 %v574, %v576
    %v578 = vadd.f32 %v574, %v577
    %vm579 = vweird.f32 %v573
    %vm580 = vweird.f32 %v574
    %vm581 = vmor %vm579, %vm580
    %v582 = vsel %vm581, %v574, %v578
    %v583 = vand.u32 2147483647, %v573
    %vm584 = vcmp.eq.f32.partialorder %v583, 8.507059e+37
    %v585 = vand.u32 %v573, 2147483648
    %v586 = vor.u32 1.1754944e-38, %v585
    %v587 = vsel %vm584, %v586, %v582
    %v588 = vmul.f32 1.0, %v587
    %v589 = vtanh.pop %v567
    %v590 = vmul.f32 %v588, %v541
    %592 = vrot.lane.b32.xlu0 %v589, 64
    %v593 = vpop.permute.xlu0 %592
    %v595 = vmul.f32 %v588, %v593
    %597 = vrot.lane.b32.xlu0 %v595, 32
    %v598 = vpop.permute.xlu0 %597
    %v600 = vadd.f32 %v590, %v598
    %v601 = vtanh.pop %v600
    %603 = vrot.lane.b32.xlu0 %v601, 64
    %v604 = vpop.permute.xlu0 %603
    %v606 = vmul.f32 %v588, %v604
    %608 = vrot.lane.b32.xlu0 %v606, 64
    %v609 = vpop.permute.xlu0 %608
    %v611 = vsel %vm346, %v268, %v609
    %v612 = vpack.c.bf16 %v611, %v611
    %v614 = vsel %vm376, %v612, 0
    %616 = vmatpush.bf16.msra.mxu0 0
    %617 = vmatpush.bf16.msra.mxu0 0
    %618 = vmatpush.bf16.msra.mxu0 0
    %619 = vmatpush.bf16.msra.mxu0 0
    %620 = vmatpush.bf16.msra.mxu0 %v371
    %621 = vmatpush.bf16.msra.mxu0 %v370
    %622 = vmatpush.bf16.msra.mxu0 %v369
    %623 = vmatpush.bf16.msra.mxu0 %v368
    %624 = vmatmul.bf16.gmra.mxu0 %v614
    %v625 = vpop.f32.mrf.mxu0
    %v626 = vadd.f32 %v350, %v625
    %v627 = vpop.f32.mrf.mxu0
    %628 = vdwg.mxu0
    %v629 = vxor.u32 %v626, 2147483648
    %v630 = vmul.f32 %v629, 1.442695
    %v631 = vpow.pop %v630
    %v632 = vadd.f32 %v631, 1.0
    %v633 = vrcp.pop %v632
    %v634 = vmul.f32 %v632, %v633
    %v635 = vsub.f32 1.0, %v634
    %v636 = vmul.f32 %v633, %v635
    %v637 = vadd.f32 %v633, %v636
    %vm638 = vweird.f32 %v632
    %vm639 = vweird.f32 %v633
    %vm640 = vmor %vm638, %vm639
    %v641 = vsel %vm640, %v633, %v637
    %v642 = vand.u32 2147483647, %v632
    %vm643 = vcmp.eq.f32.partialorder %v642, 8.507059e+37
    %v644 = vand.u32 %v632, 2147483648
    %v645 = vor.u32 1.1754944e-38, %v644
    %v646 = vsel %vm643, %v645, %v641
    %v647 = vmul.f32 1.0, %v646
    %v648 = vtanh.pop %v626
    %v649 = vmul.f32 %v647, %v600
    %651 = vrot.lane.b32.xlu0 %v648, 64
    %v652 = vpop.permute.xlu0 %651
    %v654 = vmul.f32 %v647, %v652
    %656 = vrot.lane.b32.xlu0 %v654, 32
    %v657 = vpop.permute.xlu0 %656
    %v659 = vadd.f32 %v649, %v657
    %v660 = vtanh.pop %v659
    %662 = vrot.lane.b32.xlu0 %v660, 64
    %v663 = vpop.permute.xlu0 %662
    %v665 = vmul.f32 %v647, %v663
    %667 = vrot.lane.b32.xlu0 %v665, 64
    %v668 = vpop.permute.xlu0 %667
    %v670 = vsel %vm346, %v290, %v668
    %v671 = vpack.c.bf16 %v670, %v670
    %v673 = vsel %vm376, %v671, 0
    %675 = vmatpush.bf16.msra.mxu0 0
    %676 = vmatpush.bf16.msra.mxu0 0
    %677 = vmatpush.bf16.msra.mxu0 0
    %678 = vmatpush.bf16.msra.mxu0 0
    %679 = vmatpush.bf16.msra.mxu0 %v371
    %680 = vmatpush.bf16.msra.mxu0 %v370
    %681 = vmatpush.bf16.msra.mxu0 %v369
    %682 = vmatpush.bf16.msra.mxu0 %v368
    %683 = vmatmul.bf16.gmra.mxu0 %v673
    %v684 = vpop.f32.mrf.mxu0
    %v685 = vadd.f32 %v350, %v684
    %v686 = vpop.f32.mrf.mxu0
    %687 = vdwg.mxu0
    %v688 = vxor.u32 %v685, 2147483648
    %v689 = vmul.f32 %v688, 1.442695
    %v690 = vpow.pop %v689
    %v691 = vadd.f32 %v690, 1.0
    %v692 = vrcp.pop %v691
    %v693 = vmul.f32 %v691, %v692
    %v694 = vsub.f32 1.0, %v693
    %v695 = vmul.f32 %v692, %v694
    %v696 = vadd.f32 %v692, %v695
    %vm697 = vweird.f32 %v691
    %vm698 = vweird.f32 %v692
    %vm699 = vmor %vm697, %vm698
    %v700 = vsel %vm699, %v692, %v696
    %v701 = vand.u32 2147483647, %v691
    %vm702 = vcmp.eq.f32.partialorder %v701, 8.507059e+37
    %v703 = vand.u32 %v691, 2147483648
    %v704 = vor.u32 1.1754944e-38, %v703
    %v705 = vsel %vm702, %v704, %v700
    %v706 = vmul.f32 1.0, %v705
    %v707 = vtanh.pop %v685
    %v708 = vmul.f32 %v706, %v659
    %710 = vrot.lane.b32.xlu0 %v707, 64
    %v711 = vpop.permute.xlu0 %710
    %v713 = vmul.f32 %v706, %v711
    %715 = vrot.lane.b32.xlu0 %v713, 32
    %v716 = vpop.permute.xlu0 %715
    %v718 = vadd.f32 %v708, %v716
    %v719 = vtanh.pop %v718
    %721 = vrot.lane.b32.xlu0 %v719, 64
    %v722 = vpop.permute.xlu0 %721
    %v724 = vmul.f32 %v706, %v722
    %726 = vrot.lane.b32.xlu0 %v724, 64
    %v727 = vpop.permute.xlu0 %726
    %v729 = vsel %vm346, %v312, %v727
    %v730 = vpack.c.bf16 %v729, %v729
    %v732 = vsel %vm376, %v730, 0
    %734 = vmatpush.bf16.msra.mxu0 0
    %735 = vmatpush.bf16.msra.mxu0 0
    %736 = vmatpush.bf16.msra.mxu0 0
    %737 = vmatpush.bf16.msra.mxu0 0
    %738 = vmatpush.bf16.msra.mxu0 %v371
    %739 = vmatpush.bf16.msra.mxu0 %v370
    %740 = vmatpush.bf16.msra.mxu0 %v369
    %741 = vmatpush.bf16.msra.mxu0 %v368
    %742 = vmatmul.bf16.gmra.mxu0 %v732
    %v743 = vpop.f32.mrf.mxu0
    %v744 = vadd.f32 %v350, %v743
    %v745 = vpop.f32.mrf.mxu0
    %746 = vdwg.mxu0
    %v747 = vxor.u32 %v744, 2147483648
    %v748 = vmul.f32 %v747, 1.442695
    %v749 = vpow.pop %v748
    %v750 = vadd.f32 %v749, 1.0
    %v751 = vrcp.pop %v750
    %v752 = vmul.f32 %v750, %v751
    %v753 = vsub.f32 1.0, %v752
    %v754 = vmul.f32 %v751, %v753
    %v755 = vadd.f32 %v751, %v754
    %vm756 = vweird.f32 %v750
    %vm757 = vweird.f32 %v751
    %vm758 = vmor %vm756, %vm757
    %v759 = vsel %vm758, %v751, %v755
    %v760 = vand.u32 2147483647, %v750
    %vm761 = vcmp.eq.f32.partialorder %v760, 8.507059e+37
    %v762 = vand.u32 %v750, 2147483648
    %v763 = vor.u32 1.1754944e-38, %v762
    %v764 = vsel %vm761, %v763, %v759
    %v765 = vmul.f32 1.0, %v764
    %v766 = vtanh.pop %v744
    %v767 = vmul.f32 %v765, %v718
    %769 = vrot.lane.b32.xlu0 %v766, 64
    %v770 = vpop.permute.xlu0 %769
    %v772 = vmul.f32 %v765, %v770
    %774 = vrot.lane.b32.xlu0 %v772, 32
    %v775 = vpop.permute.xlu0 %774
    %v777 = vadd.f32 %v767, %v775
    %v778 = vtanh.pop %v777
    %780 = vrot.lane.b32.xlu0 %v778, 64
    %v781 = vpop.permute.xlu0 %780
    %v783 = vmul.f32 %v765, %v781
    %785 = vrot.lane.b32.xlu0 %v783, 64
    %v786 = vpop.permute.xlu0 %785
    %v788 = vsel %vm346, %v334, %v786
    %v789 = vpack.c.bf16 %v788, %v788
    %v791 = vsel %vm376, %v789, 0
    %793 = vmatpush.bf16.msra.mxu0 0
    %794 = vmatpush.bf16.msra.mxu0 0
    %795 = vmatpush.bf16.msra.mxu0 0
    %796 = vmatpush.bf16.msra.mxu0 0
    %797 = vmatpush.bf16.msra.mxu0 %v371
    %798 = vmatpush.bf16.msra.mxu0 %v370
    %799 = vmatpush.bf16.msra.mxu0 %v369
    %800 = vmatpush.bf16.msra.mxu0 %v368
    %801 = vmatmul.bf16.gmra.mxu0 %v791
    %v802 = vpop.f32.mrf.mxu0
    %v803 = vadd.f32 %v350, %v802
    %v804 = vpop.f32.mrf.mxu0
    %805 = vdwg.mxu0
    %v806 = vxor.u32 %v803, 2147483648
    %v807 = vmul.f32 %v806, 1.442695
    %v808 = vpow.pop %v807
    %v809 = vadd.f32 %v808, 1.0
    %v810 = vrcp.pop %v809
    %v811 = vmul.f32 %v809, %v810
    %v812 = vsub.f32 1.0, %v811
    %v813 = vmul.f32 %v810, %v812
    %v814 = vadd.f32 %v810, %v813
    %vm815 = vweird.f32 %v809
    %vm816 = vweird.f32 %v810
    %vm817 = vmor %vm815, %vm816
    %v818 = vsel %vm817, %v810, %v814
    %v819 = vand.u32 2147483647, %v809
    %vm820 = vcmp.eq.f32.partialorder %v819, 8.507059e+37
    %v821 = vand.u32 %v809, 2147483648
    %v822 = vor.u32 1.1754944e-38, %v821
    %v823 = vsel %vm820, %v822, %v818
    %v824 = vmul.f32 1.0, %v823
    %v825 = vtanh.pop %v803
    %v826 = vmul.f32 %v824, %v777
    %828 = vrot.lane.b32.xlu0 %v825, 64
    %v829 = vpop.permute.xlu0 %828
    %v831 = vmul.f32 %v824, %v829
    %833 = vrot.lane.b32.xlu0 %v831, 32
    %v834 = vpop.permute.xlu0 %833
    %v836 = vadd.f32 %v826, %v834
    %v837 = vtanh.pop %v836
    %839 = vrot.lane.b32.xlu0 %v837, 64
    %v840 = vpop.permute.xlu0 %839
    %v842 = vmul.f32 %v824, %v840
    %v843 = vld [vmem:[#allocation5] sm:$0xf]
    %v844 = vld [vmem:[#allocation5 + $0x4] sm:$0xf]
    %v845 = vld [vmem:[#allocation5 + $0x8] sm:$0xf]
    %v846 = vld [vmem:[#allocation5 + $0xc] sm:$0xf]
    %v847 = vld [vmem:[#allocation5 + $0x10] sm:$0xf]
    %v848 = vld [vmem:[#allocation5 + $0x14] sm:$0xf]
    %v849 = vld [vmem:[#allocation5 + $0x18] sm:$0xf]
    %v850 = vld [vmem:[#allocation5 + $0x1c] sm:$0xf]
    %v851 = vld [vmem:[#allocation7] sm:$0x1]
    %v852 = vsel %vm346, %v334, 0.0
    %v853 = vpack.c.bf16 %v852, %v852
    %v855 = vperm.slane %v851, 0
    %v865 = vunpack.c.l.b16 %v843
    %v866 = vunpack.c.l.b16 %v844
    %v867 = vunpack.c.l.b16 %v845
    %v868 = vunpack.c.l.b16 %v846
    %v869 = vunpack.c.l.b16 %v847
    %v870 = vunpack.c.l.b16 %v848
    %v871 = vunpack.c.l.b16 %v849
    %v872 = vunpack.c.l.b16 %v850
    %v873 = vpack.c.b16 %v866, %v865
    %v874 = vpack.c.b16 %v868, %v867
    %v875 = vpack.c.b16 %v870, %v869
    %v876 = vpack.c.b16 %v872, %v871
    %v882 = vsel %vm376, %v853, 0
    %884 = vmatpush.bf16.msra.mxu0 0
    %885 = vmatpush.bf16.msra.mxu0 0
    %886 = vmatpush.bf16.msra.mxu0 0
    %887 = vmatpush.bf16.msra.mxu0 0
    %888 = vmatpush.bf16.msra.mxu0 %v876
    %889 = vmatpush.bf16.msra.mxu0 %v875
    %890 = vmatpush.bf16.msra.mxu0 %v874
    %891 = vmatpush.bf16.msra.mxu0 %v873
    %892 = vmatmul.bf16.gmra.mxu0 %v882
    %v893 = vpop.f32.mrf.mxu0
    %v894 = vadd.f32 %v855, %v893
    %v895 = vpop.f32.mrf.mxu0
    %896 = vdwg.mxu0
    %v897 = vxor.u32 %v894, 2147483648
    %v898 = vmul.f32 %v897, 1.442695
    %v899 = vpow.pop %v898
    %v900 = vadd.f32 %v899, 1.0
    %v901 = vrcp.pop %v900
    %v902 = vmul.f32 %v900, %v901
    %v903 = vsub.f32 1.0, %v902
    %v904 = vmul.f32 %v901, %v903
    %v905 = vadd.f32 %v901, %v904
    %vm906 = vweird.f32 %v900
    %vm907 = vweird.f32 %v901
    %vm908 = vmor %vm906, %vm907
    %v909 = vsel %vm908, %v901, %v905
    %v910 = vand.u32 2147483647, %v900
    %vm911 = vcmp.eq.f32.partialorder %v910, 8.507059e+37
    %v912 = vand.u32 %v900, 2147483648
    %v913 = vor.u32 1.1754944e-38, %v912
    %v914 = vsel %vm911, %v913, %v909
    %v915 = vmul.f32 1.0, %v914
    %v916 = vtanh.pop %v894
    %v917 = vmul.f32 %v915, 0.0
    %919 = vrot.lane.b32.xlu0 %v916, 64
    %v920 = vpop.permute.xlu0 %919
    %v922 = vmul.f32 %v915, %v920
    %924 = vrot.lane.b32.xlu0 %v922, 32
    %v925 = vpop.permute.xlu0 %924
    %v927 = vadd.f32 %v917, %v925
    %v928 = vtanh.pop %v927
    %930 = vrot.lane.b32.xlu0 %v928, 64
    %v931 = vpop.permute.xlu0 %930
    %v933 = vmul.f32 %v915, %v931
    %935 = vrot.lane.b32.xlu0 %v933, 64
    %v936 = vpop.permute.xlu0 %935
    %v938 = vsel %vm346, %v312, %v936
    %v939 = vpack.c.bf16 %v938, %v938
    %v941 = vsel %vm376, %v939, 0
    %943 = vmatpush.bf16.msra.mxu0 0
    %944 = vmatpush.bf16.msra.mxu0 0
    %945 = vmatpush.bf16.msra.mxu0 0
    %946 = vmatpush.bf16.msra.mxu0 0
    %947 = vmatpush.bf16.msra.mxu0 %v876
    %948 = vmatpush.bf16.msra.mxu0 %v875
    %949 = vmatpush.bf16.msra.mxu0 %v874
    %950 = vmatpush.bf16.msra.mxu0 %v873
    %951 = vmatmul.bf16.gmra.mxu0 %v941
    %v952 = vpop.f32.mrf.mxu0
    %v953 = vadd.f32 %v855, %v952
    %v954 = vpop.f32.mrf.mxu0
    %955 = vdwg.mxu0
    %v956 = vxor.u32 %v953, 2147483648
    %v957 = vmul.f32 %v956, 1.442695
    %v958 = vpow.pop %v957
    %v959 = vadd.f32 %v958, 1.0
    %v960 = vrcp.pop %v959
    %v961 = vmul.f32 %v959, %v960
    %v962 = vsub.f32 1.0, %v961
    %v963 = vmul.f32 %v960, %v962
    %v964 = vadd.f32 %v960, %v963
    %vm965 = vweird.f32 %v959
    %vm966 = vweird.f32 %v960
    %vm967 = vmor %vm965, %vm966
    %v968 = vsel %vm967, %v960, %v964
    %v969 = vand.u32 2147483647, %v959
    %vm970 = vcmp.eq.f32.partialorder %v969, 8.507059e+37
    %v971 = vand.u32 %v959, 2147483648
    %v972 = vor.u32 1.1754944e-38, %v971
    %v973 = vsel %vm970, %v972, %v968
    %v974 = vmul.f32 1.0, %v973
    %v975 = vtanh.pop %v953
    %v976 = vmul.f32 %v974, %v927
    %978 = vrot.lane.b32.xlu0 %v975, 64
    %v979 = vpop.permute.xlu0 %978
    %v981 = vmul.f32 %v974, %v979
    %983 = vrot.lane.b32.xlu0 %v981, 32
    %v984 = vpop.permute.xlu0 %983
    %v986 = vadd.f32 %v976, %v984
    %v987 = vtanh.pop %v986
    %989 = vrot.lane.b32.xlu0 %v987, 64
    %v990 = vpop.permute.xlu0 %989
    %v992 = vmul.f32 %v974, %v990
    %994 = vrot.lane.b32.xlu0 %v992, 64
    %v995 = vpop.permute.xlu0 %994
    %v997 = vsel %vm346, %v290, %v995
    %v998 = vpack.c.bf16 %v997, %v997
    %v1000 = vsel %vm376, %v998, 0
    %1002 = vmatpush.bf16.msra.mxu0 0
    %1003 = vmatpush.bf16.msra.mxu0 0
    %1004 = vmatpush.bf16.msra.mxu0 0
    %1005 = vmatpush.bf16.msra.mxu0 0
    %1006 = vmatpush.bf16.msra.mxu0 %v876
    %1007 = vmatpush.bf16.msra.mxu0 %v875
    %1008 = vmatpush.bf16.msra.mxu0 %v874
    %1009 = vmatpush.bf16.msra.mxu0 %v873
    %1010 = vmatmul.bf16.gmra.mxu0 %v1000
    %v1011 = vpop.f32.mrf.mxu0
    %v1012 = vadd.f32 %v855, %v1011
    %v1013 = vpop.f32.mrf.mxu0
    %1014 = vdwg.mxu0
    %v1015 = vxor.u32 %v1012, 2147483648
    %v1016 = vmul.f32 %v1015, 1.442695
    %v1017 = vpow.pop %v1016
    %v1018 = vadd.f32 %v1017, 1.0
    %v1019 = vrcp.pop %v1018
    %v1020 = vmul.f32 %v1018, %v1019
    %v1021 = vsub.f32 1.0, %v1020
    %v1022 = vmul.f32 %v1019, %v1021
    %v1023 = vadd.f32 %v1019, %v1022
    %vm1024 = vweird.f32 %v1018
    %vm1025 = vweird.f32 %v1019
    %vm1026 = vmor %vm1024, %vm1025
    %v1027 = vsel %vm1026, %v1019, %v1023
    %v1028 = vand.u32 2147483647, %v1018
    %vm1029 = vcmp.eq.f32.partialorder %v1028, 8.507059e+37
    %v1030 = vand.u32 %v1018, 2147483648
    %v1031 = vor.u32 1.1754944e-38, %v1030
    %v1032 = vsel %vm1029, %v1031, %v1027
    %v1033 = vmul.f32 1.0, %v1032
    %v1034 = vtanh.pop %v1012
    %v1035 = vmul.f32 %v1033, %v986
    %1037 = vrot.lane.b32.xlu0 %v1034, 64
    %v1038 = vpop.permute.xlu0 %1037
    %v1040 = vmul.f32 %v1033, %v1038
    %1042 = vrot.lane.b32.xlu0 %v1040, 32
    %v1043 = vpop.permute.xlu0 %1042
    %v1045 = vadd.f32 %v1035, %v1043
    %v1046 = vtanh.pop %v1045
    %1048 = vrot.lane.b32.xlu0 %v1046, 64
    %v1049 = vpop.permute.xlu0 %1048
    %v1051 = vmul.f32 %v1033, %v1049
    %1053 = vrot.lane.b32.xlu0 %v1051, 64
    %v1054 = vpop.permute.xlu0 %1053
    %v1056 = vsel %vm346, %v268, %v1054
    %v1057 = vpack.c.bf16 %v1056, %v1056
    %v1059 = vsel %vm376, %v1057, 0
    %1061 = vmatpush.bf16.msra.mxu0 0
    %1062 = vmatpush.bf16.msra.mxu0 0
    %1063 = vmatpush.bf16.msra.mxu0 0
    %1064 = vmatpush.bf16.msra.mxu0 0
    %1065 = vmatpush.bf16.msra.mxu0 %v876
    %1066 = vmatpush.bf16.msra.mxu0 %v875
    %1067 = vmatpush.bf16.msra.mxu0 %v874
    %1068 = vmatpush.bf16.msra.mxu0 %v873
    %1069 = vmatmul.bf16.gmra.mxu0 %v1059
    %v1070 = vpop.f32.mrf.mxu0
    %v1071 = vadd.f32 %v855, %v1070
    %v1072 = vpop.f32.mrf.mxu0
    %1073 = vdwg.mxu0
    %v1074 = vxor.u32 %v1071, 2147483648
    %v1075 = vmul.f32 %v1074, 1.442695
    %v1076 = vpow.pop %v1075
    %v1077 = vadd.f32 %v1076, 1.0
    %v1078 = vrcp.pop %v1077
    %v1079 = vmul.f32 %v1077, %v1078
    %v1080 = vsub.f32 1.0, %v1079
    %v1081 = vmul.f32 %v1078, %v1080
    %v1082 = vadd.f32 %v1078, %v1081
    %vm1083 = vweird.f32 %v1077
    %vm1084 = vweird.f32 %v1078
    %vm1085 = vmor %vm1083, %vm1084
    %v1086 = vsel %vm1085, %v1078, %v1082
    %v1087 = vand.u32 2147483647, %v1077
    %vm1088 = vcmp.eq.f32.partialorder %v1087, 8.507059e+37
    %v1089 = vand.u32 %v1077, 2147483648
    %v1090 = vor.u32 1.1754944e-38, %v1089
    %v1091 = vsel %vm1088, %v1090, %v1086
    %v1092 = vmul.f32 1.0, %v1091
    %v1093 = vtanh.pop %v1071
    %v1094 = vmul.f32 %v1092, %v1045
    %1096 = vrot.lane.b32.xlu0 %v1093, 64
    %v1097 = vpop.permute.xlu0 %1096
    %v1099 = vmul.f32 %v1092, %v1097
    %1101 = vrot.lane.b32.xlu0 %v1099, 32
    %v1102 = vpop.permute.xlu0 %1101
    %v1104 = vadd.f32 %v1094, %v1102
    %v1105 = vtanh.pop %v1104
    %1107 = vrot.lane.b32.xlu0 %v1105, 64
    %v1108 = vpop.permute.xlu0 %1107
    %v1110 = vmul.f32 %v1092, %v1108
    %1112 = vrot.lane.b32.xlu0 %v1110, 64
    %v1113 = vpop.permute.xlu0 %1112
    %v1115 = vsel %vm346, %v246, %v1113
    %v1116 = vpack.c.bf16 %v1115, %v1115
    %v1118 = vsel %vm376, %v1116, 0
    %1120 = vmatpush.bf16.msra.mxu0 0
    %1121 = vmatpush.bf16.msra.mxu0 0
    %1122 = vmatpush.bf16.msra.mxu0 0
    %1123 = vmatpush.bf16.msra.mxu0 0
    %1124 = vmatpush.bf16.msra.mxu0 %v876
    %1125 = vmatpush.bf16.msra.mxu0 %v875
    %1126 = vmatpush.bf16.msra.mxu0 %v874
    %1127 = vmatpush.bf16.msra.mxu0 %v873
    %1128 = vmatmul.bf16.gmra.mxu0 %v1118
    %v1129 = vpop.f32.mrf.mxu0
    %v1130 = vadd.f32 %v855, %v1129
    %v1131 = vpop.f32.mrf.mxu0
    %1132 = vdwg.mxu0
    %v1133 = vxor.u32 %v1130, 2147483648
    %v1134 = vmul.f32 %v1133, 1.442695
    %v1135 = vpow.pop %v1134
    %v1136 = vadd.f32 %v1135, 1.0
    %v1137 = vrcp.pop %v1136
    %v1138 = vmul.f32 %v1136, %v1137
    %v1139 = vsub.f32 1.0, %v1138
    %v1140 = vmul.f32 %v1137, %v1139
    %v1141 = vadd.f32 %v1137, %v1140
    %vm1142 = vweird.f32 %v1136
    %vm1143 = vweird.f32 %v1137
    %vm1144 = vmor %vm1142, %vm1143
    %v1145 = vsel %vm1144, %v1137, %v1141
    %v1146 = vand.u32 2147483647, %v1136
    %vm1147 = vcmp.eq.f32.partialorder %v1146, 8.507059e+37
    %v1148 = vand.u32 %v1136, 2147483648
    %v1149 = vor.u32 1.1754944e-38, %v1148
    %v1150 = vsel %vm1147, %v1149, %v1145
    %v1151 = vmul.f32 1.0, %v1150
    %v1152 = vtanh.pop %v1130
    %v1153 = vmul.f32 %v1151, %v1104
    %1155 = vrot.lane.b32.xlu0 %v1152, 64
    %v1156 = vpop.permute.xlu0 %1155
    %v1158 = vmul.f32 %v1151, %v1156
    %1160 = vrot.lane.b32.xlu0 %v1158, 32
    %v1161 = vpop.permute.xlu0 %1160
    %v1163 = vadd.f32 %v1153, %v1161
    %v1164 = vtanh.pop %v1163
    %1166 = vrot.lane.b32.xlu0 %v1164, 64
    %v1167 = vpop.permute.xlu0 %1166
    %v1169 = vmul.f32 %v1151, %v1167
    %1171 = vrot.lane.b32.xlu0 %v1169, 64
    %v1172 = vpop.permute.xlu0 %1171
    %v1174 = vsel %vm346, %v224, %v1172
    %v1175 = vpack.c.bf16 %v1174, %v1174
    %v1177 = vsel %vm376, %v1175, 0
    %1179 = vmatpush.bf16.msra.mxu0 0
    %1180 = vmatpush.bf16.msra.mxu0 0
    %1181 = vmatpush.bf16.msra.mxu0 0
    %1182 = vmatpush.bf16.msra.mxu0 0
    %1183 = vmatpush.bf16.msra.mxu0 %v876
    %1184 = vmatpush.bf16.msra.mxu0 %v875
    %1185 = vmatpush.bf16.msra.mxu0 %v874
    %1186 = vmatpush.bf16.msra.mxu0 %v873
    %1187 = vmatmul.bf16.gmra.mxu0 %v1177
    %v1188 = vpop.f32.mrf.mxu0
    %v1189 = vadd.f32 %v855, %v1188
    %v1190 = vpop.f32.mrf.mxu0
    %1191 = vdwg.mxu0
    %v1192 = vxor.u32 %v1189, 2147483648
    %v1193 = vmul.f32 %v1192, 1.442695
    %v1194 = vpow.pop %v1193
    %v1195 = vadd.f32 %v1194, 1.0
    %v1196 = vrcp.pop %v1195
    %v1197 = vmul.f32 %v1195, %v1196
    %v1198 = vsub.f32 1.0, %v1197
    %v1199 = vmul.f32 %v1196, %v1198
    %v1200 = vadd.f32 %v1196, %v1199
    %vm1201 = vweird.f32 %v1195
    %vm1202 = vweird.f32 %v1196
    %vm1203 = vmor %vm1201, %vm1202
    %v1204 = vsel %vm1203, %v1196, %v1200
    %v1205 = vand.u32 2147483647, %v1195
    %vm1206 = vcmp.eq.f32.partialorder %v1205, 8.507059e+37
    %v1207 = vand.u32 %v1195, 2147483648
    %v1208 = vor.u32 1.1754944e-38, %v1207
    %v1209 = vsel %vm1206, %v1208, %v1204
    %v1210 = vmul.f32 1.0, %v1209
    %v1211 = vtanh.pop %v1189
    %v1212 = vmul.f32 %v1210, %v1163
    %1214 = vrot.lane.b32.xlu0 %v1211, 64
    %v1215 = vpop.permute.xlu0 %1214
    %v1217 = vmul.f32 %v1210, %v1215
    %1219 = vrot.lane.b32.xlu0 %v1217, 32
    %v1220 = vpop.permute.xlu0 %1219
    %v1222 = vadd.f32 %v1212, %v1220
    %v1223 = vtanh.pop %v1222
    %1225 = vrot.lane.b32.xlu0 %v1223, 64
    %v1226 = vpop.permute.xlu0 %1225
    %v1228 = vmul.f32 %v1210, %v1226
    %1230 = vrot.lane.b32.xlu0 %v1228, 64
    %v1231 = vpop.permute.xlu0 %1230
    %v1233 = vsel %vm346, %v202, %v1231
    %v1234 = vpack.c.bf16 %v1233, %v1233
    %v1236 = vsel %vm376, %v1234, 0
    %1238 = vmatpush.bf16.msra.mxu0 0
    %1239 = vmatpush.bf16.msra.mxu0 0
    %1240 = vmatpush.bf16.msra.mxu0 0
    %1241 = vmatpush.bf16.msra.mxu0 0
    %1242 = vmatpush.bf16.msra.mxu0 %v876
    %1243 = vmatpush.bf16.msra.mxu0 %v875
    %1244 = vmatpush.bf16.msra.mxu0 %v874
    %1245 = vmatpush.bf16.msra.mxu0 %v873
    %1246 = vmatmul.bf16.gmra.mxu0 %v1236
    %v1247 = vpop.f32.mrf.mxu0
    %v1248 = vadd.f32 %v855, %v1247
    %v1249 = vpop.f32.mrf.mxu0
    %1250 = vdwg.mxu0
    %v1251 = vxor.u32 %v1248, 2147483648
    %v1252 = vmul.f32 %v1251, 1.442695
    %v1253 = vpow.pop %v1252
    %v1254 = vadd.f32 %v1253, 1.0
    %v1255 = vrcp.pop %v1254
    %v1256 = vmul.f32 %v1254, %v1255
    %v1257 = vsub.f32 1.0, %v1256
    %v1258 = vmul.f32 %v1255, %v1257
    %v1259 = vadd.f32 %v1255, %v1258
    %vm1260 = vweird.f32 %v1254
    %vm1261 = vweird.f32 %v1255
    %vm1262 = vmor %vm1260, %vm1261
    %v1263 = vsel %vm1262, %v1255, %v1259
    %v1264 = vand.u32 2147483647, %v1254
    %vm1265 = vcmp.eq.f32.partialorder %v1264, 8.507059e+37
    %v1266 = vand.u32 %v1254, 2147483648
    %v1267 = vor.u32 1.1754944e-38, %v1266
    %v1268 = vsel %vm1265, %v1267, %v1263
    %v1269 = vmul.f32 1.0, %v1268
    %v1270 = vtanh.pop %v1248
    %v1271 = vmul.f32 %v1269, %v1222
    %1273 = vrot.lane.b32.xlu0 %v1270, 64
    %v1274 = vpop.permute.xlu0 %1273
    %v1276 = vmul.f32 %v1269, %v1274
    %1278 = vrot.lane.b32.xlu0 %v1276, 32
    %v1279 = vpop.permute.xlu0 %1278
    %v1281 = vadd.f32 %v1271, %v1279
    %v1282 = vtanh.pop %v1281
    %1284 = vrot.lane.b32.xlu0 %v1282, 64
    %v1285 = vpop.permute.xlu0 %1284
    %v1287 = vmul.f32 %v1269, %v1285
    %1289 = vrot.lane.b32.xlu0 %v1287, 64
    %v1290 = vpop.permute.xlu0 %1289
    %v1292 = vsel %vm346, %v180, %v1290
    %v1293 = vpack.c.bf16 %v1292, %v1292
    %v1295 = vsel %vm376, %v1293, 0
    %1297 = vmatpush.bf16.msra.mxu0 0
    %1298 = vmatpush.bf16.msra.mxu0 0
    %1299 = vmatpush.bf16.msra.mxu0 0
    %1300 = vmatpush.bf16.msra.mxu0 0
    %1301 = vmatpush.bf16.msra.mxu0 %v876
    %1302 = vmatpush.bf16.msra.mxu0 %v875
    %1303 = vmatpush.bf16.msra.mxu0 %v874
    %1304 = vmatpush.bf16.msra.mxu0 %v873
    %1305 = vmatmul.bf16.gmra.mxu0 %v1295
    %v1306 = vpop.f32.mrf.mxu0
    %v1307 = vadd.f32 %v855, %v1306
    %v1308 = vpop.f32.mrf.mxu0
    %1309 = vdwg.mxu0
    %v1310 = vxor.u32 %v1307, 2147483648
    %v1311 = vmul.f32 %v1310, 1.442695
    %v1312 = vpow.pop %v1311
    %v1313 = vadd.f32 %v1312, 1.0
    %v1314 = vrcp.pop %v1313
    %v1315 = vmul.f32 %v1313, %v1314
    %v1316 = vsub.f32 1.0, %v1315
    %v1317 = vmul.f32 %v1314, %v1316
    %v1318 = vadd.f32 %v1314, %v1317
    %vm1319 = vweird.f32 %v1313
    %vm1320 = vweird.f32 %v1314
    %vm1321 = vmor %vm1319, %vm1320
    %v1322 = vsel %vm1321, %v1314, %v1318
    %v1323 = vand.u32 2147483647, %v1313
    %vm1324 = vcmp.eq.f32.partialorder %v1323, 8.507059e+37
    %v1325 = vand.u32 %v1313, 2147483648
    %v1326 = vor.u32 1.1754944e-38, %v1325
    %v1327 = vsel %vm1324, %v1326, %v1322
    %v1328 = vmul.f32 1.0, %v1327
    %v1329 = vtanh.pop %v1307
    %v1330 = vmul.f32 %v1328, %v1281
    %1332 = vrot.lane.b32.xlu0 %v1329, 64
    %v1333 = vpop.permute.xlu0 %1332
    %v1335 = vmul.f32 %v1328, %v1333
    %1337 = vrot.lane.b32.xlu0 %v1335, 32
    %v1338 = vpop.permute.xlu0 %1337
    %v1340 = vadd.f32 %v1330, %v1338
    %v1341 = vtanh.pop %v1340
    %1343 = vrot.lane.b32.xlu0 %v1341, 64
    %v1344 = vpop.permute.xlu0 %1343
    %v1346 = vmul.f32 %v1328, %v1344
    %1347 = vrot.lane.b32.xlu0 %v429, 32
    %v1348 = vpop.permute.xlu0 %1347
    %1351 = vrot.lane.b32.xlu0 %v1346, 64
    %v1352 = vpop.permute.xlu0 %1351
    %v1354 = vsel %vm346, %v1348, %v1352
    %1355 = vrot.lane.b32.xlu0 %v488, 32
    %v1356 = vpop.permute.xlu0 %1355
    %v1358 = vsel %vm346, %v1356, %v1290
    %1359 = vrot.lane.b32.xlu0 %v547, 32
    %v1360 = vpop.permute.xlu0 %1359
    %v1362 = vsel %vm346, %v1360, %v1231
    %1363 = vrot.lane.b32.xlu0 %v606, 32
    %v1364 = vpop.permute.xlu0 %1363
    %v1366 = vsel %vm346, %v1364, %v1172
    %1367 = vrot.lane.b32.xlu0 %v665, 32
    %v1368 = vpop.permute.xlu0 %1367
    %v1370 = vsel %vm346, %v1368, %v1113
    %1371 = vrot.lane.b32.xlu0 %v724, 32
    %v1372 = vpop.permute.xlu0 %1371
    %v1374 = vsel %vm346, %v1372, %v1054
    %1375 = vrot.lane.b32.xlu0 %v783, 32
    %v1376 = vpop.permute.xlu0 %1375
    %v1378 = vsel %vm346, %v1376, %v995
    %1380 = vrot.lane.b32.xlu0 %v842, 32
    %v1381 = vpop.permute.xlu0 %1380
    %v1383 = vsel %vm346, %v1381, %v936
    %v1384 = vld [vmem:[%s6] sm:$0xf]
    %v1385 = vld [vmem:[%s6 + $0x4] sm:$0xf]
    %v1386 = vld [vmem:[%s6 + $0x8] sm:$0xf]
    %v1387 = vld [vmem:[%s6 + $0xc] sm:$0xf]
    %v1388 = vld [vmem:[%s6 + $0x10] sm:$0xf]
    %v1389 = vld [vmem:[%s6 + $0x14] sm:$0xf]
    %v1390 = vld [vmem:[%s6 + $0x18] sm:$0xf]
    %v1391 = vld [vmem:[%s6 + $0x1c] sm:$0xf]
    %v1392 = vld [vmem:[%s6 + $0x20] sm:$0xf]
    %v1393 = vld [vmem:[%s6 + $0x24] sm:$0xf]
    %v1394 = vld [vmem:[%s6 + $0x28] sm:$0xf]
    %v1395 = vld [vmem:[%s6 + $0x2c] sm:$0xf]
    %v1396 = vld [vmem:[#allocation8] sm:$0x1]
    %v1397 = vsel %vm376, %v1354, 0.0
    %v1398 = vpack.c.bf16 %v1397, %v1397
    %v1400 = vperm.slane %v1396, 0
    %v1414 = vunpack.c.l.b16 %v1384
    %v1415 = vunpack.c.l.b16 %v1385
    %v1416 = vunpack.c.l.b16 %v1386
    %v1417 = vunpack.c.l.b16 %v1387
    %v1418 = vunpack.c.l.b16 %v1388
    %v1419 = vunpack.c.l.b16 %v1389
    %v1420 = vunpack.c.l.b16 %v1390
    %v1421 = vunpack.c.l.b16 %v1391
    %v1422 = vunpack.c.l.b16 %v1392
    %v1423 = vunpack.c.l.b16 %v1393
    %v1424 = vunpack.c.l.b16 %v1394
    %v1425 = vunpack.c.l.b16 %v1395
    %v1426 = vpack.c.b16 %v1415, %v1414
    %v1427 = vpack.c.b16 %v1417, %v1416
    %v1428 = vpack.c.b16 %v1419, %v1418
    %v1429 = vpack.c.b16 %v1421, %v1420
    %v1430 = vpack.c.b16 %v1423, %v1422
    %v1431 = vpack.c.b16 %v1425, %v1424
    %vm1438 = vcmask 785408
    %v1440 = vsel %vm1438, %v1398, 0
    %1442 = vmatpush.bf16.msra.mxu0 0
    %1443 = vmatpush.bf16.msra.mxu0 0
    %1444 = vmatpush.bf16.msra.mxu0 %v1431
    %1445 = vmatpush.bf16.msra.mxu0 %v1430
    %1446 = vmatpush.bf16.msra.mxu0 %v1429
    %1447 = vmatpush.bf16.msra.mxu0 %v1428
    %1448 = vmatpush.bf16.msra.mxu0 %v1427
    %1449 = vmatpush.bf16.msra.mxu0 %v1426
    %1450 = vmatmul.bf16.gmra.mxu0 %v1440
    %v1451 = vpop.f32.mrf.mxu0
    %v1452 = vadd.f32 %v1400, %v1451
    %v1453 = vpop.f32.mrf.mxu0
    %1454 = vdwg.mxu0
    %v1455 = vxor.u32 %v1452, 2147483648
    %v1456 = vmul.f32 %v1455, 1.442695
    %v1457 = vpow.pop %v1456
    %v1458 = vadd.f32 %v1457, 1.0
    %v1459 = vrcp.pop %v1458
    %v1460 = vmul.f32 %v1458, %v1459
    %v1461 = vsub.f32 1.0, %v1460
    %v1462 = vmul.f32 %v1459, %v1461
    %v1463 = vadd.f32 %v1459, %v1462
    %vm1464 = vweird.f32 %v1458
    %vm1465 = vweird.f32 %v1459
    %vm1466 = vmor %vm1464, %vm1465
    %v1467 = vsel %vm1466, %v1459, %v1463
    %v1468 = vand.u32 2147483647, %v1458
    %vm1469 = vcmp.eq.f32.partialorder %v1468, 8.507059e+37
    %v1470 = vand.u32 %v1458, 2147483648
    %v1471 = vor.u32 1.1754944e-38, %v1470
    %v1472 = vsel %vm1469, %v1471, %v1467
    %v1473 = vmul.f32 1.0, %v1472
    %v1474 = vtanh.pop %v1452
    %v1475 = vmul.f32 %v1473, 0.0
    %1477 = vrot.lane.b32.xlu0 %v1474, 64
    %v1478 = vpop.permute.xlu0 %1477
    %v1480 = vmul.f32 %v1473, %v1478
    %1482 = vrot.lane.b32.xlu0 %v1480, 32
    %v1483 = vpop.permute.xlu0 %1482
    %v1485 = vadd.f32 %v1475, %v1483
    %v1486 = vtanh.pop %v1485
    %1488 = vrot.lane.b32.xlu0 %v1486, 64
    %v1489 = vpop.permute.xlu0 %1488
    %v1491 = vmul.f32 %v1473, %v1489
    %1493 = vrot.lane.b32.xlu0 %v1491, 96
    %v1494 = vpop.permute.xlu0 %1493
    %v1496 = vsel %vm376, %v1358, %v1494
    %v1497 = vpack.c.bf16 %v1496, %v1496
    %v1499 = vsel %vm1438, %v1497, 0
    %1501 = vmatpush.bf16.msra.mxu0 0
    %1502 = vmatpush.bf16.msra.mxu0 0
    %1503 = vmatpush.bf16.msra.mxu0 %v1431
    %1504 = vmatpush.bf16.msra.mxu0 %v1430
    %1505 = vmatpush.bf16.msra.mxu0 %v1429
    %1506 = vmatpush.bf16.msra.mxu0 %v1428
    %1507 = vmatpush.bf16.msra.mxu0 %v1427
    %1508 = vmatpush.bf16.msra.mxu0 %v1426
    %1509 = vmatmul.bf16.gmra.mxu0 %v1499
    %v1510 = vpop.f32.mrf.mxu0
    %v1511 = vadd.f32 %v1400, %v1510
    %v1512 = vpop.f32.mrf.mxu0
    %1513 = vdwg.mxu0
    %v1514 = vxor.u32 %v1511, 2147483648
    %v1515 = vmul.f32 %v1514, 1.442695
    %v1516 = vpow.pop %v1515
    %v1517 = vadd.f32 %v1516, 1.0
    %v1518 = vrcp.pop %v1517
    %v1519 = vmul.f32 %v1517, %v1518
    %v1520 = vsub.f32 1.0, %v1519
    %v1521 = vmul.f32 %v1518, %v1520
    %v1522 = vadd.f32 %v1518, %v1521
    %vm1523 = vweird.f32 %v1517
    %vm1524 = vweird.f32 %v1518
    %vm1525 = vmor %vm1523, %vm1524
    %v1526 = vsel %vm1525, %v1518, %v1522
    %v1527 = vand.u32 2147483647, %v1517
    %vm1528 = vcmp.eq.f32.partialorder %v1527, 8.507059e+37
    %v1529 = vand.u32 %v1517, 2147483648
    %v1530 = vor.u32 1.1754944e-38, %v1529
    %v1531 = vsel %vm1528, %v1530, %v1526
    %v1532 = vmul.f32 1.0, %v1531
    %v1533 = vtanh.pop %v1511
    %v1534 = vmul.f32 %v1532, %v1485
    %1536 = vrot.lane.b32.xlu0 %v1533, 64
    %v1537 = vpop.permute.xlu0 %1536
    %v1539 = vmul.f32 %v1532, %v1537
    %1541 = vrot.lane.b32.xlu0 %v1539, 32
    %v1542 = vpop.permute.xlu0 %1541
    %v1544 = vadd.f32 %v1534, %v1542
    %v1545 = vtanh.pop %v1544
    %1547 = vrot.lane.b32.xlu0 %v1545, 64
    %v1548 = vpop.permute.xlu0 %1547
    %v1550 = vmul.f32 %v1532, %v1548
    %1552 = vrot.lane.b32.xlu0 %v1550, 96
    %v1553 = vpop.permute.xlu0 %1552
    %v1555 = vsel %vm376, %v1362, %v1553
    %v1556 = vpack.c.bf16 %v1555, %v1555
    %v1558 = vsel %vm1438, %v1556, 0
    %1560 = vmatpush.bf16.msra.mxu0 0
    %1561 = vmatpush.bf16.msra.mxu0 0
    %1562 = vmatpush.bf16.msra.mxu0 %v1431
    %1563 = vmatpush.bf16.msra.mxu0 %v1430
    %1564 = vmatpush.bf16.msra.mxu0 %v1429
    %1565 = vmatpush.bf16.msra.mxu0 %v1428
    %1566 = vmatpush.bf16.msra.mxu0 %v1427
    %1567 = vmatpush.bf16.msra.mxu0 %v1426
    %1568 = vmatmul.bf16.gmra.mxu0 %v1558
    %v1569 = vpop.f32.mrf.mxu0
    %v1570 = vadd.f32 %v1400, %v1569
    %v1571 = vpop.f32.mrf.mxu0
    %1572 = vdwg.mxu0
    %v1573 = vxor.u32 %v1570, 2147483648
    %v1574 = vmul.f32 %v1573, 1.442695
    %v1575 = vpow.pop %v1574
    %v1576 = vadd.f32 %v1575, 1.0
    %v1577 = vrcp.pop %v1576
    %v1578 = vmul.f32 %v1576, %v1577
    %v1579 = vsub.f32 1.0, %v1578
    %v1580 = vmul.f32 %v1577, %v1579
    %v1581 = vadd.f32 %v1577, %v1580
    %vm1582 = vweird.f32 %v1576
    %vm1583 = vweird.f32 %v1577
    %vm1584 = vmor %vm1582, %vm1583
    %v1585 = vsel %vm1584, %v1577, %v1581
    %v1586 = vand.u32 2147483647, %v1576
    %vm1587 = vcmp.eq.f32.partialorder %v1586, 8.507059e+37
    %v1588 = vand.u32 %v1576, 2147483648
    %v1589 = vor.u32 1.1754944e-38, %v1588
    %v1590 = vsel %vm1587, %v1589, %v1585
    %v1591 = vmul.f32 1.0, %v1590
    %v1592 = vtanh.pop %v1570
    %v1593 = vmul.f32 %v1591, %v1544
    %1595 = vrot.lane.b32.xlu0 %v1592, 64
    %v1596 = vpop.permute.xlu0 %1595
    %v1598 = vmul.f32 %v1591, %v1596
    %1600 = vrot.lane.b32.xlu0 %v1598, 32
    %v1601 = vpop.permute.xlu0 %1600
    %v1603 = vadd.f32 %v1593, %v1601
    %v1604 = vtanh.pop %v1603
    %1606 = vrot.lane.b32.xlu0 %v1604, 64
    %v1607 = vpop.permute.xlu0 %1606
    %v1609 = vmul.f32 %v1591, %v1607
    %1611 = vrot.lane.b32.xlu0 %v1609, 96
    %v1612 = vpop.permute.xlu0 %1611
    %v1614 = vsel %vm376, %v1366, %v1612
    %v1615 = vpack.c.bf16 %v1614, %v1614
    %v1617 = vsel %vm1438, %v1615, 0
    %1619 = vmatpush.bf16.msra.mxu0 0
    %1620 = vmatpush.bf16.msra.mxu0 0
    %1621 = vmatpush.bf16.msra.mxu0 %v1431
    %1622 = vmatpush.bf16.msra.mxu0 %v1430
    %1623 = vmatpush.bf16.msra.mxu0 %v1429
    %1624 = vmatpush.bf16.msra.mxu0 %v1428
    %1625 = vmatpush.bf16.msra.mxu0 %v1427
    %1626 = vmatpush.bf16.msra.mxu0 %v1426
    %1627 = vmatmul.bf16.gmra.mxu0 %v1617
    %v1628 = vpop.f32.mrf.mxu0
    %v1629 = vadd.f32 %v1400, %v1628
    %v1630 = vpop.f32.mrf.mxu0
    %1631 = vdwg.mxu0
    %v1632 = vxor.u32 %v1629, 2147483648
    %v1633 = vmul.f32 %v1632, 1.442695
    %v1634 = vpow.pop %v1633
    %v1635 = vadd.f32 %v1634, 1.0
    %v1636 = vrcp.pop %v1635
    %v1637 = vmul.f32 %v1635, %v1636
    %v1638 = vsub.f32 1.0, %v1637
    %v1639 = vmul.f32 %v1636, %v1638
    %v1640 = vadd.f32 %v1636, %v1639
    %vm1641 = vweird.f32 %v1635
    %vm1642 = vweird.f32 %v1636
    %vm1643 = vmor %vm1641, %vm1642
    %v1644 = vsel %vm1643, %v1636, %v1640
    %v1645 = vand.u32 2147483647, %v1635
    %vm1646 = vcmp.eq.f32.partialorder %v1645, 8.507059e+37
    %v1647 = vand.u32 %v1635, 2147483648
    %v1648 = vor.u32 1.1754944e-38, %v1647
    %v1649 = vsel %vm1646, %v1648, %v1644
    %v1650 = vmul.f32 1.0, %v1649
    %v1651 = vtanh.pop %v1629
    %v1652 = vmul.f32 %v1650, %v1603
    %1654 = vrot.lane.b32.xlu0 %v1651, 64
    %v1655 = vpop.permute.xlu0 %1654
    %v1657 = vmul.f32 %v1650, %v1655
    %1659 = vrot.lane.b32.xlu0 %v1657, 32
    %v1660 = vpop.permute.xlu0 %1659
    %v1662 = vadd.f32 %v1652, %v1660
    %v1663 = vtanh.pop %v1662
    %1665 = vrot.lane.b32.xlu0 %v1663, 64
    %v1666 = vpop.permute.xlu0 %1665
    %v1668 = vmul.f32 %v1650, %v1666
    %1670 = vrot.lane.b32.xlu0 %v1668, 96
    %v1671 = vpop.permute.xlu0 %1670
    %v1673 = vsel %vm376, %v1370, %v1671
    %v1674 = vpack.c.bf16 %v1673, %v1673
    %v1676 = vsel %vm1438, %v1674, 0
    %1678 = vmatpush.bf16.msra.mxu0 0
    %1679 = vmatpush.bf16.msra.mxu0 0
    %1680 = vmatpush.bf16.msra.mxu0 %v1431
    %1681 = vmatpush.bf16.msra.mxu0 %v1430
    %1682 = vmatpush.bf16.msra.mxu0 %v1429
    %1683 = vmatpush.bf16.msra.mxu0 %v1428
    %1684 = vmatpush.bf16.msra.mxu0 %v1427
    %1685 = vmatpush.bf16.msra.mxu0 %v1426
    %1686 = vmatmul.bf16.gmra.mxu0 %v1676
    %v1687 = vpop.f32.mrf.mxu0
    %v1688 = vadd.f32 %v1400, %v1687
    %v1689 = vpop.f32.mrf.mxu0
    %1690 = vdwg.mxu0
    %v1691 = vxor.u32 %v1688, 2147483648
    %v1692 = vmul.f32 %v1691, 1.442695
    %v1693 = vpow.pop %v1692
    %v1694 = vadd.f32 %v1693, 1.0
    %v1695 = vrcp.pop %v1694
    %v1696 = vmul.f32 %v1694, %v1695
    %v1697 = vsub.f32 1.0, %v1696
    %v1698 = vmul.f32 %v1695, %v1697
    %v1699 = vadd.f32 %v1695, %v1698
    %vm1700 = vweird.f32 %v1694
    %vm1701 = vweird.f32 %v1695
    %vm1702 = vmor %vm1700, %vm1701
    %v1703 = vsel %vm1702, %v1695, %v1699
    %v1704 = vand.u32 2147483647, %v1694
    %vm1705 = vcmp.eq.f32.partialorder %v1704, 8.507059e+37
    %v1706 = vand.u32 %v1694, 2147483648
    %v1707 = vor.u32 1.1754944e-38, %v1706
    %v1708 = vsel %vm1705, %v1707, %v1703
    %v1709 = vmul.f32 1.0, %v1708
    %v1710 = vtanh.pop %v1688
    %v1711 = vmul.f32 %v1709, %v1662
    %1713 = vrot.lane.b32.xlu0 %v1710, 64
    %v1714 = vpop.permute.xlu0 %1713
    %v1716 = vmul.f32 %v1709, %v1714
    %1718 = vrot.lane.b32.xlu0 %v1716, 32
    %v1719 = vpop.permute.xlu0 %1718
    %v1721 = vadd.f32 %v1711, %v1719
    %v1722 = vtanh.pop %v1721
    %1724 = vrot.lane.b32.xlu0 %v1722, 64
    %v1725 = vpop.permute.xlu0 %1724
    %v1727 = vmul.f32 %v1709, %v1725
    %1729 = vrot.lane.b32.xlu0 %v1727, 96
    %v1730 = vpop.permute.xlu0 %1729
    %v1732 = vsel %vm376, %v1374, %v1730
    %v1733 = vpack.c.bf16 %v1732, %v1732
    %v1735 = vsel %vm1438, %v1733, 0
    %1737 = vmatpush.bf16.msra.mxu0 0
    %1738 = vmatpush.bf16.msra.mxu0 0
    %1739 = vmatpush.bf16.msra.mxu0 %v1431
    %1740 = vmatpush.bf16.msra.mxu0 %v1430
    %1741 = vmatpush.bf16.msra.mxu0 %v1429
    %1742 = vmatpush.bf16.msra.mxu0 %v1428
    %1743 = vmatpush.bf16.msra.mxu0 %v1427
    %1744 = vmatpush.bf16.msra.mxu0 %v1426
    %1745 = vmatmul.bf16.gmra.mxu0 %v1735
    %v1746 = vpop.f32.mrf.mxu0
    %v1747 = vadd.f32 %v1400, %v1746
    %v1748 = vpop.f32.mrf.mxu0
    %1749 = vdwg.mxu0
    %v1750 = vxor.u32 %v1747, 2147483648
    %v1751 = vmul.f32 %v1750, 1.442695
    %v1752 = vpow.pop %v1751
    %v1753 = vadd.f32 %v1752, 1.0
    %v1754 = vrcp.pop %v1753
    %v1755 = vmul.f32 %v1753, %v1754
    %v1756 = vsub.f32 1.0, %v1755
    %v1757 = vmul.f32 %v1754, %v1756
    %v1758 = vadd.f32 %v1754, %v1757
    %vm1759 = vweird.f32 %v1753
    %vm1760 = vweird.f32 %v1754
    %vm1761 = vmor %vm1759, %vm1760
    %v1762 = vsel %vm1761, %v1754, %v1758
    %v1763 = vand.u32 2147483647, %v1753
    %vm1764 = vcmp.eq.f32.partialorder %v1763, 8.507059e+37
    %v1765 = vand.u32 %v1753, 2147483648
    %v1766 = vor.u32 1.1754944e-38, %v1765
    %v1767 = vsel %vm1764, %v1766, %v1762
    %v1768 = vmul.f32 1.0, %v1767
    %v1769 = vtanh.pop %v1747
    %v1770 = vmul.f32 %v1768, %v1721
    %1772 = vrot.lane.b32.xlu0 %v1769, 64
    %v1773 = vpop.permute.xlu0 %1772
    %v1775 = vmul.f32 %v1768, %v1773
    %1777 = vrot.lane.b32.xlu0 %v1775, 32
    %v1778 = vpop.permute.xlu0 %1777
    %v1780 = vadd.f32 %v1770, %v1778
    %v1781 = vtanh.pop %v1780
    %1783 = vrot.lane.b32.xlu0 %v1781, 64
    %v1784 = vpop.permute.xlu0 %1783
    %v1786 = vmul.f32 %v1768, %v1784
    %1788 = vrot.lane.b32.xlu0 %v1786, 96
    %v1789 = vpop.permute.xlu0 %1788
    %v1791 = vsel %vm376, %v1378, %v1789
    %v1792 = vpack.c.bf16 %v1791, %v1791
    %v1794 = vsel %vm1438, %v1792, 0
    %1796 = vmatpush.bf16.msra.mxu0 0
    %1797 = vmatpush.bf16.msra.mxu0 0
    %1798 = vmatpush.bf16.msra.mxu0 %v1431
    %1799 = vmatpush.bf16.msra.mxu0 %v1430
    %1800 = vmatpush.bf16.msra.mxu0 %v1429
    %1801 = vmatpush.bf16.msra.mxu0 %v1428
    %1802 = vmatpush.bf16.msra.mxu0 %v1427
    %1803 = vmatpush.bf16.msra.mxu0 %v1426
    %1804 = vmatmul.bf16.gmra.mxu0 %v1794
    %v1805 = vpop.f32.mrf.mxu0
    %v1806 = vadd.f32 %v1400, %v1805
    %v1807 = vpop.f32.mrf.mxu0
    %1808 = vdwg.mxu0
    %v1809 = vxor.u32 %v1806, 2147483648
    %v1810 = vmul.f32 %v1809, 1.442695
    %v1811 = vpow.pop %v1810
    %v1812 = vadd.f32 %v1811, 1.0
    %v1813 = vrcp.pop %v1812
    %v1814 = vmul.f32 %v1812, %v1813
    %v1815 = vsub.f32 1.0, %v1814
    %v1816 = vmul.f32 %v1813, %v1815
    %v1817 = vadd.f32 %v1813, %v1816
    %vm1818 = vweird.f32 %v1812
    %vm1819 = vweird.f32 %v1813
    %vm1820 = vmor %vm1818, %vm1819
    %v1821 = vsel %vm1820, %v1813, %v1817
    %v1822 = vand.u32 2147483647, %v1812
    %vm1823 = vcmp.eq.f32.partialorder %v1822, 8.507059e+37
    %v1824 = vand.u32 %v1812, 2147483648
    %v1825 = vor.u32 1.1754944e-38, %v1824
    %v1826 = vsel %vm1823, %v1825, %v1821
    %v1827 = vmul.f32 1.0, %v1826
    %v1828 = vtanh.pop %v1806
    %v1829 = vmul.f32 %v1827, %v1780
    %1831 = vrot.lane.b32.xlu0 %v1828, 64
    %v1832 = vpop.permute.xlu0 %1831
    %v1834 = vmul.f32 %v1827, %v1832
    %1836 = vrot.lane.b32.xlu0 %v1834, 32
    %v1837 = vpop.permute.xlu0 %1836
    %v1839 = vadd.f32 %v1829, %v1837
    %v1840 = vtanh.pop %v1839
    %1842 = vrot.lane.b32.xlu0 %v1840, 64
    %v1843 = vpop.permute.xlu0 %1842
    %v1845 = vmul.f32 %v1827, %v1843
    %1847 = vrot.lane.b32.xlu0 %v1845, 96
    %v1848 = vpop.permute.xlu0 %1847
    %v1850 = vsel %vm376, %v1383, %v1848
    %v1851 = vpack.c.bf16 %v1850, %v1850
    %v1853 = vsel %vm1438, %v1851, 0
    %1855 = vmatpush.bf16.msra.mxu0 0
    %1856 = vmatpush.bf16.msra.mxu0 0
    %1857 = vmatpush.bf16.msra.mxu0 %v1431
    %1858 = vmatpush.bf16.msra.mxu0 %v1430
    %1859 = vmatpush.bf16.msra.mxu0 %v1429
    %1860 = vmatpush.bf16.msra.mxu0 %v1428
    %1861 = vmatpush.bf16.msra.mxu0 %v1427
    %1862 = vmatpush.bf16.msra.mxu0 %v1426
    %1863 = vmatmul.bf16.gmra.mxu0 %v1853
    %v1864 = vpop.f32.mrf.mxu0
    %v1865 = vadd.f32 %v1400, %v1864
    %v1866 = vpop.f32.mrf.mxu0
    %1867 = vdwg.mxu0
    %v1868 = vxor.u32 %v1865, 2147483648
    %v1869 = vmul.f32 %v1868, 1.442695
    %v1870 = vpow.pop %v1869
    %v1871 = vadd.f32 %v1870, 1.0
    %v1872 = vrcp.pop %v1871
    %v1873 = vmul.f32 %v1871, %v1872
    %v1874 = vsub.f32 1.0, %v1873
    %v1875 = vmul.f32 %v1872, %v1874
    %v1876 = vadd.f32 %v1872, %v1875
    %vm1877 = vweird.f32 %v1871
    %vm1878 = vweird.f32 %v1872
    %vm1879 = vmor %vm1877, %vm1878
    %v1880 = vsel %vm1879, %v1872, %v1876
    %v1881 = vand.u32 2147483647, %v1871
    %vm1882 = vcmp.eq.f32.partialorder %v1881, 8.507059e+37
    %v1883 = vand.u32 %v1871, 2147483648
    %v1884 = vor.u32 1.1754944e-38, %v1883
    %v1885 = vsel %vm1882, %v1884, %v1880
    %v1886 = vmul.f32 1.0, %v1885
    %v1887 = vtanh.pop %v1865
    %v1888 = vmul.f32 %v1886, %v1839
    %1890 = vrot.lane.b32.xlu0 %v1887, 64
    %v1891 = vpop.permute.xlu0 %1890
    %v1893 = vmul.f32 %v1886, %v1891
    %1895 = vrot.lane.b32.xlu0 %v1893, 32
    %v1896 = vpop.permute.xlu0 %1895
    %v1898 = vadd.f32 %v1888, %v1896
    %v1899 = vtanh.pop %v1898
    %1901 = vrot.lane.b32.xlu0 %v1899, 64
    %v1902 = vpop.permute.xlu0 %1901
    %v1904 = vmul.f32 %v1886, %v1902
    %v1905 = vld [vmem:[#allocation10] sm:$0xf]
    %v1906 = vld [vmem:[#allocation10 + $0x4] sm:$0xf]
    %v1907 = vld [vmem:[#allocation10 + $0x8] sm:$0xf]
    %v1908 = vld [vmem:[#allocation10 + $0xc] sm:$0xf]
    %v1909 = vld [vmem:[#allocation10 + $0x10] sm:$0xf]
    %v1910 = vld [vmem:[#allocation10 + $0x14] sm:$0xf]
    %v1911 = vld [vmem:[#allocation10 + $0x18] sm:$0xf]
    %v1912 = vld [vmem:[#allocation10 + $0x1c] sm:$0xf]
    %v1913 = vld [vmem:[#allocation10 + $0x20] sm:$0xf]
    %v1914 = vld [vmem:[#allocation10 + $0x24] sm:$0xf]
    %v1915 = vld [vmem:[#allocation10 + $0x28] sm:$0xf]
    %v1916 = vld [vmem:[#allocation10 + $0x2c] sm:$0xf]
    %v1917 = vld [vmem:[#allocation11] sm:$0x1]
    %v1918 = vsel %vm376, %v1383, 0.0
    %v1919 = vpack.c.bf16 %v1918, %v1918
    %v1921 = vperm.slane %v1917, 0
    %v1935 = vunpack.c.l.b16 %v1905
    %v1936 = vunpack.c.l.b16 %v1906
    %v1937 = vunpack.c.l.b16 %v1907
    %v1938 = vunpack.c.l.b16 %v1908
    %v1939 = vunpack.c.l.b16 %v1909
    %v1940 = vunpack.c.l.b16 %v1910
    %v1941 = vunpack.c.l.b16 %v1911
    %v1942 = vunpack.c.l.b16 %v1912
    %v1943 = vunpack.c.l.b16 %v1913
    %v1944 = vunpack.c.l.b16 %v1914
    %v1945 = vunpack.c.l.b16 %v1915
    %v1946 = vunpack.c.l.b16 %v1916
    %v1947 = vpack.c.b16 %v1936, %v1935
    %v1948 = vpack.c.b16 %v1938, %v1937
    %v1949 = vpack.c.b16 %v1940, %v1939
    %v1950 = vpack.c.b16 %v1942, %v1941
    %v1951 = vpack.c.b16 %v1944, %v1943
    %v1952 = vpack.c.b16 %v1946, %v1945
    %v1960 = vsel %vm1438, %v1919, 0
    %1962 = vmatpush.bf16.msra.mxu0 0
    %1963 = vmatpush.bf16.msra.mxu0 0
    %1964 = vmatpush.bf16.msra.mxu0 %v1952
    %1965 = vmatpush.bf16.msra.mxu0 %v1951
    %1966 = vmatpush.bf16.msra.mxu0 %v1950
    %1967 = vmatpush.bf16.msra.mxu0 %v1949
    %1968 = vmatpush.bf16.msra.mxu0 %v1948
    %1969 = vmatpush.bf16.msra.mxu0 %v1947
    %1970 = vmatmul.bf16.gmra.mxu0 %v1960
    %v1971 = vpop.f32.mrf.mxu0
    %v1972 = vadd.f32 %v1921, %v1971
    %v1973 = vpop.f32.mrf.mxu0
    %1974 = vdwg.mxu0
    %v1975 = vxor.u32 %v1972, 2147483648
    %v1976 = vmul.f32 %v1975, 1.442695
    %v1977 = vpow.pop %v1976
    %v1978 = vadd.f32 %v1977, 1.0
    %v1979 = vrcp.pop %v1978
    %v1980 = vmul.f32 %v1978, %v1979
    %v1981 = vsub.f32 1.0, %v1980
    %v1982 = vmul.f32 %v1979, %v1981
    %v1983 = vadd.f32 %v1979, %v1982
    %vm1984 = vweird.f32 %v1978
    %vm1985 = vweird.f32 %v1979
    %vm1986 = vmor %vm1984, %vm1985
    %v1987 = vsel %vm1986, %v1979, %v1983
    %v1988 = vand.u32 2147483647, %v1978
    %vm1989 = vcmp.eq.f32.partialorder %v1988, 8.507059e+37
    %v1990 = vand.u32 %v1978, 2147483648
    %v1991 = vor.u32 1.1754944e-38, %v1990
    %v1992 = vsel %vm1989, %v1991, %v1987
    %v1993 = vmul.f32 1.0, %v1992
    %v1994 = vtanh.pop %v1972
    %v1995 = vmul.f32 %v1993, 0.0
    %1997 = vrot.lane.b32.xlu0 %v1994, 64
    %v1998 = vpop.permute.xlu0 %1997
    %v2000 = vmul.f32 %v1993, %v1998
    %2002 = vrot.lane.b32.xlu0 %v2000, 32
    %v2003 = vpop.permute.xlu0 %2002
    %v2005 = vadd.f32 %v1995, %v2003
    %v2006 = vtanh.pop %v2005
    %2008 = vrot.lane.b32.xlu0 %v2006, 64
    %v2009 = vpop.permute.xlu0 %2008
    %v2011 = vmul.f32 %v1993, %v2009
    %2013 = vrot.lane.b32.xlu0 %v1904, 32
    %v2014 = vpop.permute.xlu0 %2013
    %2017 = vrot.lane.b32.xlu0 %v2011, 64
    %v2018 = vpop.permute.xlu0 %2017
    %v2020 = vsel %vm346, %v2014, %v2018
    %vm2021 = vcmask 517120
    %2022 = vst.msk [vmem:[#allocation13] sm:$0x3] %vm2021, %v2020
    // Predicated region
    $region66: #{word_lstm_forward.1} parent=1 // pred_check
      _
    $region67: #{word_lstm_forward.1} parent=1 // pred_check_branch
      %2024 = sbr.rel (0) target = $region69
    $region68: #{word_lstm_forward.1} parent=1 // pred_region
      %2026 = vsyncadd [#allocation4], 0
      %s2028 = sshll.u32 [#allocation13], 4
      %s2029 = int_to_ptr.vmem [resolvable:$true] %s2028
      %s2030 = sshll.u32 %s10, 4
      %s2031 = int_to_ptr.hbm [resolvable:$true] %s2030
      %2033 = dma.vmem_to_hbm [thread:$0]  %s2029, 32, %s2031, [#allocation4]
    $region69: #{word_lstm_forward.1} parent=1 // pred_fallthru
      _
    // Predicated region
    $region70: #{word_lstm_forward.1} parent=1 // pred_check
      _
    $region71: #{word_lstm_forward.1} parent=1 // pred_check_branch
      %2035 = sbr.rel (0) target = $region73
    $region72: #{word_lstm_forward.1} parent=1 // pred_region
      %2037 = dma.done [#allocation4], 32
    $region73: #{word_lstm_forward.1} parent=1 // pred_fallthru
      _
    %2038 = vsyncpa [#allocation3], 1
    %2039 = vsyncpa [#allocation6], 1
    %2040 = vsyncpa [#allocation9], 1
    %2041 = vsyncpa [#allocation12], 1
    %2042 = vsyncpa [#allocation4], 1

</llo_original>
